<compile_context>
chip_gen: v7x
topology: tpu7x:2x2x1
jax: 0.10.0
libtpu: 0.0.40
codegen_flags: <defaults>
</compile_context>

<pallas_src>
import jax
import jax.numpy as jnp
from jax import lax
from jax.experimental import pallas as pl
from jax.experimental.pallas import tpu as pltpu


# ----------------------------- Pallas kernels ------------------------------

def _template_conv_kernel(zp_ref, wt_ref, bt_ref, o_ref):
    # zp: (B*Pz, K) bf16 spatial-major patches, wt: (K, 960) bf16, bt: (1, 960) f32
    # -> o: (B*Pz, 960) bf16 (lane-dense output, batch folded into rows).
    acc = jnp.dot(zp_ref[...], wt_ref[...], preferred_element_type=jnp.float32)
    o_ref[...] = (acc + bt_ref[...]).astype(o_ref.dtype)


def _make_search_xcorr_kernel(hk, wk, Wf, win, o_cls, o_loc):
    # hk, wk : template-kernel spatial extent (4, 4)
    # Wf     : search-feature width (10); win = Ho*Wf (70) wide accumulator
    def kernel(xp_ref, ws_ref, bs_ref, kp_ref, aw_ref, ab_ref,
               cls_ref, loc_ref, feat_ref):
        # 1) fused search conv (rows 0..C-1 = cls branch, C..2C-1 = loc branch);
        #    result kept in VMEM scratch, never written to HBM.
        feat = jnp.dot(ws_ref[...], xp_ref[0],
                       preferred_element_type=jnp.float32) + bs_ref[...]
        feat_ref[...] = feat.astype(feat_ref.dtype)

        # 2) depthwise cross-correlation as an unrolled sum of shifted matmuls:
        #    for tap (u, v), contract channels of the block-diagonal packed
        #    template kernel against the lane window feat[:, u*Wf+v : +win].
        #    Accumulator columns q = y*Wf + x with x >= Wo are junk (discarded
        #    by the wrapper's final slice), so no roll / gather is needed.
        nrows = o_cls + o_loc
        acc = jnp.zeros((nrows, win), jnp.float32)
        for u in range(hk):
            for v in range(wk):
                k_uv = kp_ref[u * wk + v]                        # (30, 2C) bf16
                window = feat_ref[:, pl.ds(u * Wf + v, win)]     # (2C, win) bf16
                acc = acc + jnp.dot(k_uv, window,
                                    preferred_element_type=jnp.float32)

        # 3) emit cls; fuse the 1x1 loc_adjust conv on the loc rows.
        cls_ref[0] = acc[:o_cls]
        locx = acc[o_cls:].astype(jnp.bfloat16)
        loc_ref[0] = jnp.dot(aw_ref[...], locx,
                             preferred_element_type=jnp.float32) + ab_ref[...]
    return kernel


# ------------------------------ JAX wrappers --------------------------------

def im2col(x, kh, kw, spatial_major=False):
    # x: (B, C, H, W) -> patches with K index = c*kh*kw + u*kw + v (matches
    # PyTorch Conv2d weight flattening) and spatial index y*Wo + x.
    B, C, H, W = x.shape
    Ho, Wo = H - kh + 1, W - kw + 1
    cols = []
    for u in range(kh):
        for v in range(kw):
            cols.append(x[:, :, u:u + Ho, v:v + Wo])
    p = jnp.stack(cols, axis=2)                       # (B, C, kh*kw, Ho, Wo)
    if spatial_major:                                 # (B, Ho*Wo, C*kh*kw)
        return p.transpose(0, 3, 4, 1, 2).reshape(B, Ho * Wo, C * kh * kw)
    return p.reshape(B, C * kh * kw, Ho * Wo)         # (B, C*kh*kw, Ho*Wo)


def _template_conv(zp, wt, bt):
    # zp: (B*Pz, K) bf16, wt: (K, Cout) bf16, bt: (1, Cout) f32 -> (B*Pz, Cout) bf16
    BP, K = zp.shape
    Cout = wt.shape[1]
    return pl.pallas_call(
        _template_conv_kernel,
        out_shape=jax.ShapeDtypeStruct((BP, Cout), jnp.bfloat16),
        grid=(1,),
        in_specs=[pl.BlockSpec((BP, K), lambda i: (0, 0)),
                  pl.BlockSpec((K, Cout), lambda i: (0, 0)),
                  pl.BlockSpec((1, Cout), lambda i: (0, 0))],
        out_specs=pl.BlockSpec((BP, Cout), lambda i: (0, 0)),
    )(zp, wt, bt)


def _search_xcorr_adjust(xp, ws, bs, kp, aw, ab,
                         hk, wk, Wf, win, o_cls, o_loc, Pz):
    # xp: (B, K, P_pad) bf16   search im2col patches, lane-padded
    # ws: (2C, K) bf16, bs: (2C, 1) f32   fused search-conv weights (cls|loc)
    # kp: (B*Pz, 30, 2C) bf16  per-tap block-diagonal template kernels
    # aw: (20, 20) bf16, ab: (20, 1) f32  loc_adjust 1x1 conv
    B, K, Pp = xp.shape
    C2 = ws.shape[0]
    kernel = _make_search_xcorr_kernel(hk, wk, Wf, win, o_cls, o_loc)
    return pl.pallas_call(
        kernel,
        out_shape=(jax.ShapeDtypeStruct((B, o_cls, win), jnp.float32),
                   jax.ShapeDtypeStruct((B, o_loc, win), jnp.float32)),
        grid=(B,),
        in_specs=[
            pl.BlockSpec((1, K, Pp), lambda i: (i, 0, 0)),
            pl.BlockSpec((C2, K), lambda i: (0, 0)),
            pl.BlockSpec((C2, 1), lambda i: (0, 0)),
            pl.BlockSpec((Pz, o_cls + o_loc, C2), lambda i: (i, 0, 0)),
            pl.BlockSpec((o_loc, o_loc), lambda i: (0, 0)),
            pl.BlockSpec((o_loc, 1), lambda i: (0, 0)),
        ],
        out_specs=(pl.BlockSpec((1, o_cls, win), lambda i: (i, 0, 0)),
                   pl.BlockSpec((1, o_loc, win), lambda i: (i, 0, 0))),
        scratch_shapes=[pltpu.VMEM((C2, Pp), jnp.bfloat16)],
        compiler_params=pltpu.CompilerParams(
            dimension_semantics=("parallel",)),   # v7x megacore over batch
    )(xp, ws, bs, kp, aw, ab)


# ------------------------------ UPChannelRPN --------------------------------

def init_params(key, anchor_num=5, feature_in=32):
    cls_output = 2 * anchor_num
    loc_output = 4 * anchor_num

    def conv_init(k, cout, cin, kh, kw):
        kw_, kb_ = jax.random.split(k)
        fan_in = cin * kh * kw
        bound = 1.0 / jnp.sqrt(fan_in)
        w = jax.random.uniform(kw_, (cout, cin, kh, kw), jnp.float32, -bound, bound)
        b = jax.random.uniform(kb_, (cout,), jnp.float32, -bound, bound)
        return w, b

    ks = jax.random.split(key, 5)
    p = {}
    p["tcls_w"], p["tcls_b"] = conv_init(ks[0], feature_in * cls_output, feature_in, 3, 3)
    p["tloc_w"], p["tloc_b"] = conv_init(ks[1], feature_in * loc_output, feature_in, 3, 3)
    p["scls_w"], p["scls_b"] = conv_init(ks[2], feature_in, feature_in, 3, 3)
    p["sloc_w"], p["sloc_b"] = conv_init(ks[3], feature_in, feature_in, 3, 3)
    p["adj_w"], p["adj_b"] = conv_init(ks[4], loc_output, loc_output, 1, 1)
    return p


def prepare_params(params):
    # Hoisted (run once): weight concatenation, reshapes and bf16 casts.
    C = params["scls_w"].shape[0]
    loc_out = params["adj_w"].shape[0]
    prep = {}
    prep["wt"] = jnp.concatenate(
        [params["tcls_w"].reshape(params["tcls_w"].shape[0], -1),
         params["tloc_w"].reshape(params["tloc_w"].shape[0], -1)],
        axis=0).T.astype(jnp.bfloat16)                                   # (288, 960)
    prep["bt"] = jnp.concatenate(
        [params["tcls_b"], params["tloc_b"]])[None, :].astype(jnp.float32)  # (1, 960)
    prep["ws"] = jnp.concatenate(
        [params["scls_w"].reshape(C, -1),
         params["sloc_w"].reshape(C, -1)], axis=0).astype(jnp.bfloat16)  # (64, 288)
    prep["bs"] = jnp.concatenate(
        [params["scls_b"], params["sloc_b"]])[:, None].astype(jnp.float32)  # (64, 1)
    prep["aw"] = params["adj_w"].reshape(loc_out, loc_out).astype(jnp.bfloat16)  # (20, 20)
    prep["ab"] = params["adj_b"][:, None].astype(jnp.float32)            # (20, 1)
    return prep


def upchannel_rpn_forward(prep, z_f, x_f, anchor_num=5):
    B, C, Hz, Wz = z_f.shape
    _, _, Hx, Wx = x_f.shape
    cls_out, loc_out = 2 * anchor_num, 4 * anchor_num
    hk, wk = Hz - 2, Wz - 2                 # template kernel spatial (4, 4)
    Hf, Wf = Hx - 2, Wx - 2                 # search feature spatial (10, 10)
    Ho, Wo = Hf - hk + 1, Wf - wk + 1       # xcorr output spatial (7, 7)
    Pz = hk * wk                            # 16 template taps
    Pf = Hf * Wf                            # 100
    P_pad = ((Pf + 127) // 128) * 128       # 128: unmasked lanes / full MXU cols
    win = Ho * Wf                           # 70-wide accumulator (x>=Wo discarded)
    assert (hk - 1) * Wf + (wk - 1) + win <= P_pad

    # --- template branch: lane-dense, batch-folded conv ----------------------
    zp = im2col(z_f, 3, 3, spatial_major=True).reshape(B * Pz, C * 9)
    T = _template_conv(zp.astype(jnp.bfloat16), prep["wt"], prep["bt"])  # (B*16, 960)

    # --- tiny XLA re-layout: per-tap block-diagonal xcorr kernels -------------
    # kp[b*Pz+s, o, c]      = cls_kernel[b, o*C+c, u, v]        (rows 0..9, cols 0..C-1)
    # kp[b*Pz+s, 10+o, C+c] = loc_kernel[b, o*C+c, u, v]        (rows 10..29, cols C..2C-1)
    T4 = T.reshape(B, Pz, C * (cls_out + loc_out))
    kc = T4[..., :C * cls_out].reshape(B, Pz, cls_out, C)
    kl = T4[..., C * cls_out:].reshape(B, Pz, loc_out, C)
    kc = jnp.pad(kc, ((0, 0), (0, 0), (0, 0), (0, C)))
    kl = jnp.pad(kl, ((0, 0), (0, 0), (0, 0), (C, 0)))
    kp = jnp.concatenate([kc, kl], axis=2).reshape(B * Pz, cls_out + loc_out, 2 * C)

    # --- search branch patches (lane-padded) ----------------------------------
    xp = im2col(x_f, 3, 3)                                            # (B, 288, 100)
    xp = jnp.pad(xp, ((0, 0), (0, 0), (0, P_pad - Pf))).astype(jnp.bfloat16)

    # --- one fused kernel: search conv + xcorr + loc_adjust --------------------
    cls_w, loc_w = _search_xcorr_adjust(xp, prep["ws"], prep["bs"], kp,
                                        prep["aw"], prep["ab"],
                                        hk, wk, Wf, win, cls_out, loc_out, Pz)
    cls = cls_w.reshape(B, cls_out, Ho, Wf)[..., :Wo]
    loc = loc_w.reshape(B, loc_out, Ho, Wf)[..., :Wo]
    return cls, loc


# ------------------------- pure-JAX reference (check) ------------------------

def _ref_conv(x, w, b):
    y = lax.conv_general_dilated(x, w, (1, 1), "VALID",
                                 dimension_numbers=("NCHW", "OIHW", "NCHW"))
    return y + b[None, :, None, None]


def ref_forward(params, z_f, x_f, anchor_num=5):
    C = z_f.shape[1]
    cls_k = _ref_conv(z_f, params["tcls_w"], params["tcls_b"])
    loc_k = _ref_conv(z_f, params["tloc_w"], params["tloc_b"])
    cls_f = _ref_conv(x_f, params["scls_w"], params["scls_b"])
    loc_f = _ref_conv(x_f, params["sloc_w"], params["sloc_b"])

    def xcorr(feat, kern, nout):
        outs = []
        for b in range(feat.shape[0]):
            w = kern[b].reshape(nout, C, kern.shape[2], kern.shape[3])
            outs.append(lax.conv_general_dilated(
                feat[b:b + 1], w, (1, 1), "VALID",
                dimension_numbers=("NCHW", "OIHW", "NCHW")))
        return jnp.concatenate(outs, axis=0)

    cls = xcorr(cls_f, cls_k, 2 * anchor_num)
    loc = _ref_conv(xcorr(loc_f, loc_k, 4 * anchor_num),
                    params["adj_w"], params["adj_b"])
    return cls, loc


if __name__ == "__main__":
    key = jax.random.PRNGKey(0)
    k_p, k_z, k_x = jax.random.split(key, 3)

    anchor_num, feature_in = 5, 32
    params = init_params(k_p, anchor_num=anchor_num, feature_in=feature_in)
    prep = prepare_params(params)      # hoisted: runs once, not per forward step

    # z_f: template features (NCHW), x_f: search features (NCHW)
    z_f = jax.random.normal(k_z, (2, feature_in, 6, 6), jnp.float32)
    x_f = jax.random.normal(k_x, (2, feature_in, 12, 12), jnp.float32)

    fwd = jax.jit(lambda pp, z, x: upchannel_rpn_forward(pp, z, x, anchor_num=anchor_num))
    cls, loc = fwd(prep, z_f, x_f)
    jax.block_until_ready((cls, loc))

    assert cls.shape == (2, 2 * anchor_num, 7, 7), cls.shape
    assert loc.shape == (2, 4 * anchor_num, 7, 7), loc.shape

    # bf16-operand / f32-accumulate path: validate with a norm-relative tolerance.
    cls_r, loc_r = jax.jit(lambda p, z, x: ref_forward(p, z, x, anchor_num))(params, z_f, x_f)

    def rel_err(a, b):
        return float(jnp.linalg.norm(a - b) / (jnp.linalg.norm(b) + 1e-6))

    assert rel_err(cls, cls_r) < 5e-2, rel_err(cls, cls_r)
    assert rel_err(loc, loc_r) < 5e-2, rel_err(loc, loc_r)
    print("KERNEL_OK")
</pallas_src>

<mosaic_0001>
module attributes {stable_mosaic.version = 11 : i64} {
  func.func @_template_conv_kernel(%arg0: i32, %arg1: memref<32x288xbf16, #tpu.memory_space<vmem>>, %arg2: memref<288x960xbf16, #tpu.memory_space<vmem>>, %arg3: memref<1x960xf32, #tpu.memory_space<vmem>>, %arg4: memref<32x960xbf16, #tpu.memory_space<vmem>>) attributes {dimension_semantics = [#tpu.dimension_semantics<arbitrary>], iteration_bounds = array<i64: 1>, scalar_prefetch = 0 : i64, scratch_operands = 0 : i64, tpu.core_type = #tpu.core_type<tc>, window_params = [{pipeline_mode = #tpu.pipeline_mode<synchronous>, transform_indices = @transform_0, window_bounds = array<i64: 32, 288>}, {pipeline_mode = #tpu.pipeline_mode<synchronous>, transform_indices = @transform_1, window_bounds = array<i64: 288, 960>}, {pipeline_mode = #tpu.pipeline_mode<synchronous>, transform_indices = @transform_2, window_bounds = array<i64: 1, 960>}, {pipeline_mode = #tpu.pipeline_mode<synchronous>, transform_indices = @transform_3, window_bounds = array<i64: 32, 960>}]} {
    %c0 = arith.constant 0 : index
    %c0_0 = arith.constant 0 : index
    %0 = vector.load %arg1[%c0, %c0_0] : memref<32x288xbf16, #tpu.memory_space<vmem>>, vector<32x288xbf16>
    %c0_1 = arith.constant 0 : index
    %c0_2 = arith.constant 0 : index
    %1 = vector.load %arg2[%c0_1, %c0_2] : memref<288x960xbf16, #tpu.memory_space<vmem>>, vector<288x960xbf16>
    %cst = arith.constant dense<0.000000e+00> : vector<32x960xf32>
    %2 = tpu.matmul %0, %1, %cst {dimension_numbers = #tpu.dot_dimension_numbers<[1], [0], [0], [1], [0, 0, 1, 1], [], []>} : vector<32x288xbf16>, vector<288x960xbf16>, vector<32x960xf32> -> vector<32x960xf32>
    %c0_3 = arith.constant 0 : index
    %c0_4 = arith.constant 0 : index
    %3 = vector.load %arg3[%c0_3, %c0_4] : memref<1x960xf32, #tpu.memory_space<vmem>>, vector<1x960xf32>
    %4 = vector.broadcast %3 : vector<1x960xf32> to vector<32x960xf32>
    %5 = arith.addf %2, %4 : vector<32x960xf32>
    %6 = arith.truncf %5 : vector<32x960xf32> to vector<32x960xbf16>
    %c0_5 = arith.constant 0 : index
    %c0_6 = arith.constant 0 : index
    %7 = vector.load %arg4[%c0_5, %c0_6] : memref<32x960xbf16, #tpu.memory_space<vmem>>, vector<32x960xbf16>
    tpu.vector_store %arg4[%c0_5, %c0_6], %6 {strides = array<i32>} : memref<32x960xbf16, #tpu.memory_space<vmem>>, vector<32x960xbf16>,
    return
  }
  func.func @transform_0(%arg0: i32) -> (i32, i32) {
    %c0_i32 = arith.constant 0 : i32
    %c0_i32_0 = arith.constant 0 : i32
    %c0_i32_1 = arith.constant 0 : i32
    return %c0_i32, %c0_i32_0 : i32, i32
  }
  func.func @transform_1(%arg0: i32) -> (i32, i32) {
    %c0_i32 = arith.constant 0 : i32
    %c0_i32_0 = arith.constant 0 : i32
    %c0_i32_1 = arith.constant 0 : i32
    return %c0_i32, %c0_i32_0 : i32, i32
  }
  func.func @transform_2(%arg0: i32) -> (i32, i32) {
    %c0_i32 = arith.constant 0 : i32
    %c0_i32_0 = arith.constant 0 : i32
    %c0_i32_1 = arith.constant 0 : i32
    return %c0_i32, %c0_i32_0 : i32, i32
  }
  func.func @transform_3(%arg0: i32) -> (i32, i32) {
    %c0_i32 = arith.constant 0 : i32
    %c0_i32_0 = arith.constant 0 : i32
    %c0_i32_1 = arith.constant 0 : i32
    return %c0_i32, %c0_i32_0 : i32, i32
  }
}

module attributes {stable_mosaic.version = 11 : i64} {
  func.func @kernel(%arg0: i32, %arg1: memref<1x288x128xbf16, #tpu.memory_space<vmem>>, %arg2: memref<64x288xbf16, #tpu.memory_space<vmem>>, %arg3: memref<64x1xf32, #tpu.memory_space<vmem>>, %arg4: memref<16x30x64xbf16, #tpu.memory_space<vmem>>, %arg5: memref<20x20xbf16, #tpu.memory_space<vmem>>, %arg6: memref<20x1xf32, #tpu.memory_space<vmem>>, %arg7: memref<1x10x70xf32, #tpu.memory_space<vmem>>, %arg8: memref<1x20x70xf32, #tpu.memory_space<vmem>>, %arg9: memref<64x128xbf16, #tpu.memory_space<vmem>>) attributes {dimension_semantics = [#tpu.dimension_semantics<parallel>], iteration_bounds = array<i64: 2>, scalar_prefetch = 0 : i64, scratch_operands = 1 : i64, tpu.core_type = #tpu.core_type<tc>, window_params = [{transform_indices = @transform_0, window_bounds = array<i64: 1, 288, 128>}, {pipeline_mode = #tpu.pipeline_mode<synchronous>, transform_indices = @transform_1, window_bounds = array<i64: 64, 288>}, {pipeline_mode = #tpu.pipeline_mode<synchronous>, transform_indices = @transform_2, window_bounds = array<i64: 64, 1>}, {transform_indices = @transform_3, window_bounds = array<i64: 16, 30, 64>}, {pipeline_mode = #tpu.pipeline_mode<synchronous>, transform_indices = @transform_4, window_bounds = array<i64: 20, 20>}, {pipeline_mode = #tpu.pipeline_mode<synchronous>, transform_indices = @transform_5, window_bounds = array<i64: 20, 1>}, {transform_indices = @transform_6, window_bounds = array<i64: 1, 10, 70>}, {transform_indices = @transform_7, window_bounds = array<i64: 1, 20, 70>}]} {
    %c0 = arith.constant 0 : index
    %c0_0 = arith.constant 0 : index
    %0 = vector.load %arg2[%c0, %c0_0] : memref<64x288xbf16, #tpu.memory_space<vmem>>, vector<64x288xbf16>
    %c0_1 = arith.constant 0 : index
    %c0_2 = arith.constant 0 : index
    %c0_3 = arith.constant 0 : index
    %1 = vector.load %arg1[%c0_1, %c0_2, %c0_3] : memref<1x288x128xbf16, #tpu.memory_space<vmem>>, vector<1x288x128xbf16>
    %2 = vector.shape_cast %1 : vector<1x288x128xbf16> to vector<288x128xbf16>
    %cst = arith.constant dense<0.000000e+00> : vector<64x128xf32>
    %3 = tpu.matmul %0, %2, %cst {dimension_numbers = #tpu.dot_dimension_numbers<[1], [0], [0], [1], [0, 0, 1, 1], [], []>} : vector<64x288xbf16>, vector<288x128xbf16>, vector<64x128xf32> -> vector<64x128xf32>
    %c0_4 = arith.constant 0 : index
    %c0_5 = arith.constant 0 : index
    %4 = vector.load %arg3[%c0_4, %c0_5] : memref<64x1xf32, #tpu.memory_space<vmem>>, vector<64x1xf32>
    %5 = vector.broadcast %4 : vector<64x1xf32> to vector<64x128xf32>
    %6 = arith.addf %3, %5 : vector<64x128xf32>
    %7 = arith.truncf %6 : vector<64x128xf32> to vector<64x128xbf16>
    %c0_6 = arith.constant 0 : index
    %c0_7 = arith.constant 0 : index
    %8 = vector.load %arg9[%c0_6, %c0_7] : memref<64x128xbf16, #tpu.memory_space<vmem>>, vector<64x128xbf16>
    tpu.vector_store %arg9[%c0_6, %c0_7], %7 {strides = array<i32>} : memref<64x128xbf16, #tpu.memory_space<vmem>>, vector<64x128xbf16>,
    %cst_8 = arith.constant 0.000000e+00 : f32
    %9 = vector.broadcast %cst_8 : f32 to vector<30x70xf32>
    %c0_9 = arith.constant 0 : index
    %c0_10 = arith.constant 0 : index
    %c0_11 = arith.constant 0 : index
    %10 = vector.load %arg4[%c0_9, %c0_10, %c0_11] : memref<16x30x64xbf16, #tpu.memory_space<vmem>>, vector<1x30x64xbf16>
    %11 = vector.shape_cast %10 : vector<1x30x64xbf16> to vector<30x64xbf16>
    %c0_12 = arith.constant 0 : index
    %c0_13 = arith.constant 0 : index
    %12 = vector.load %arg9[%c0_12, %c0_13] : memref<64x128xbf16, #tpu.memory_space<vmem>>, vector<64x70xbf16>
    %cst_14 = arith.constant dense<0.000000e+00> : vector<30x70xf32>
    %13 = tpu.matmul %11, %12, %cst_14 {dimension_numbers = #tpu.dot_dimension_numbers<[1], [0], [0], [1], [0, 0, 1, 1], [], []>} : vector<30x64xbf16>, vector<64x70xbf16>, vector<30x70xf32> -> vector<30x70xf32>
    %14 = arith.addf %9, %13 : vector<30x70xf32>
    %c1 = arith.constant 1 : index
    %c0_15 = arith.constant 0 : index
    %c0_16 = arith.constant 0 : index
    %15 = vector.load %arg4[%c1, %c0_15, %c0_16] : memref<16x30x64xbf16, #tpu.memory_space<vmem>>, vector<1x30x64xbf16>
    %16 = vector.shape_cast %15 : vector<1x30x64xbf16> to vector<30x64xbf16>
    %c0_17 = arith.constant 0 : index
    %c1_18 = arith.constant 1 : index
    %17 = vector.load %arg9[%c0_17, %c1_18] : memref<64x128xbf16, #tpu.memory_space<vmem>>, vector<64x70xbf16>
    %cst_19 = arith.constant dense<0.000000e+00> : vector<30x70xf32>
    %18 = tpu.matmul %16, %17, %cst_19 {dimension_numbers = #tpu.dot_dimension_numbers<[1], [0], [0], [1], [0, 0, 1, 1], [], []>} : vector<30x64xbf16>, vector<64x70xbf16>, vector<30x70xf32> -> vector<30x70xf32>
    %19 = arith.addf %14, %18 : vector<30x70xf32>
    %c2 = arith.constant 2 : index
    %c0_20 = arith.constant 0 : index
    %c0_21 = arith.constant 0 : index
    %20 = vector.load %arg4[%c2, %c0_20, %c0_21] : memref<16x30x64xbf16, #tpu.memory_space<vmem>>, vector<1x30x64xbf16>
    %21 = vector.shape_cast %20 : vector<1x30x64xbf16> to vector<30x64xbf16>
    %c0_22 = arith.constant 0 : index
    %c2_23 = arith.constant 2 : index
    %22 = vector.load %arg9[%c0_22, %c2_23] : memref<64x128xbf16, #tpu.memory_space<vmem>>, vector<64x70xbf16>
    %cst_24 = arith.constant dense<0.000000e+00> : vector<30x70xf32>
    %23 = tpu.matmul %21, %22, %cst_24 {dimension_numbers = #tpu.dot_dimension_numbers<[1], [0], [0], [1], [0, 0, 1, 1], [], []>} : vector<30x64xbf16>, vector<64x70xbf16>, vector<30x70xf32> -> vector<30x70xf32>
    %24 = arith.addf %19, %23 : vector<30x70xf32>
    %c3 = arith.constant 3 : index
    %c0_25 = arith.constant 0 : index
    %c0_26 = arith.constant 0 : index
    %25 = vector.load %arg4[%c3, %c0_25, %c0_26] : memref<16x30x64xbf16, #tpu.memory_space<vmem>>, vector<1x30x64xbf16>
    %26 = vector.shape_cast %25 : vector<1x30x64xbf16> to vector<30x64xbf16>
    %c0_27 = arith.constant 0 : index
    %c3_28 = arith.constant 3 : index
    %27 = vector.load %arg9[%c0_27, %c3_28] : memref<64x128xbf16, #tpu.memory_space<vmem>>, vector<64x70xbf16>
    %cst_29 = arith.constant dense<0.000000e+00> : vector<30x70xf32>
    %28 = tpu.matmul %26, %27, %cst_29 {dimension_numbers = #tpu.dot_dimension_numbers<[1], [0], [0], [1], [0, 0, 1, 1], [], []>} : vector<30x64xbf16>, vector<64x70xbf16>, vector<30x70xf32> -> vector<30x70xf32>
    %29 = arith.addf %24, %28 : vector<30x70xf32>
    %c4 = arith.constant 4 : index
    %c0_30 = arith.constant 0 : index
    %c0_31 = arith.constant 0 : index
    %30 = vector.load %arg4[%c4, %c0_30, %c0_31] : memref<16x30x64xbf16, #tpu.memory_space<vmem>>, vector<1x30x64xbf16>
    %31 = vector.shape_cast %30 : vector<1x30x64xbf16> to vector<30x64xbf16>
    %c0_32 = arith.constant 0 : index
    %c10 = arith.constant 10 : index
    %32 = vector.load %arg9[%c0_32, %c10] : memref<64x128xbf16, #tpu.memory_space<vmem>>, vector<64x70xbf16>
    %cst_33 = arith.constant dense<0.000000e+00> : vector<30x70xf32>
    %33 = tpu.matmul %31, %32, %cst_33 {dimension_numbers = #tpu.dot_dimension_numbers<[1], [0], [0], [1], [0, 0, 1, 1], [], []>} : vector<30x64xbf16>, vector<64x70xbf16>, vector<30x70xf32> -> vector<30x70xf32>
    %34 = arith.addf %29, %33 : vector<30x70xf32>
    %c5 = arith.constant 5 : index
    %c0_34 = arith.constant 0 : index
    %c0_35 = arith.constant 0 : index
    %35 = vector.load %arg4[%c5, %c0_34, %c0_35] : memref<16x30x64xbf16, #tpu.memory_space<vmem>>, vector<1x30x64xbf16>
    %36 = vector.shape_cast %35 : vector<1x30x64xbf16> to vector<30x64xbf16>
    %c0_36 = arith.constant 0 : index
    %c11 = arith.constant 11 : index
    %37 = vector.load %arg9[%c0_36, %c11] : memref<64x128xbf16, #tpu.memory_space<vmem>>, vector<64x70xbf16>
    %cst_37 = arith.constant dense<0.000000e+00> : vector<30x70xf32>
    %38 = tpu.matmul %36, %37, %cst_37 {dimension_numbers = #tpu.dot_dimension_numbers<[1], [0], [0], [1], [0, 0, 1, 1], [], []>} : vector<30x64xbf16>, vector<64x70xbf16>, vector<30x70xf32> -> vector<30x70xf32>
    %39 = arith.addf %34, %38 : vector<30x70xf32>
    %c6 = arith.constant 6 : index
    %c0_38 = arith.constant 0 : index
    %c0_39 = arith.constant 0 : index
    %40 = vector.load %arg4[%c6, %c0_38, %c0_39] : memref<16x30x64xbf16, #tpu.memory_space<vmem>>, vector<1x30x64xbf16>
    %41 = vector.shape_cast %40 : vector<1x30x64xbf16> to vector<30x64xbf16>
    %c0_40 = arith.constant 0 : index
    %c12 = arith.constant 12 : index
    %42 = vector.load %arg9[%c0_40, %c12] : memref<64x128xbf16, #tpu.memory_space<vmem>>, vector<64x70xbf16>
    %cst_41 = arith.constant dense<0.000000e+00> : vector<30x70xf32>
    %43 = tpu.matmul %41, %42, %cst_41 {dimension_numbers = #tpu.dot_dimension_numbers<[1], [0], [0], [1], [0, 0, 1, 1], [], []>} : vector<30x64xbf16>, vector<64x70xbf16>, vector<30x70xf32> -> vector<30x70xf32>
    %44 = arith.addf %39, %43 : vector<30x70xf32>
    %c7 = arith.constant 7 : index
    %c0_42 = arith.constant 0 : index
    %c0_43 = arith.constant 0 : index
    %45 = vector.load %arg4[%c7, %c0_42, %c0_43] : memref<16x30x64xbf16, #tpu.memory_space<vmem>>, vector<1x30x64xbf16>
    %46 = vector.shape_cast %45 : vector<1x30x64xbf16> to vector<30x64xbf16>
    %c0_44 = arith.constant 0 : index
    %c13 = arith.constant 13 : index
    %47 = vector.load %arg9[%c0_44, %c13] : memref<64x128xbf16, #tpu.memory_space<vmem>>, vector<64x70xbf16>
    %cst_45 = arith.constant dense<0.000000e+00> : vector<30x70xf32>
    %48 = tpu.matmul %46, %47, %cst_45 {dimension_numbers = #tpu.dot_dimension_numbers<[1], [0], [0], [1], [0, 0, 1, 1], [], []>} : vector<30x64xbf16>, vector<64x70xbf16>, vector<30x70xf32> -> vector<30x70xf32>
    %49 = arith.addf %44, %48 : vector<30x70xf32>
    %c8 = arith.constant 8 : index
    %c0_46 = arith.constant 0 : index
    %c0_47 = arith.constant 0 : index
    %50 = vector.load %arg4[%c8, %c0_46, %c0_47] : memref<16x30x64xbf16, #tpu.memory_space<vmem>>, vector<1x30x64xbf16>
    %51 = vector.shape_cast %50 : vector<1x30x64xbf16> to vector<30x64xbf16>
    %c0_48 = arith.constant 0 : index
    %c20 = arith.constant 20 : index
    %52 = vector.load %arg9[%c0_48, %c20] : memref<64x128xbf16, #tpu.memory_space<vmem>>, vector<64x70xbf16>
    %cst_49 = arith.constant dense<0.000000e+00> : vector<30x70xf32>
    %53 = tpu.matmul %51, %52, %cst_49 {dimension_numbers = #tpu.dot_dimension_numbers<[1], [0], [0], [1], [0, 0, 1, 1], [], []>} : vector<30x64xbf16>, vector<64x70xbf16>, vector<30x70xf32> -> vector<30x70xf32>
    %54 = arith.addf %49, %53 : vector<30x70xf32>
    %c9 = arith.constant 9 : index
    %c0_50 = arith.constant 0 : index
    %c0_51 = arith.constant 0 : index
    %55 = vector.load %arg4[%c9, %c0_50, %c0_51] : memref<16x30x64xbf16, #tpu.memory_space<vmem>>, vector<1x30x64xbf16>
    %56 = vector.shape_cast %55 : vector<1x30x64xbf16> to vector<30x64xbf16>
    %c0_52 = arith.constant 0 : index
    %c21 = arith.constant 21 : index
    %57 = vector.load %arg9[%c0_52, %c21] : memref<64x128xbf16, #tpu.memory_space<vmem>>, vector<64x70xbf16>
    %cst_53 = arith.constant dense<0.000000e+00> : vector<30x70xf32>
    %58 = tpu.matmul %56, %57, %cst_53 {dimension_numbers = #tpu.dot_dimension_numbers<[1], [0], [0], [1], [0, 0, 1, 1], [], []>} : vector<30x64xbf16>, vector<64x70xbf16>, vector<30x70xf32> -> vector<30x70xf32>
    %59 = arith.addf %54, %58 : vector<30x70xf32>
    %c10_54 = arith.constant 10 : index
    %c0_55 = arith.constant 0 : index
    %c0_56 = arith.constant 0 : index
    %60 = vector.load %arg4[%c10_54, %c0_55, %c0_56] : memref<16x30x64xbf16, #tpu.memory_space<vmem>>, vector<1x30x64xbf16>
    %61 = vector.shape_cast %60 : vector<1x30x64xbf16> to vector<30x64xbf16>
    %c0_57 = arith.constant 0 : index
    %c22 = arith.constant 22 : index
    %62 = vector.load %arg9[%c0_57, %c22] : memref<64x128xbf16, #tpu.memory_space<vmem>>, vector<64x70xbf16>
    %cst_58 = arith.constant dense<0.000000e+00> : vector<30x70xf32>
    %63 = tpu.matmul %61, %62, %cst_58 {dimension_numbers = #tpu.dot_dimension_numbers<[1], [0], [0], [1], [0, 0, 1, 1], [], []>} : vector<30x64xbf16>, vector<64x70xbf16>, vector<30x70xf32> -> vector<30x70xf32>
    %64 = arith.addf %59, %63 : vector<30x70xf32>
    %c11_59 = arith.constant 11 : index
    %c0_60 = arith.constant 0 : index
    %c0_61 = arith.constant 0 : index
    %65 = vector.load %arg4[%c11_59, %c0_60, %c0_61] : memref<16x30x64xbf16, #tpu.memory_space<vmem>>, vector<1x30x64xbf16>
    %66 = vector.shape_cast %65 : vector<1x30x64xbf16> to vector<30x64xbf16>
    %c0_62 = arith.constant 0 : index
    %c23 = arith.constant 23 : index
    %67 = vector.load %arg9[%c0_62, %c23] : memref<64x128xbf16, #tpu.memory_space<vmem>>, vector<64x70xbf16>
    %cst_63 = arith.constant dense<0.000000e+00> : vector<30x70xf32>
    %68 = tpu.matmul %66, %67, %cst_63 {dimension_numbers = #tpu.dot_dimension_numbers<[1], [0], [0], [1], [0, 0, 1, 1], [], []>} : vector<30x64xbf16>, vector<64x70xbf16>, vector<30x70xf32> -> vector<30x70xf32>
    %69 = arith.addf %64, %68 : vector<30x70xf32>
    %c12_64 = arith.constant 12 : index
    %c0_65 = arith.constant 0 : index
    %c0_66 = arith.constant 0 : index
    %70 = vector.load %arg4[%c12_64, %c0_65, %c0_66] : memref<16x30x64xbf16, #tpu.memory_space<vmem>>, vector<1x30x64xbf16>
    %71 = vector.shape_cast %70 : vector<1x30x64xbf16> to vector<30x64xbf16>
    %c0_67 = arith.constant 0 : index
    %c30 = arith.constant 30 : index
    %72 = vector.load %arg9[%c0_67, %c30] : memref<64x128xbf16, #tpu.memory_space<vmem>>, vector<64x70xbf16>
    %cst_68 = arith.constant dense<0.000000e+00> : vector<30x70xf32>
    %73 = tpu.matmul %71, %72, %cst_68 {dimension_numbers = #tpu.dot_dimension_numbers<[1], [0], [0], [1], [0, 0, 1, 1], [], []>} : vector<30x64xbf16>, vector<64x70xbf16>, vector<30x70xf32> -> vector<30x70xf32>
    %74 = arith.addf %69, %73 : vector<30x70xf32>
    %c13_69 = arith.constant 13 : index
    %c0_70 = arith.constant 0 : index
    %c0_71 = arith.constant 0 : index
    %75 = vector.load %arg4[%c13_69, %c0_70, %c0_71] : memref<16x30x64xbf16, #tpu.memory_space<vmem>>, vector<1x30x64xbf16>
    %76 = vector.shape_cast %75 : vector<1x30x64xbf16> to vector<30x64xbf16>
    %c0_72 = arith.constant 0 : index
    %c31 = arith.constant 31 : index
    %77 = vector.load %arg9[%c0_72, %c31] : memref<64x128xbf16, #tpu.memory_space<vmem>>, vector<64x70xbf16>
    %cst_73 = arith.constant dense<0.000000e+00> : vector<30x70xf32>
    %78 = tpu.matmul %76, %77, %cst_73 {dimension_numbers = #tpu.dot_dimension_numbers<[1], [0], [0], [1], [0, 0, 1, 1], [], []>} : vector<30x64xbf16>, vector<64x70xbf16>, vector<30x70xf32> -> vector<30x70xf32>
    %79 = arith.addf %74, %78 : vector<30x70xf32>
    %c14 = arith.constant 14 : index
    %c0_74 = arith.constant 0 : index
    %c0_75 = arith.constant 0 : index
    %80 = vector.load %arg4[%c14, %c0_74, %c0_75] : memref<16x30x64xbf16, #tpu.memory_space<vmem>>, vector<1x30x64xbf16>
    %81 = vector.shape_cast %80 : vector<1x30x64xbf16> to vector<30x64xbf16>
    %c0_76 = arith.constant 0 : index
    %c32 = arith.constant 32 : index
    %82 = vector.load %arg9[%c0_76, %c32] : memref<64x128xbf16, #tpu.memory_space<vmem>>, vector<64x70xbf16>
    %cst_77 = arith.constant dense<0.000000e+00> : vector<30x70xf32>
    %83 = tpu.matmul %81, %82, %cst_77 {dimension_numbers = #tpu.dot_dimension_numbers<[1], [0], [0], [1], [0, 0, 1, 1], [], []>} : vector<30x64xbf16>, vector<64x70xbf16>, vector<30x70xf32> -> vector<30x70xf32>
    %84 = arith.addf %79, %83 : vector<30x70xf32>
    %c15 = arith.constant 15 : index
    %c0_78 = arith.constant 0 : index
    %c0_79 = arith.constant 0 : index
    %85 = vector.load %arg4[%c15, %c0_78, %c0_79] : memref<16x30x64xbf16, #tpu.memory_space<vmem>>, vector<1x30x64xbf16>
    %86 = vector.shape_cast %85 : vector<1x30x64xbf16> to vector<30x64xbf16>
    %c0_80 = arith.constant 0 : index
    %c33 = arith.constant 33 : index
    %87 = vector.load %arg9[%c0_80, %c33] : memref<64x128xbf16, #tpu.memory_space<vmem>>, vector<64x70xbf16>
    %cst_81 = arith.constant dense<0.000000e+00> : vector<30x70xf32>
    %88 = tpu.matmul %86, %87, %cst_81 {dimension_numbers = #tpu.dot_dimension_numbers<[1], [0], [0], [1], [0, 0, 1, 1], [], []>} : vector<30x64xbf16>, vector<64x70xbf16>, vector<30x70xf32> -> vector<30x70xf32>
    %89 = arith.addf %84, %88 : vector<30x70xf32>
    %90 = vector.extract_strided_slice %89 {offsets = [0, 0], sizes = [10, 70], strides = [1, 1]} : vector<30x70xf32> to vector<10x70xf32>
    %c0_82 = arith.constant 0 : index
    %c0_83 = arith.constant 0 : index
    %c0_84 = arith.constant 0 : index
    %91 = vector.load %arg7[%c0_82, %c0_83, %c0_84] : memref<1x10x70xf32, #tpu.memory_space<vmem>>, vector<1x10x70xf32>
    %92 = vector.shape_cast %91 : vector<1x10x70xf32> to vector<10x70xf32>
    %93 = vector.shape_cast %90 : vector<10x70xf32> to vector<1x10x70xf32>
    tpu.vector_store %arg7[%c0_82, %c0_83, %c0_84], %93 {strides = array<i32>} : memref<1x10x70xf32, #tpu.memory_space<vmem>>, vector<1x10x70xf32>,
    %94 = vector.extract_strided_slice %89 {offsets = [10, 0], sizes = [20, 70], strides = [1, 1]} : vector<30x70xf32> to vector<20x70xf32>
    %95 = arith.truncf %94 : vector<20x70xf32> to vector<20x70xbf16>
    %c0_85 = arith.constant 0 : index
    %c0_86 = arith.constant 0 : index
    %96 = vector.load %arg5[%c0_85, %c0_86] : memref<20x20xbf16, #tpu.memory_space<vmem>>, vector<20x20xbf16>
    %cst_87 = arith.constant dense<0.000000e+00> : vector<20x70xf32>
    %97 = tpu.matmul %96, %95, %cst_87 {dimension_numbers = #tpu.dot_dimension_numbers<[1], [0], [0], [1], [0, 0, 1, 1], [], []>} : vector<20x20xbf16>, vector<20x70xbf16>, vector<20x70xf32> -> vector<20x70xf32>
    %c0_88 = arith.constant 0 : index
    %c0_89 = arith.constant 0 : index
    %98 = vector.load %arg6[%c0_88, %c0_89] : memref<20x1xf32, #tpu.memory_space<vmem>>, vector<20x1xf32>
    %99 = vector.broadcast %98 : vector<20x1xf32> to vector<20x70xf32>
    %100 = arith.addf %97, %99 : vector<20x70xf32>
    %c0_90 = arith.constant 0 : index
    %c0_91 = arith.constant 0 : index
    %c0_92 = arith.constant 0 : index
    %101 = vector.load %arg8[%c0_90, %c0_91, %c0_92] : memref<1x20x70xf32, #tpu.memory_space<vmem>>, vector<1x20x70xf32>
    %102 = vector.shape_cast %101 : vector<1x20x70xf32> to vector<20x70xf32>
    %103 = vector.shape_cast %100 : vector<20x70xf32> to vector<1x20x70xf32>
    tpu.vector_store %arg8[%c0_90, %c0_91, %c0_92], %103 {strides = array<i32>} : memref<1x20x70xf32, #tpu.memory_space<vmem>>, vector<1x20x70xf32>,
    return
  }
  func.func @transform_0(%arg0: i32) -> (i32, i32, i32) {
    %c0_i32 = arith.constant 0 : i32
    %c0_i32_0 = arith.constant 0 : i32
    %c0_i32_1 = arith.constant 0 : i32
    return %arg0, %c0_i32, %c0_i32_0 : i32, i32, i32
  }
  func.func @transform_1(%arg0: i32) -> (i32, i32) {
    %c0_i32 = arith.constant 0 : i32
    %c0_i32_0 = arith.constant 0 : i32
    %c0_i32_1 = arith.constant 0 : i32
    return %c0_i32, %c0_i32_0 : i32, i32
  }
  func.func @transform_2(%arg0: i32) -> (i32, i32) {
    %c0_i32 = arith.constant 0 : i32
    %c0_i32_0 = arith.constant 0 : i32
    %c0_i32_1 = arith.constant 0 : i32
    return %c0_i32, %c0_i32_0 : i32, i32
  }
  func.func @transform_3(%arg0: i32) -> (i32, i32, i32) {
    %c0_i32 = arith.constant 0 : i32
    %c0_i32_0 = arith.constant 0 : i32
    %c0_i32_1 = arith.constant 0 : i32
    return %arg0, %c0_i32, %c0_i32_0 : i32, i32, i32
  }
  func.func @transform_4(%arg0: i32) -> (i32, i32) {
    %c0_i32 = arith.constant 0 : i32
    %c0_i32_0 = arith.constant 0 : i32
    %c0_i32_1 = arith.constant 0 : i32
    return %c0_i32, %c0_i32_0 : i32, i32
  }
  func.func @transform_5(%arg0: i32) -> (i32, i32) {
    %c0_i32 = arith.constant 0 : i32
    %c0_i32_0 = arith.constant 0 : i32
    %c0_i32_1 = arith.constant 0 : i32
    return %c0_i32, %c0_i32_0 : i32, i32
  }
  func.func @transform_6(%arg0: i32) -> (i32, i32, i32) {
    %c0_i32 = arith.constant 0 : i32
    %c0_i32_0 = arith.constant 0 : i32
    %c0_i32_1 = arith.constant 0 : i32
    return %arg0, %c0_i32, %c0_i32_0 : i32, i32, i32
  }
  func.func @transform_7(%arg0: i32) -> (i32, i32, i32) {
    %c0_i32 = arith.constant 0 : i32
    %c0_i32_0 = arith.constant 0 : i32
    %c0_i32_1 = arith.constant 0 : i32
    return %arg0, %c0_i32, %c0_i32_0 : i32, i32, i32
  }
}

</mosaic_0001>

<llo_original>
// kernel: _lambda_.2
$region0: #{_lambda_.2}
  #allocation0 [shape = 'u32[]', space=smem, size = 0x4, offset = 0x4, fixed_abs, tag = 'smem constant byte address 0x4 - core index']
  #allocation1 [shape = 'u32[144,128]{1,0:T(1,128)}', space=vmem, size = 0x12000, scoped, tag = 'internal scratch']
  %s0 = inlined_call_operand.vmem [shape: bf16[32,288], index: 0, kind: input, shape index: {}]
  %s1 = inlined_call_operand.vmem [shape: bf16[288,960], index: 1, kind: input, shape index: {}]
  %s2 = inlined_call_operand.vmem [shape: f32[1,960], index: 2, kind: input, shape index: {}]
  %s3 = inlined_call_operand.vmem [shape: bf16[32,960], index: 3, kind: output, shape index: {}]
  %s4 = sld [smem:[#allocation0]]
  $region22: #{_lambda_.2} parent=0
    _
  %s6 = ssub.s32 1, %s4
  %s7 = scalar_select 0, %s6, %s4
  // Predicated region
  $region2: #{_lambda_.2} parent=0 // pred_check
    _
  $region3: #{_lambda_.2} parent=0 // pred_check_branch
    %9 = sbr.rel (0) target = $region5
  $region4: #{_lambda_.2} parent=0 // pred_region
    _
  $region5: #{_lambda_.2} parent=0 // pred_fallthru
    _
  // Predicated region
  $region6: #{_lambda_.2} parent=0 // pred_check
    _
  $region7: #{_lambda_.2} parent=0 // pred_check_branch
    %11 = sbr.rel (0) target = $region9
  $region8: #{_lambda_.2} parent=0 // pred_region
    _
  $region9: #{_lambda_.2} parent=0 // pred_fallthru
    _
  // Predicated region
  $region10: #{_lambda_.2} parent=0 // pred_check
    _
  $region11: #{_lambda_.2} parent=0 // pred_check_branch
    %13 = sbr.rel (0) target = $region13
  $region12: #{_lambda_.2} parent=0 // pred_region
    _
  $region13: #{_lambda_.2} parent=0 // pred_fallthru
    _
  %v15 = vld [vmem:[%s0] sm:$0xff]
  %v16 = vld [vmem:[%s0 + $0x8] sm:$0xf]
  %v17 = vld [vmem:[%s0 + $0xc] sm:$0xff]
  %v18 = vld [vmem:[%s0 + $0x14] sm:$0xf]
  %v19 = vld [vmem:[%s0 + $0x18] sm:$0xff]
  %v20 = vld [vmem:[%s0 + $0x20] sm:$0xf]
  %v21 = vld [vmem:[%s0 + $0x24] sm:$0xff]
  %v22 = vld [vmem:[%s0 + $0x2c] sm:$0xf]
  %v23 = vld [vmem:[%s1] sm:$0xff]
  %v24 = vld [vmem:[%s1 + $0x8] sm:$0xff]
  %v25 = vld [vmem:[%s1 + $0x10] sm:$0xff]
  %v26 = vld [vmem:[%s1 + $0x18] sm:$0xff]
  %v27 = vld [vmem:[%s1 + $0x20] sm:$0xff]
  %v28 = vld [vmem:[%s1 + $0x28] sm:$0xff]
  %v29 = vld [vmem:[%s1 + $0x30] sm:$0xff]
  %v30 = vld [vmem:[%s1 + $0x38] sm:$0xff]
  %v31 = vld [vmem:[%s1 + $0x40] sm:$0xff]
  %v32 = vld [vmem:[%s1 + $0x48] sm:$0xff]
  %v33 = vld [vmem:[%s1 + $0x50] sm:$0xff]
  %v34 = vld [vmem:[%s1 + $0x58] sm:$0xff]
  %v35 = vld [vmem:[%s1 + $0x60] sm:$0xff]
  %v36 = vld [vmem:[%s1 + $0x68] sm:$0xff]
  %v37 = vld [vmem:[%s1 + $0x70] sm:$0xff]
  %v38 = vld [vmem:[%s1 + $0x78] sm:$0xff]
  %v39 = vld [vmem:[%s1 + $0x80] sm:$0xff]
  %v40 = vld [vmem:[%s1 + $0x88] sm:$0xff]
  %v41 = vld [vmem:[%s1 + $0x90] sm:$0xff]
  %v42 = vld [vmem:[%s1 + $0x98] sm:$0xff]
  %v43 = vld [vmem:[%s1 + $0xa0] sm:$0xff]
  %v44 = vld [vmem:[%s1 + $0xa8] sm:$0xff]
  %v45 = vld [vmem:[%s1 + $0xb0] sm:$0xff]
  %v46 = vld [vmem:[%s1 + $0xb8] sm:$0xff]
  %v47 = vld [vmem:[%s1 + $0xc0] sm:$0xff]
  %v48 = vld [vmem:[%s1 + $0xc8] sm:$0xff]
  %v49 = vld [vmem:[%s1 + $0xd0] sm:$0xff]
  %v50 = vld [vmem:[%s1 + $0xd8] sm:$0xff]
  %v51 = vld [vmem:[%s1 + $0xe0] sm:$0xff]
  %v52 = vld [vmem:[%s1 + $0xe8] sm:$0xff]
  %v53 = vld [vmem:[%s1 + $0xf0] sm:$0xff]
  %v54 = vld [vmem:[%s1 + $0xf8] sm:$0xff]
  %v55 = vld [vmem:[%s1 + $0x100] sm:$0xff]
  %v56 = vld [vmem:[%s1 + $0x108] sm:$0xff]
  %v57 = vld [vmem:[%s1 + $0x110] sm:$0xff]
  %v58 = vld [vmem:[%s1 + $0x118] sm:$0xff]
  %v59 = vld [vmem:[%s1 + $0x120] sm:$0xff]
  %v60 = vld [vmem:[%s1 + $0x128] sm:$0xff]
  %v61 = vld [vmem:[%s1 + $0x130] sm:$0xff]
  %v62 = vld [vmem:[%s1 + $0x138] sm:$0xff]
  %v63 = vld [vmem:[%s1 + $0x140] sm:$0xff]
  %v64 = vld [vmem:[%s1 + $0x148] sm:$0xff]
  %v65 = vld [vmem:[%s1 + $0x150] sm:$0xff]
  %v66 = vld [vmem:[%s1 + $0x158] sm:$0xff]
  %v67 = vld [vmem:[%s1 + $0x160] sm:$0xff]
  %v68 = vld [vmem:[%s1 + $0x168] sm:$0xff]
  %v69 = vld [vmem:[%s1 + $0x170] sm:$0xff]
  %v70 = vld [vmem:[%s1 + $0x178] sm:$0xff]
  %v71 = vld [vmem:[%s1 + $0x180] sm:$0xff]
  %v72 = vld [vmem:[%s1 + $0x188] sm:$0xff]
  %v73 = vld [vmem:[%s1 + $0x190] sm:$0xff]
  %v74 = vld [vmem:[%s1 + $0x198] sm:$0xff]
  %v75 = vld [vmem:[%s1 + $0x1a0] sm:$0xff]
  %v76 = vld [vmem:[%s1 + $0x1a8] sm:$0xff]
  %v77 = vld [vmem:[%s1 + $0x1b0] sm:$0xff]
  %v78 = vld [vmem:[%s1 + $0x1b8] sm:$0xff]
  %v79 = vld [vmem:[%s1 + $0x1c0] sm:$0xff]
  %v80 = vld [vmem:[%s1 + $0x1c8] sm:$0xff]
  %v81 = vld [vmem:[%s1 + $0x1d0] sm:$0xff]
  %v82 = vld [vmem:[%s1 + $0x1d8] sm:$0xff]
  %v83 = vld [vmem:[%s1 + $0x1e0] sm:$0xff]
  %v84 = vld [vmem:[%s1 + $0x1e8] sm:$0xff]
  %v85 = vld [vmem:[%s1 + $0x1f0] sm:$0xff]
  %v86 = vld [vmem:[%s1 + $0x1f8] sm:$0xff]
  %v87 = vld [vmem:[%s1 + $0x200] sm:$0xff]
  %v88 = vld [vmem:[%s1 + $0x208] sm:$0xff]
  %v89 = vld [vmem:[%s1 + $0x210] sm:$0xff]
  %v90 = vld [vmem:[%s1 + $0x218] sm:$0xff]
  %v91 = vld [vmem:[%s1 + $0x220] sm:$0xff]
  %v92 = vld [vmem:[%s1 + $0x228] sm:$0xff]
  %v93 = vld [vmem:[%s1 + $0x230] sm:$0xff]
  %v94 = vld [vmem:[%s1 + $0x238] sm:$0xff]
  %v95 = vld [vmem:[%s1 + $0x240] sm:$0xff]
  %v96 = vld [vmem:[%s1 + $0x248] sm:$0xff]
  %v97 = vld [vmem:[%s1 + $0x250] sm:$0xff]
  %v98 = vld [vmem:[%s1 + $0x258] sm:$0xff]
  %v99 = vld [vmem:[%s1 + $0x260] sm:$0xff]
  %v100 = vld [vmem:[%s1 + $0x268] sm:$0xff]
  %v101 = vld [vmem:[%s1 + $0x270] sm:$0xff]
  %v102 = vld [vmem:[%s1 + $0x278] sm:$0xff]
  %v103 = vld [vmem:[%s1 + $0x280] sm:$0xff]
  %v104 = vld [vmem:[%s1 + $0x288] sm:$0xff]
  %v105 = vld [vmem:[%s1 + $0x290] sm:$0xff]
  %v106 = vld [vmem:[%s1 + $0x298] sm:$0xff]
  %v107 = vld [vmem:[%s1 + $0x2a0] sm:$0xff]
  %v108 = vld [vmem:[%s1 + $0x2a8] sm:$0xff]
  %v109 = vld [vmem:[%s1 + $0x2b0] sm:$0xff]
  %v110 = vld [vmem:[%s1 + $0x2b8] sm:$0xff]
  %v111 = vld [vmem:[%s1 + $0x2c0] sm:$0xff]
  %v112 = vld [vmem:[%s1 + $0x2c8] sm:$0xff]
  %v113 = vld [vmem:[%s1 + $0x2d0] sm:$0xff]
  %v114 = vld [vmem:[%s1 + $0x2d8] sm:$0xff]
  %v115 = vld [vmem:[%s1 + $0x2e0] sm:$0xff]
  %v116 = vld [vmem:[%s1 + $0x2e8] sm:$0xff]
  %v117 = vld [vmem:[%s1 + $0x2f0] sm:$0xff]
  %v118 = vld [vmem:[%s1 + $0x2f8] sm:$0xff]
  %v119 = vld [vmem:[%s1 + $0x300] sm:$0xff]
  %v120 = vld [vmem:[%s1 + $0x308] sm:$0xff]
  %v121 = vld [vmem:[%s1 + $0x310] sm:$0xff]
  %v122 = vld [vmem:[%s1 + $0x318] sm:$0xff]
  %v123 = vld [vmem:[%s1 + $0x320] sm:$0xff]
  %v124 = vld [vmem:[%s1 + $0x328] sm:$0xff]
  %v125 = vld [vmem:[%s1 + $0x330] sm:$0xff]
  %v126 = vld [vmem:[%s1 + $0x338] sm:$0xff]
  %v127 = vld [vmem:[%s1 + $0x340] sm:$0xff]
  %v128 = vld [vmem:[%s1 + $0x348] sm:$0xff]
  %v129 = vld [vmem:[%s1 + $0x350] sm:$0xff]
  %v130 = vld [vmem:[%s1 + $0x358] sm:$0xff]
  %v131 = vld [vmem:[%s1 + $0x360] sm:$0xff]
  %v132 = vld [vmem:[%s1 + $0x368] sm:$0xff]
  %v133 = vld [vmem:[%s1 + $0x370] sm:$0xff]
  %v134 = vld [vmem:[%s1 + $0x378] sm:$0xff]
  %v135 = vld [vmem:[%s1 + $0x380] sm:$0xff]
  %v136 = vld [vmem:[%s1 + $0x388] sm:$0xff]
  %v137 = vld [vmem:[%s1 + $0x390] sm:$0xff]
  %v138 = vld [vmem:[%s1 + $0x398] sm:$0xff]
  %v139 = vld [vmem:[%s1 + $0x3a0] sm:$0xff]
  %v140 = vld [vmem:[%s1 + $0x3a8] sm:$0xff]
  %v141 = vld [vmem:[%s1 + $0x3b0] sm:$0xff]
  %v142 = vld [vmem:[%s1 + $0x3b8] sm:$0xff]
  %v143 = vld [vmem:[%s1 + $0x3c0] sm:$0xff]
  %v144 = vld [vmem:[%s1 + $0x3c8] sm:$0xff]
  %v145 = vld [vmem:[%s1 + $0x3d0] sm:$0xff]
  %v146 = vld [vmem:[%s1 + $0x3d8] sm:$0xff]
  %v147 = vld [vmem:[%s1 + $0x3e0] sm:$0xff]
  %v148 = vld [vmem:[%s1 + $0x3e8] sm:$0xff]
  %v149 = vld [vmem:[%s1 + $0x3f0] sm:$0xff]
  %v150 = vld [vmem:[%s1 + $0x3f8] sm:$0xff]
  %v151 = vld [vmem:[%s1 + $0x400] sm:$0xff]
  %v152 = vld [vmem:[%s1 + $0x408] sm:$0xff]
  %v153 = vld [vmem:[%s1 + $0x410] sm:$0xff]
  %v154 = vld [vmem:[%s1 + $0x418] sm:$0xff]
  %v155 = vld [vmem:[%s1 + $0x420] sm:$0xff]
  %v156 = vld [vmem:[%s1 + $0x428] sm:$0xff]
  %v157 = vld [vmem:[%s1 + $0x430] sm:$0xff]
  %v158 = vld [vmem:[%s1 + $0x438] sm:$0xff]
  %v159 = vld [vmem:[%s1 + $0x440] sm:$0xff]
  %v160 = vld [vmem:[%s1 + $0x448] sm:$0xff]
  %v161 = vld [vmem:[%s1 + $0x450] sm:$0xff]
  %v162 = vld [vmem:[%s1 + $0x458] sm:$0xff]
  %v163 = vld [vmem:[%s1 + $0x460] sm:$0xff]
  %v164 = vld [vmem:[%s1 + $0x468] sm:$0xff]
  %v165 = vld [vmem:[%s1 + $0x470] sm:$0xff]
  %v166 = vld [vmem:[%s1 + $0x478] sm:$0xff]
  %v167 = vld [vmem:[%s2] sm:$0xff]
  %v169 = vlaneseq
  %v170 = vshrl.u32 %v169, 7
  %v171 = vsub.s32 0, %v170
  %v172 = vrot.slane %v167, %v171
  %v173 = vlaneseq
  %v174 = vshrl.u32 %v173, 7
  %v175 = vsub.s32 1, %v174
  %v176 = vrot.slane %v167, %v175
  %v177 = vlaneseq
  %v178 = vshrl.u32 %v177, 7
  %v179 = vsub.s32 2, %v178
  %v180 = vrot.slane %v167, %v179
  %v181 = vlaneseq
  %v182 = vshrl.u32 %v181, 7
  %v183 = vsub.s32 3, %v182
  %v184 = vrot.slane %v167, %v183
  %v185 = vlaneseq
  %v186 = vshrl.u32 %v185, 7
  %v187 = vsub.s32 4, %v186
  %v188 = vrot.slane %v167, %v187
  %v189 = vlaneseq
  %v190 = vshrl.u32 %v189, 7
  %v191 = vsub.s32 5, %v190
  %v192 = vrot.slane %v167, %v191
  %v193 = vlaneseq
  %v194 = vshrl.u32 %v193, 7
  %v195 = vsub.s32 6, %v194
  %v196 = vrot.slane %v167, %v195
  %v197 = vlaneseq
  %v198 = vshrl.u32 %v197, 7
  %v199 = vsub.s32 7, %v198
  %v200 = vrot.slane %v167, %v199
  %v217 = vunpack.c.l.b16 %v15
  %v218 = vunpack.c.h.b16 %v15
  %v219 = vunpack.c.l.b16 %v16
  %v220 = vunpack.c.l.b16 %v17
  %v221 = vunpack.c.h.b16 %v17
  %v222 = vunpack.c.l.b16 %v18
  %v223 = vunpack.c.l.b16 %v19
  %v224 = vunpack.c.h.b16 %v19
  %v225 = vunpack.c.l.b16 %v20
  %v226 = vunpack.c.l.b16 %v21
  %v227 = vunpack.c.h.b16 %v21
  %v228 = vunpack.c.l.b16 %v22
  %v229 = vpack.c.b16 %v220, %v217
  %v230 = vpack.c.b16 %v221, %v218
  %v231 = vpack.c.b16 %v222, %v219
  %v232 = vpack.c.b16 %v226, %v223
  %v233 = vpack.c.b16 %v227, %v224
  %v234 = vpack.c.b16 %v228, %v225
  %v383 = vunpack.c.l.b16 %v23
  %v384 = vunpack.c.h.b16 %v23
  %v385 = vunpack.c.l.b16 %v24
  %v386 = vunpack.c.h.b16 %v24
  %v387 = vunpack.c.l.b16 %v25
  %v388 = vunpack.c.h.b16 %v25
  %v389 = vunpack.c.l.b16 %v26
  %v390 = vunpack.c.h.b16 %v26
  %v391 = vunpack.c.l.b16 %v27
  %v392 = vunpack.c.h.b16 %v27
  %v393 = vunpack.c.l.b16 %v28
  %v394 = vunpack.c.h.b16 %v28
  %v395 = vunpack.c.l.b16 %v29
  %v396 = vunpack.c.h.b16 %v29
  %v397 = vunpack.c.l.b16 %v30
  %v398 = vunpack.c.h.b16 %v30
  %v399 = vunpack.c.l.b16 %v31
  %v400 = vunpack.c.h.b16 %v31
  %v401 = vunpack.c.l.b16 %v32
  %v402 = vunpack.c.h.b16 %v32
  %v403 = vunpack.c.l.b16 %v33
  %v404 = vunpack.c.h.b16 %v33
  %v405 = vunpack.c.l.b16 %v34
  %v406 = vunpack.c.h.b16 %v34
  %v407 = vunpack.c.l.b16 %v35
  %v408 = vunpack.c.h.b16 %v35
  %v409 = vunpack.c.l.b16 %v36
  %v410 = vunpack.c.h.b16 %v36
  %v411 = vunpack.c.l.b16 %v37
  %v412 = vunpack.c.h.b16 %v37
  %v413 = vunpack.c.l.b16 %v38
  %v414 = vunpack.c.h.b16 %v38
  %v415 = vunpack.c.l.b16 %v39
  %v416 = vunpack.c.h.b16 %v39
  %v417 = vunpack.c.l.b16 %v40
  %v418 = vunpack.c.h.b16 %v40
  %v419 = vunpack.c.l.b16 %v41
  %v420 = vunpack.c.h.b16 %v41
  %v421 = vunpack.c.l.b16 %v42
  %v422 = vunpack.c.h.b16 %v42
  %v423 = vunpack.c.l.b16 %v43
  %v424 = vunpack.c.h.b16 %v43
  %v425 = vunpack.c.l.b16 %v44
  %v426 = vunpack.c.h.b16 %v44
  %v427 = vunpack.c.l.b16 %v45
  %v428 = vunpack.c.h.b16 %v45
  %v429 = vunpack.c.l.b16 %v46
  %v430 = vunpack.c.h.b16 %v46
  %v431 = vunpack.c.l.b16 %v47
  %v432 = vunpack.c.h.b16 %v47
  %v433 = vunpack.c.l.b16 %v48
  %v434 = vunpack.c.h.b16 %v48
  %v435 = vunpack.c.l.b16 %v49
  %v436 = vunpack.c.h.b16 %v49
  %v437 = vunpack.c.l.b16 %v50
  %v438 = vunpack.c.h.b16 %v50
  %v439 = vunpack.c.l.b16 %v51
  %v440 = vunpack.c.h.b16 %v51
  %v441 = vunpack.c.l.b16 %v52
  %v442 = vunpack.c.h.b16 %v52
  %v443 = vunpack.c.l.b16 %v53
  %v444 = vunpack.c.h.b16 %v53
  %v445 = vunpack.c.l.b16 %v54
  %v446 = vunpack.c.h.b16 %v54
  %v447 = vunpack.c.l.b16 %v55
  %v448 = vunpack.c.h.b16 %v55
  %v449 = vunpack.c.l.b16 %v56
  %v450 = vunpack.c.h.b16 %v56
  %v451 = vunpack.c.l.b16 %v57
  %v452 = vunpack.c.h.b16 %v57
  %v453 = vunpack.c.l.b16 %v58
  %v454 = vunpack.c.h.b16 %v58
  %v455 = vunpack.c.l.b16 %v59
  %v456 = vunpack.c.h.b16 %v59
  %v457 = vunpack.c.l.b16 %v60
  %v458 = vunpack.c.h.b16 %v60
  %v459 = vunpack.c.l.b16 %v61
  %v460 = vunpack.c.h.b16 %v61
  %v461 = vunpack.c.l.b16 %v62
  %v462 = vunpack.c.h.b16 %v62
  %v463 = vunpack.c.l.b16 %v63
  %v464 = vunpack.c.h.b16 %v63
  %v465 = vunpack.c.l.b16 %v64
  %v466 = vunpack.c.h.b16 %v64
  %v467 = vunpack.c.l.b16 %v65
  %v468 = vunpack.c.h.b16 %v65
  %v469 = vunpack.c.l.b16 %v66
  %v470 = vunpack.c.h.b16 %v66
  %v471 = vunpack.c.l.b16 %v67
  %v472 = vunpack.c.h.b16 %v67
  %v473 = vunpack.c.l.b16 %v68
  %v474 = vunpack.c.h.b16 %v68
  %v475 = vunpack.c.l.b16 %v69
  %v476 = vunpack.c.h.b16 %v69
  %v477 = vunpack.c.l.b16 %v70
  %v478 = vunpack.c.h.b16 %v70
  %v479 = vunpack.c.l.b16 %v71
  %v480 = vunpack.c.h.b16 %v71
  %v481 = vunpack.c.l.b16 %v72
  %v482 = vunpack.c.h.b16 %v72
  %v483 = vunpack.c.l.b16 %v73
  %v484 = vunpack.c.h.b16 %v73
  %v485 = vunpack.c.l.b16 %v74
  %v486 = vunpack.c.h.b16 %v74
  %v487 = vunpack.c.l.b16 %v75
  %v488 = vunpack.c.h.b16 %v75
  %v489 = vunpack.c.l.b16 %v76
  %v490 = vunpack.c.h.b16 %v76
  %v491 = vunpack.c.l.b16 %v77
  %v492 = vunpack.c.h.b16 %v77
  %v493 = vunpack.c.l.b16 %v78
  %v494 = vunpack.c.h.b16 %v78
  %v495 = vunpack.c.l.b16 %v79
  %v496 = vunpack.c.h.b16 %v79
  %v497 = vunpack.c.l.b16 %v80
  %v498 = vunpack.c.h.b16 %v80
  %v499 = vunpack.c.l.b16 %v81
  %v500 = vunpack.c.h.b16 %v81
  %v501 = vunpack.c.l.b16 %v82
  %v502 = vunpack.c.h.b16 %v82
  %v503 = vunpack.c.l.b16 %v83
  %v504 = vunpack.c.h.b16 %v83
  %v505 = vunpack.c.l.b16 %v84
  %v506 = vunpack.c.h.b16 %v84
  %v507 = vunpack.c.l.b16 %v85
  %v508 = vunpack.c.h.b16 %v85
  %v509 = vunpack.c.l.b16 %v86
  %v510 = vunpack.c.h.b16 %v86
  %v511 = vunpack.c.l.b16 %v87
  %v512 = vunpack.c.h.b16 %v87
  %v513 = vunpack.c.l.b16 %v88
  %v514 = vunpack.c.h.b16 %v88
  %v515 = vunpack.c.l.b16 %v89
  %v516 = vunpack.c.h.b16 %v89
  %v517 = vunpack.c.l.b16 %v90
  %v518 = vunpack.c.h.b16 %v90
  %v519 = vunpack.c.l.b16 %v91
  %v520 = vunpack.c.h.b16 %v91
  %v521 = vunpack.c.l.b16 %v92
  %v522 = vunpack.c.h.b16 %v92
  %v523 = vunpack.c.l.b16 %v93
  %v524 = vunpack.c.h.b16 %v93
  %v525 = vunpack.c.l.b16 %v94
  %v526 = vunpack.c.h.b16 %v94
  %v527 = vunpack.c.l.b16 %v95
  %v528 = vunpack.c.h.b16 %v95
  %v529 = vunpack.c.l.b16 %v96
  %v530 = vunpack.c.h.b16 %v96
  %v531 = vunpack.c.l.b16 %v97
  %v532 = vunpack.c.h.b16 %v97
  %v533 = vunpack.c.l.b16 %v98
  %v534 = vunpack.c.h.b16 %v98
  %v535 = vunpack.c.l.b16 %v99
  %v536 = vunpack.c.h.b16 %v99
  %v537 = vunpack.c.l.b16 %v100
  %v538 = vunpack.c.h.b16 %v100
  %v539 = vunpack.c.l.b16 %v101
  %v540 = vunpack.c.h.b16 %v101
  %v541 = vunpack.c.l.b16 %v102
  %v542 = vunpack.c.h.b16 %v102
  %v543 = vunpack.c.l.b16 %v103
  %v544 = vunpack.c.h.b16 %v103
  %v545 = vunpack.c.l.b16 %v104
  %v546 = vunpack.c.h.b16 %v104
  %v547 = vunpack.c.l.b16 %v105
  %v548 = vunpack.c.h.b16 %v105
  %v549 = vunpack.c.l.b16 %v106
  %v550 = vunpack.c.h.b16 %v106
  %v551 = vunpack.c.l.b16 %v107
  %v552 = vunpack.c.h.b16 %v107
  %v553 = vunpack.c.l.b16 %v108
  %v554 = vunpack.c.h.b16 %v108
  %v555 = vunpack.c.l.b16 %v109
  %v556 = vunpack.c.h.b16 %v109
  %v557 = vunpack.c.l.b16 %v110
  %v558 = vunpack.c.h.b16 %v110
  %v559 = vunpack.c.l.b16 %v111
  %v560 = vunpack.c.h.b16 %v111
  %v561 = vunpack.c.l.b16 %v112
  %v562 = vunpack.c.h.b16 %v112
  %v563 = vunpack.c.l.b16 %v113
  %v564 = vunpack.c.h.b16 %v113
  %v565 = vunpack.c.l.b16 %v114
  %v566 = vunpack.c.h.b16 %v114
  %v567 = vunpack.c.l.b16 %v115
  %v568 = vunpack.c.h.b16 %v115
  %v569 = vunpack.c.l.b16 %v116
  %v570 = vunpack.c.h.b16 %v116
  %v571 = vunpack.c.l.b16 %v117
  %v572 = vunpack.c.h.b16 %v117
  %v573 = vunpack.c.l.b16 %v118
  %v574 = vunpack.c.h.b16 %v118
  %v575 = vunpack.c.l.b16 %v119
  %v576 = vunpack.c.h.b16 %v119
  %v577 = vunpack.c.l.b16 %v120
  %v578 = vunpack.c.h.b16 %v120
  %v579 = vunpack.c.l.b16 %v121
  %v580 = vunpack.c.h.b16 %v121
  %v581 = vunpack.c.l.b16 %v122
  %v582 = vunpack.c.h.b16 %v122
  %v583 = vunpack.c.l.b16 %v123
  %v584 = vunpack.c.h.b16 %v123
  %v585 = vunpack.c.l.b16 %v124
  %v586 = vunpack.c.h.b16 %v124
  %v587 = vunpack.c.l.b16 %v125
  %v588 = vunpack.c.h.b16 %v125
  %v589 = vunpack.c.l.b16 %v126
  %v590 = vunpack.c.h.b16 %v126
  %v591 = vunpack.c.l.b16 %v127
  %v592 = vunpack.c.h.b16 %v127
  %v593 = vunpack.c.l.b16 %v128
  %v594 = vunpack.c.h.b16 %v128
  %v595 = vunpack.c.l.b16 %v129
  %v596 = vunpack.c.h.b16 %v129
  %v597 = vunpack.c.l.b16 %v130
  %v598 = vunpack.c.h.b16 %v130
  %v599 = vunpack.c.l.b16 %v131
  %v600 = vunpack.c.h.b16 %v131
  %v601 = vunpack.c.l.b16 %v132
  %v602 = vunpack.c.h.b16 %v132
  %v603 = vunpack.c.l.b16 %v133
  %v604 = vunpack.c.h.b16 %v133
  %v605 = vunpack.c.l.b16 %v134
  %v606 = vunpack.c.h.b16 %v134
  %v607 = vunpack.c.l.b16 %v135
  %v608 = vunpack.c.h.b16 %v135
  %v609 = vunpack.c.l.b16 %v136
  %v610 = vunpack.c.h.b16 %v136
  %v611 = vunpack.c.l.b16 %v137
  %v612 = vunpack.c.h.b16 %v137
  %v613 = vunpack.c.l.b16 %v138
  %v614 = vunpack.c.h.b16 %v138
  %v615 = vunpack.c.l.b16 %v139
  %v616 = vunpack.c.h.b16 %v139
  %v617 = vunpack.c.l.b16 %v140
  %v618 = vunpack.c.h.b16 %v140
  %v619 = vunpack.c.l.b16 %v141
  %v620 = vunpack.c.h.b16 %v141
  %v621 = vunpack.c.l.b16 %v142
  %v622 = vunpack.c.h.b16 %v142
  %v623 = vunpack.c.l.b16 %v143
  %v624 = vunpack.c.h.b16 %v143
  %v625 = vunpack.c.l.b16 %v144
  %v626 = vunpack.c.h.b16 %v144
  %v627 = vunpack.c.l.b16 %v145
  %v628 = vunpack.c.h.b16 %v145
  %v629 = vunpack.c.l.b16 %v146
  %v630 = vunpack.c.h.b16 %v146
  %v631 = vunpack.c.l.b16 %v147
  %v632 = vunpack.c.h.b16 %v147
  %v633 = vunpack.c.l.b16 %v148
  %v634 = vunpack.c.h.b16 %v148
  %v635 = vunpack.c.l.b16 %v149
  %v636 = vunpack.c.h.b16 %v149
  %v637 = vunpack.c.l.b16 %v150
  %v638 = vunpack.c.h.b16 %v150
  %v639 = vunpack.c.l.b16 %v151
  %v640 = vunpack.c.h.b16 %v151
  %v641 = vunpack.c.l.b16 %v152
  %v642 = vunpack.c.h.b16 %v152
  %v643 = vunpack.c.l.b16 %v153
  %v644 = vunpack.c.h.b16 %v153
  %v645 = vunpack.c.l.b16 %v154
  %v646 = vunpack.c.h.b16 %v154
  %v647 = vunpack.c.l.b16 %v155
  %v648 = vunpack.c.h.b16 %v155
  %v649 = vunpack.c.l.b16 %v156
  %v650 = vunpack.c.h.b16 %v156
  %v651 = vunpack.c.l.b16 %v157
  %v652 = vunpack.c.h.b16 %v157
  %v653 = vunpack.c.l.b16 %v158
  %v654 = vunpack.c.h.b16 %v158
  %v655 = vunpack.c.l.b16 %v159
  %v656 = vunpack.c.h.b16 %v159
  %v657 = vunpack.c.l.b16 %v160
  %v658 = vunpack.c.h.b16 %v160
  %v659 = vunpack.c.l.b16 %v161
  %v660 = vunpack.c.h.b16 %v161
  %v661 = vunpack.c.l.b16 %v162
  %v662 = vunpack.c.h.b16 %v162
  %v663 = vunpack.c.l.b16 %v163
  %v664 = vunpack.c.h.b16 %v163
  %v665 = vunpack.c.l.b16 %v164
  %v666 = vunpack.c.h.b16 %v164
  %v667 = vunpack.c.l.b16 %v165
  %v668 = vunpack.c.h.b16 %v165
  %v669 = vunpack.c.l.b16 %v166
  %v670 = vunpack.c.h.b16 %v166
  %v671 = vpack.c.b16 %v391, %v383
  %v672 = vpack.c.b16 %v392, %v384
  %v673 = vpack.c.b16 %v393, %v385
  %v674 = vpack.c.b16 %v394, %v386
  %v675 = vpack.c.b16 %v395, %v387
  %v676 = vpack.c.b16 %v396, %v388
  %v677 = vpack.c.b16 %v397, %v389
  %v678 = vpack.c.b16 %v398, %v390
  %v679 = vpack.c.b16 %v407, %v399
  %v680 = vpack.c.b16 %v408, %v400
  %v681 = vpack.c.b16 %v409, %v401
  %v682 = vpack.c.b16 %v410, %v402
  %v683 = vpack.c.b16 %v411, %v403
  %v684 = vpack.c.b16 %v412, %v404
  %v685 = vpack.c.b16 %v413, %v405
  %v686 = vpack.c.b16 %v414, %v406
  %v687 = vpack.c.b16 %v423, %v415
  %v688 = vpack.c.b16 %v424, %v416
  %v689 = vpack.c.b16 %v425, %v417
  %v690 = vpack.c.b16 %v426, %v418
  %v691 = vpack.c.b16 %v427, %v419
  %v692 = vpack.c.b16 %v428, %v420
  %v693 = vpack.c.b16 %v429, %v421
  %v694 = vpack.c.b16 %v430, %v422
  %v695 = vpack.c.b16 %v439, %v431
  %v696 = vpack.c.b16 %v440, %v432
  %v697 = vpack.c.b16 %v441, %v433
  %v698 = vpack.c.b16 %v442, %v434
  %v699 = vpack.c.b16 %v443, %v435
  %v700 = vpack.c.b16 %v444, %v436
  %v701 = vpack.c.b16 %v445, %v437
  %v702 = vpack.c.b16 %v446, %v438
  %v703 = vpack.c.b16 %v455, %v447
  %v704 = vpack.c.b16 %v456, %v448
  %v705 = vpack.c.b16 %v457, %v449
  %v706 = vpack.c.b16 %v458, %v450
  %v707 = vpack.c.b16 %v459, %v451
  %v708 = vpack.c.b16 %v460, %v452
  %v709 = vpack.c.b16 %v461, %v453
  %v710 = vpack.c.b16 %v462, %v454
  %v711 = vpack.c.b16 %v471, %v463
  %v712 = vpack.c.b16 %v472, %v464
  %v713 = vpack.c.b16 %v473, %v465
  %v714 = vpack.c.b16 %v474, %v466
  %v715 = vpack.c.b16 %v475, %v467
  %v716 = vpack.c.b16 %v476, %v468
  %v717 = vpack.c.b16 %v477, %v469
  %v718 = vpack.c.b16 %v478, %v470
  %v719 = vpack.c.b16 %v487, %v479
  %v720 = vpack.c.b16 %v488, %v480
  %v721 = vpack.c.b16 %v489, %v481
  %v722 = vpack.c.b16 %v490, %v482
  %v723 = vpack.c.b16 %v491, %v483
  %v724 = vpack.c.b16 %v492, %v484
  %v725 = vpack.c.b16 %v493, %v485
  %v726 = vpack.c.b16 %v494, %v486
  %v727 = vpack.c.b16 %v503, %v495
  %v728 = vpack.c.b16 %v504, %v496
  %v729 = vpack.c.b16 %v505, %v497
  %v730 = vpack.c.b16 %v506, %v498
  %v731 = vpack.c.b16 %v507, %v499
  %v732 = vpack.c.b16 %v508, %v500
  %v733 = vpack.c.b16 %v509, %v501
  %v734 = vpack.c.b16 %v510, %v502
  %v735 = vpack.c.b16 %v519, %v511
  %v736 = vpack.c.b16 %v520, %v512
  %v737 = vpack.c.b16 %v521, %v513
  %v738 = vpack.c.b16 %v522, %v514
  %v739 = vpack.c.b16 %v523, %v515
  %v740 = vpack.c.b16 %v524, %v516
  %v741 = vpack.c.b16 %v525, %v517
  %v742 = vpack.c.b16 %v526, %v518
  %v743 = vpack.c.b16 %v535, %v527
  %v744 = vpack.c.b16 %v536, %v528
  %v745 = vpack.c.b16 %v537, %v529
  %v746 = vpack.c.b16 %v538, %v530
  %v747 = vpack.c.b16 %v539, %v531
  %v748 = vpack.c.b16 %v540, %v532
  %v749 = vpack.c.b16 %v541, %v533
  %v750 = vpack.c.b16 %v542, %v534
  %v751 = vpack.c.b16 %v551, %v543
  %v752 = vpack.c.b16 %v552, %v544
  %v753 = vpack.c.b16 %v553, %v545
  %v754 = vpack.c.b16 %v554, %v546
  %v755 = vpack.c.b16 %v555, %v547
  %v756 = vpack.c.b16 %v556, %v548
  %v757 = vpack.c.b16 %v557, %v549
  %v758 = vpack.c.b16 %v558, %v550
  %v759 = vpack.c.b16 %v567, %v559
  %v760 = vpack.c.b16 %v568, %v560
  %v761 = vpack.c.b16 %v569, %v561
  %v762 = vpack.c.b16 %v570, %v562
  %v763 = vpack.c.b16 %v571, %v563
  %v764 = vpack.c.b16 %v572, %v564
  %v765 = vpack.c.b16 %v573, %v565
  %v766 = vpack.c.b16 %v574, %v566
  %v767 = vpack.c.b16 %v583, %v575
  %v768 = vpack.c.b16 %v584, %v576
  %v769 = vpack.c.b16 %v585, %v577
  %v770 = vpack.c.b16 %v586, %v578
  %v771 = vpack.c.b16 %v587, %v579
  %v772 = vpack.c.b16 %v588, %v580
  %v773 = vpack.c.b16 %v589, %v581
  %v774 = vpack.c.b16 %v590, %v582
  %v775 = vpack.c.b16 %v599, %v591
  %v776 = vpack.c.b16 %v600, %v592
  %v777 = vpack.c.b16 %v601, %v593
  %v778 = vpack.c.b16 %v602, %v594
  %v779 = vpack.c.b16 %v603, %v595
  %v780 = vpack.c.b16 %v604, %v596
  %v781 = vpack.c.b16 %v605, %v597
  %v782 = vpack.c.b16 %v606, %v598
  %v783 = vpack.c.b16 %v615, %v607
  %v784 = vpack.c.b16 %v616, %v608
  %v785 = vpack.c.b16 %v617, %v609
  %v786 = vpack.c.b16 %v618, %v610
  %v787 = vpack.c.b16 %v619, %v611
  %v788 = vpack.c.b16 %v620, %v612
  %v789 = vpack.c.b16 %v621, %v613
  %v790 = vpack.c.b16 %v622, %v614
  %v791 = vpack.c.b16 %v631, %v623
  %v792 = vpack.c.b16 %v632, %v624
  %v793 = vpack.c.b16 %v633, %v625
  %v794 = vpack.c.b16 %v634, %v626
  %v795 = vpack.c.b16 %v635, %v627
  %v796 = vpack.c.b16 %v636, %v628
  %v797 = vpack.c.b16 %v637, %v629
  %v798 = vpack.c.b16 %v638, %v630
  %v799 = vpack.c.b16 %v647, %v639
  %v800 = vpack.c.b16 %v648, %v640
  %v801 = vpack.c.b16 %v649, %v641
  %v802 = vpack.c.b16 %v650, %v642
  %v803 = vpack.c.b16 %v651, %v643
  %v804 = vpack.c.b16 %v652, %v644
  %v805 = vpack.c.b16 %v653, %v645
  %v806 = vpack.c.b16 %v654, %v646
  %v807 = vpack.c.b16 %v663, %v655
  %v808 = vpack.c.b16 %v664, %v656
  %v809 = vpack.c.b16 %v665, %v657
  %v810 = vpack.c.b16 %v666, %v658
  %v811 = vpack.c.b16 %v667, %v659
  %v812 = vpack.c.b16 %v668, %v660
  %v813 = vpack.c.b16 %v669, %v661
  %v814 = vpack.c.b16 %v670, %v662
  %vm959 = vcmask 261120
  %v961 = vsel %vm959, %v231, 0
  %v964 = vsel %vm959, %v234, 0
  %966 = vmatprep.subr.bf16.mxu0 %v672
  %967 = vmatpush1.bf16.msra.mxu0 %v671
  %968 = vmatprep.subr.bf16.mxu0 %v680
  %969 = vmatpush1.bf16.msra.mxu0 %v679
  %970 = vmatprep.subr.bf16.mxu0 %v688
  %971 = vmatpush1.bf16.msra.mxu0 %v687
  %972 = vmatprep.subr.bf16.mxu0 %v696
  %973 = vmatpush1.bf16.msra.mxu0 %v695
  %974 = vmatprep.subr.bf16.mxu0 %v704
  %975 = vmatpush1.bf16.msra.mxu0 %v703
  %976 = vmatprep.subr.bf16.mxu0 %v712
  %977 = vmatpush1.bf16.msra.mxu0 %v711
  %978 = vmatprep.subr.bf16.mxu0 %v720
  %979 = vmatpush1.bf16.msra.mxu0 %v719
  %980 = vmatprep.subr.bf16.mxu0 %v728
  %981 = vmatpush1.bf16.msra.mxu0 %v727
  %982 = vmatprep.subr.bf16.mxu0 %v736
  %983 = vmatpush1.bf16.msra.mxu0 %v735
  %984 = vmatprep.subr.bf16.mxu0 %v744
  %985 = vmatpush1.bf16.msra.mxu0 %v743
  %986 = vmatprep.subr.bf16.mxu0 %v752
  %987 = vmatpush1.bf16.msra.mxu0 %v751
  %988 = vmatprep.subr.bf16.mxu0 %v760
  %989 = vmatpush1.bf16.msra.mxu0 %v759
  %990 = vmatprep.subr.bf16.mxu0 %v768
  %991 = vmatpush1.bf16.msra.mxu0 %v767
  %992 = vmatprep.subr.bf16.mxu0 %v776
  %993 = vmatpush1.bf16.msra.mxu0 %v775
  %994 = vmatprep.subr.bf16.mxu0 %v784
  %995 = vmatpush1.bf16.msra.mxu0 %v783
  %996 = vmatprep.subr.bf16.mxu0 %v792
  %997 = vmatpush1.bf16.msra.mxu0 %v791
  %998 = vmatprep.mubr.bf16.mxu0 %v230
  %999 = vmatmul.mubr.bf16.gmra.mrb[0].mxu0 %v229
  %v1000 = vpop.f32.mrb[0].mxu0
  %v1001 = vadd.f32 %v172, %v1000
  %v1002 = vpop.f32.mrb[0].mxu0
  %v1003 = vadd.f32 %v176, %v1002
  %v1004 = vpop.f32.mrb[0].mxu0
  %v1005 = vadd.f32 %v172, %v1004
  %v1006 = vpop.f32.mrb[0].mxu0
  %v1007 = vadd.f32 %v176, %v1006
  %1008 = vmatprep.mubr.bf16.mxu0 %v233
  %1009 = vmatmul.mubr.bf16.gmra.mrb[0].mxu0 %v232
  %v1010 = vpop.f32.mrb[0].mxu0
  %v1011 = vadd.f32 %v172, %v1010
  %v1012 = vpop.f32.mrb[0].mxu0
  %v1013 = vadd.f32 %v176, %v1012
  %v1014 = vpop.f32.mrb[0].mxu0
  %v1015 = vadd.f32 %v172, %v1014
  %v1016 = vpop.f32.mrb[0].mxu0
  %v1017 = vadd.f32 %v176, %v1016
  %1018 = vdwg.mxu0
  %1019 = vmatprep.subr.bf16.mxu0 %v800
  %1020 = vmatpush1.bf16.msra.mxu0 %v799
  %1021 = vmatprep.subr.bf16.mxu0 %v808
  %1022 = vmatpush1.bf16.msra.mxu0 %v807
  %1023 = vmatprep.subr.bf16.mxu0 0
  %1024 = vmatpush1.bf16.msra.mxu0 0
  %1025 = vmatprep.subr.bf16.mxu0 0
  %1026 = vmatpush1.bf16.msra.mxu0 0
  %1027 = vmatprep.subr.bf16.mxu0 0
  %1028 = vmatpush1.bf16.msra.mxu0 0
  %1029 = vmatprep.subr.bf16.mxu0 0
  %1030 = vmatpush1.bf16.msra.mxu0 0
  %1031 = vmatprep.subr.bf16.mxu0 0
  %1032 = vmatpush1.bf16.msra.mxu0 0
  %1033 = vmatprep.subr.bf16.mxu0 0
  %1034 = vmatpush1.bf16.msra.mxu0 0
  %1035 = vmatprep.subr.bf16.mxu0 0
  %1036 = vmatpush1.bf16.msra.mxu0 0
  %1037 = vmatprep.subr.bf16.mxu0 0
  %1038 = vmatpush1.bf16.msra.mxu0 0
  %1039 = vmatprep.subr.bf16.mxu0 0
  %1040 = vmatpush1.bf16.msra.mxu0 0
  %1041 = vmatprep.subr.bf16.mxu0 0
  %1042 = vmatpush1.bf16.msra.mxu0 0
  %1043 = vmatprep.subr.bf16.mxu0 0
  %1044 = vmatpush1.bf16.msra.mxu0 0
  %1045 = vmatprep.subr.bf16.mxu0 0
  %1046 = vmatpush1.bf16.msra.mxu0 0
  %1047 = vmatprep.subr.bf16.mxu0 0
  %1048 = vmatpush1.bf16.msra.mxu0 0
  %1049 = vmatprep.subr.bf16.mxu0 0
  %1050 = vmatpush1.bf16.msra.mxu0 0
  %1051 = vmatprep.mubr.bf16.mxu0 0
  %1052 = vmatmul.mubr.bf16.gmra.mrb[0].mxu0 %v961
  %v1053 = vpop.f32.mrb[0].mxu0
  %v1054 = vadd.f32 %v1001, %v1053
  %v1055 = vpop.f32.mrb[0].mxu0
  %v1056 = vadd.f32 %v1003, %v1055
  %v1057 = vpop.f32.mrb[0].mxu0
  %v1058 = vadd.f32 %v1005, %v1057
  %v1059 = vpop.f32.mrb[0].mxu0
  %v1060 = vadd.f32 %v1007, %v1059
  %1061 = vmatprep.mubr.bf16.mxu0 0
  %1062 = vmatmul.mubr.bf16.gmra.mrb[0].mxu0 %v964
  %v1063 = vpop.f32.mrb[0].mxu0
  %v1064 = vadd.f32 %v1011, %v1063
  %v1065 = vpop.f32.mrb[0].mxu0
  %v1066 = vadd.f32 %v1013, %v1065
  %v1067 = vpop.f32.mrb[0].mxu0
  %v1068 = vadd.f32 %v1015, %v1067
  %v1069 = vpop.f32.mrb[0].mxu0
  %v1070 = vadd.f32 %v1017, %v1069
  %1071 = vdwg.mxu0
  %1072 = vmatprep.subr.bf16.mxu0 %v674
  %1073 = vmatpush1.bf16.msra.mxu0 %v673
  %1074 = vmatprep.subr.bf16.mxu0 %v682
  %1075 = vmatpush1.bf16.msra.mxu0 %v681
  %1076 = vmatprep.subr.bf16.mxu0 %v690
  %1077 = vmatpush1.bf16.msra.mxu0 %v689
  %1078 = vmatprep.subr.bf16.mxu0 %v698
  %1079 = vmatpush1.bf16.msra.mxu0 %v697
  %1080 = vmatprep.subr.bf16.mxu0 %v706
  %1081 = vmatpush1.bf16.msra.mxu0 %v705
  %1082 = vmatprep.subr.bf16.mxu0 %v714
  %1083 = vmatpush1.bf16.msra.mxu0 %v713
  %1084 = vmatprep.subr.bf16.mxu0 %v722
  %1085 = vmatpush1.bf16.msra.mxu0 %v721
  %1086 = vmatprep.subr.bf16.mxu0 %v730
  %1087 = vmatpush1.bf16.msra.mxu0 %v729
  %1088 = vmatprep.subr.bf16.mxu0 %v738
  %1089 = vmatpush1.bf16.msra.mxu0 %v737
  %1090 = vmatprep.subr.bf16.mxu0 %v746
  %1091 = vmatpush1.bf16.msra.mxu0 %v745
  %1092 = vmatprep.subr.bf16.mxu0 %v754
  %1093 = vmatpush1.bf16.msra.mxu0 %v753
  %1094 = vmatprep.subr.bf16.mxu0 %v762
  %1095 = vmatpush1.bf16.msra.mxu0 %v761
  %1096 = vmatprep.subr.bf16.mxu0 %v770
  %1097 = vmatpush1.bf16.msra.mxu0 %v769
  %1098 = vmatprep.subr.bf16.mxu0 %v778
  %1099 = vmatpush1.bf16.msra.mxu0 %v777
  %1100 = vmatprep.subr.bf16.mxu0 %v786
  %1101 = vmatpush1.bf16.msra.mxu0 %v785
  %1102 = vmatprep.subr.bf16.mxu0 %v794
  %1103 = vmatpush1.bf16.msra.mxu0 %v793
  %1104 = vmatprep.mubr.bf16.mxu0 %v230
  %1105 = vmatmul.mubr.bf16.gmra.mrb[0].mxu0 %v229
  %v1106 = vpop.f32.mrb[0].mxu0
  %v1107 = vadd.f32 %v180, %v1106
  %v1108 = vpop.f32.mrb[0].mxu0
  %v1109 = vadd.f32 %v184, %v1108
  %v1110 = vpop.f32.mrb[0].mxu0
  %v1111 = vadd.f32 %v180, %v1110
  %v1112 = vpop.f32.mrb[0].mxu0
  %v1113 = vadd.f32 %v184, %v1112
  %1114 = vmatprep.mubr.bf16.mxu0 %v233
  %1115 = vmatmul.mubr.bf16.gmra.mrb[0].mxu0 %v232
  %v1116 = vpop.f32.mrb[0].mxu0
  %v1117 = vadd.f32 %v180, %v1116
  %v1118 = vpop.f32.mrb[0].mxu0
  %v1119 = vadd.f32 %v184, %v1118
  %v1120 = vpop.f32.mrb[0].mxu0
  %v1121 = vadd.f32 %v180, %v1120
  %v1122 = vpop.f32.mrb[0].mxu0
  %v1123 = vadd.f32 %v184, %v1122
  %1124 = vdwg.mxu0
  %1125 = vmatprep.subr.bf16.mxu0 %v802
  %1126 = vmatpush1.bf16.msra.mxu0 %v801
  %1127 = vmatprep.subr.bf16.mxu0 %v810
  %1128 = vmatpush1.bf16.msra.mxu0 %v809
  %1129 = vmatprep.subr.bf16.mxu0 0
  %1130 = vmatpush1.bf16.msra.mxu0 0
  %1131 = vmatprep.subr.bf16.mxu0 0
  %1132 = vmatpush1.bf16.msra.mxu0 0
  %1133 = vmatprep.subr.bf16.mxu0 0
  %1134 = vmatpush1.bf16.msra.mxu0 0
  %1135 = vmatprep.subr.bf16.mxu0 0
  %1136 = vmatpush1.bf16.msra.mxu0 0
  %1137 = vmatprep.subr.bf16.mxu0 0
  %1138 = vmatpush1.bf16.msra.mxu0 0
  %1139 = vmatprep.subr.bf16.mxu0 0
  %1140 = vmatpush1.bf16.msra.mxu0 0
  %1141 = vmatprep.subr.bf16.mxu0 0
  %1142 = vmatpush1.bf16.msra.mxu0 0
  %1143 = vmatprep.subr.bf16.mxu0 0
  %1144 = vmatpush1.bf16.msra.mxu0 0
  %1145 = vmatprep.subr.bf16.mxu0 0
  %1146 = vmatpush1.bf16.msra.mxu0 0
  %1147 = vmatprep.subr.bf16.mxu0 0
  %1148 = vmatpush1.bf16.msra.mxu0 0
  %1149 = vmatprep.subr.bf16.mxu0 0
  %1150 = vmatpush1.bf16.msra.mxu0 0
  %1151 = vmatprep.subr.bf16.mxu0 0
  %1152 = vmatpush1.bf16.msra.mxu0 0
  %1153 = vmatprep.subr.bf16.mxu0 0
  %1154 = vmatpush1.bf16.msra.mxu0 0
  %1155 = vmatprep.subr.bf16.mxu0 0
  %1156 = vmatpush1.bf16.msra.mxu0 0
  %1157 = vmatprep.mubr.bf16.mxu0 0
  %1158 = vmatmul.mubr.bf16.gmra.mrb[0].mxu0 %v961
  %v1159 = vpop.f32.mrb[0].mxu0
  %v1160 = vadd.f32 %v1107, %v1159
  %v1161 = vpop.f32.mrb[0].mxu0
  %v1162 = vadd.f32 %v1109, %v1161
  %v1163 = vpop.f32.mrb[0].mxu0
  %v1164 = vadd.f32 %v1111, %v1163
  %v1165 = vpop.f32.mrb[0].mxu0
  %v1166 = vadd.f32 %v1113, %v1165
  %1167 = vmatprep.mubr.bf16.mxu0 0
  %1168 = vmatmul.mubr.bf16.gmra.mrb[0].mxu0 %v964
  %v1169 = vpop.f32.mrb[0].mxu0
  %v1170 = vadd.f32 %v1117, %v1169
  %v1171 = vpop.f32.mrb[0].mxu0
  %v1172 = vadd.f32 %v1119, %v1171
  %v1173 = vpop.f32.mrb[0].mxu0
  %v1174 = vadd.f32 %v1121, %v1173
  %v1175 = vpop.f32.mrb[0].mxu0
  %v1176 = vadd.f32 %v1123, %v1175
  %1177 = vdwg.mxu0
  %1178 = vmatprep.subr.bf16.mxu0 %v676
  %1179 = vmatpush1.bf16.msra.mxu0 %v675
  %1180 = vmatprep.subr.bf16.mxu0 %v684
  %1181 = vmatpush1.bf16.msra.mxu0 %v683
  %1182 = vmatprep.subr.bf16.mxu0 %v692
  %1183 = vmatpush1.bf16.msra.mxu0 %v691
  %1184 = vmatprep.subr.bf16.mxu0 %v700
  %1185 = vmatpush1.bf16.msra.mxu0 %v699
  %1186 = vmatprep.subr.bf16.mxu0 %v708
  %1187 = vmatpush1.bf16.msra.mxu0 %v707
  %1188 = vmatprep.subr.bf16.mxu0 %v716
  %1189 = vmatpush1.bf16.msra.mxu0 %v715
  %1190 = vmatprep.subr.bf16.mxu0 %v724
  %1191 = vmatpush1.bf16.msra.mxu0 %v723
  %1192 = vmatprep.subr.bf16.mxu0 %v732
  %1193 = vmatpush1.bf16.msra.mxu0 %v731
  %1194 = vmatprep.subr.bf16.mxu0 %v740
  %1195 = vmatpush1.bf16.msra.mxu0 %v739
  %1196 = vmatprep.subr.bf16.mxu0 %v748
  %1197 = vmatpush1.bf16.msra.mxu0 %v747
  %1198 = vmatprep.subr.bf16.mxu0 %v756
  %1199 = vmatpush1.bf16.msra.mxu0 %v755
  %1200 = vmatprep.subr.bf16.mxu0 %v764
  %1201 = vmatpush1.bf16.msra.mxu0 %v763
  %1202 = vmatprep.subr.bf16.mxu0 %v772
  %1203 = vmatpush1.bf16.msra.mxu0 %v771
  %1204 = vmatprep.subr.bf16.mxu0 %v780
  %1205 = vmatpush1.bf16.msra.mxu0 %v779
  %1206 = vmatprep.subr.bf16.mxu0 %v788
  %1207 = vmatpush1.bf16.msra.mxu0 %v787
  %1208 = vmatprep.subr.bf16.mxu0 %v796
  %1209 = vmatpush1.bf16.msra.mxu0 %v795
  %1210 = vmatprep.mubr.bf16.mxu0 %v230
  %1211 = vmatmul.mubr.bf16.gmra.mrb[0].mxu0 %v229
  %v1212 = vpop.f32.mrb[0].mxu0
  %v1213 = vadd.f32 %v188, %v1212
  %v1214 = vpop.f32.mrb[0].mxu0
  %v1215 = vadd.f32 %v192, %v1214
  %v1216 = vpop.f32.mrb[0].mxu0
  %v1217 = vadd.f32 %v188, %v1216
  %v1218 = vpop.f32.mrb[0].mxu0
  %v1219 = vadd.f32 %v192, %v1218
  %1220 = vmatprep.mubr.bf16.mxu0 %v233
  %1221 = vmatmul.mubr.bf16.gmra.mrb[0].mxu0 %v232
  %v1222 = vpop.f32.mrb[0].mxu0
  %v1223 = vadd.f32 %v188, %v1222
  %v1224 = vpop.f32.mrb[0].mxu0
  %v1225 = vadd.f32 %v192, %v1224
  %v1226 = vpop.f32.mrb[0].mxu0
  %v1227 = vadd.f32 %v188, %v1226
  %v1228 = vpop.f32.mrb[0].mxu0
  %v1229 = vadd.f32 %v192, %v1228
  %1230 = vdwg.mxu0
  %1231 = vmatprep.subr.bf16.mxu0 %v804
  %1232 = vmatpush1.bf16.msra.mxu0 %v803
  %1233 = vmatprep.subr.bf16.mxu0 %v812
  %1234 = vmatpush1.bf16.msra.mxu0 %v811
  %1235 = vmatprep.subr.bf16.mxu0 0
  %1236 = vmatpush1.bf16.msra.mxu0 0
  %1237 = vmatprep.subr.bf16.mxu0 0
  %1238 = vmatpush1.bf16.msra.mxu0 0
  %1239 = vmatprep.subr.bf16.mxu0 0
  %1240 = vmatpush1.bf16.msra.mxu0 0
  %1241 = vmatprep.subr.bf16.mxu0 0
  %1242 = vmatpush1.bf16.msra.mxu0 0
  %1243 = vmatprep.subr.bf16.mxu0 0
  %1244 = vmatpush1.bf16.msra.mxu0 0
  %1245 = vmatprep.subr.bf16.mxu0 0
  %1246 = vmatpush1.bf16.msra.mxu0 0
  %1247 = vmatprep.subr.bf16.mxu0 0
  %1248 = vmatpush1.bf16.msra.mxu0 0
  %1249 = vmatprep.subr.bf16.mxu0 0
  %1250 = vmatpush1.bf16.msra.mxu0 0
  %1251 = vmatprep.subr.bf16.mxu0 0
  %1252 = vmatpush1.bf16.msra.mxu0 0
  %1253 = vmatprep.subr.bf16.mxu0 0
  %1254 = vmatpush1.bf16.msra.mxu0 0
  %1255 = vmatprep.subr.bf16.mxu0 0
  %1256 = vmatpush1.bf16.msra.mxu0 0
  %1257 = vmatprep.subr.bf16.mxu0 0
  %1258 = vmatpush1.bf16.msra.mxu0 0
  %1259 = vmatprep.subr.bf16.mxu0 0
  %1260 = vmatpush1.bf16.msra.mxu0 0
  %1261 = vmatprep.subr.bf16.mxu0 0
  %1262 = vmatpush1.bf16.msra.mxu0 0
  %1263 = vmatprep.mubr.bf16.mxu0 0
  %1264 = vmatmul.mubr.bf16.gmra.mrb[0].mxu0 %v961
  %v1265 = vpop.f32.mrb[0].mxu0
  %v1266 = vadd.f32 %v1213, %v1265
  %v1267 = vpop.f32.mrb[0].mxu0
  %v1268 = vadd.f32 %v1215, %v1267
  %v1269 = vpop.f32.mrb[0].mxu0
  %v1270 = vadd.f32 %v1217, %v1269
  %v1271 = vpop.f32.mrb[0].mxu0
  %v1272 = vadd.f32 %v1219, %v1271
  %1273 = vmatprep.mubr.bf16.mxu0 0
  %1274 = vmatmul.mubr.bf16.gmra.mrb[0].mxu0 %v964
  %v1275 = vpop.f32.mrb[0].mxu0
  %v1276 = vadd.f32 %v1223, %v1275
  %v1277 = vpop.f32.mrb[0].mxu0
  %v1278 = vadd.f32 %v1225, %v1277
  %v1279 = vpop.f32.mrb[0].mxu0
  %v1280 = vadd.f32 %v1227, %v1279
  %v1281 = vpop.f32.mrb[0].mxu0
  %v1282 = vadd.f32 %v1229, %v1281
  %1283 = vdwg.mxu0
  %1284 = vmatprep.subr.bf16.mxu0 %v678
  %1285 = vmatpush1.bf16.msra.mxu0 %v677
  %1286 = vmatprep.subr.bf16.mxu0 %v686
  %1287 = vmatpush1.bf16.msra.mxu0 %v685
  %1288 = vmatprep.subr.bf16.mxu0 %v694
  %1289 = vmatpush1.bf16.msra.mxu0 %v693
  %1290 = vmatprep.subr.bf16.mxu0 %v702
  %1291 = vmatpush1.bf16.msra.mxu0 %v701
  %1292 = vmatprep.subr.bf16.mxu0 %v710
  %1293 = vmatpush1.bf16.msra.mxu0 %v709
  %1294 = vmatprep.subr.bf16.mxu0 %v718
  %1295 = vmatpush1.bf16.msra.mxu0 %v717
  %1296 = vmatprep.subr.bf16.mxu0 %v726
  %1297 = vmatpush1.bf16.msra.mxu0 %v725
  %1298 = vmatprep.subr.bf16.mxu0 %v734
  %1299 = vmatpush1.bf16.msra.mxu0 %v733
  %1300 = vmatprep.subr.bf16.mxu0 %v742
  %1301 = vmatpush1.bf16.msra.mxu0 %v741
  %1302 = vmatprep.subr.bf16.mxu0 %v750
  %1303 = vmatpush1.bf16.msra.mxu0 %v749
  %1304 = vmatprep.subr.bf16.mxu0 %v758
  %1305 = vmatpush1.bf16.msra.mxu0 %v757
  %1306 = vmatprep.subr.bf16.mxu0 %v766
  %1307 = vmatpush1.bf16.msra.mxu0 %v765
  %1308 = vmatprep.subr.bf16.mxu0 %v774
  %1309 = vmatpush1.bf16.msra.mxu0 %v773
  %1310 = vmatprep.subr.bf16.mxu0 %v782
  %1311 = vmatpush1.bf16.msra.mxu0 %v781
  %1312 = vmatprep.subr.bf16.mxu0 %v790
  %1313 = vmatpush1.bf16.msra.mxu0 %v789
  %1314 = vmatprep.subr.bf16.mxu0 %v798
  %1315 = vmatpush1.bf16.msra.mxu0 %v797
  %1316 = vmatprep.mubr.bf16.mxu0 %v230
  %1317 = vmatmul.mubr.bf16.gmra.mrb[0].mxu0 %v229
  %v1318 = vpop.f32.mrb[0].mxu0
  %v1319 = vadd.f32 %v196, %v1318
  %v1320 = vpop.f32.mrb[0].mxu0
  %v1321 = vadd.f32 %v200, %v1320
  %v1322 = vpop.f32.mrb[0].mxu0
  %v1323 = vadd.f32 %v196, %v1322
  %v1324 = vpop.f32.mrb[0].mxu0
  %v1325 = vadd.f32 %v200, %v1324
  %1326 = vmatprep.mubr.bf16.mxu0 %v233
  %1327 = vmatmul.mubr.bf16.gmra.mrb[0].mxu0 %v232
  %v1328 = vpop.f32.mrb[0].mxu0
  %v1329 = vadd.f32 %v196, %v1328
  %v1330 = vpop.f32.mrb[0].mxu0
  %v1331 = vadd.f32 %v200, %v1330
  %v1332 = vpop.f32.mrb[0].mxu0
  %v1333 = vadd.f32 %v196, %v1332
  %v1334 = vpop.f32.mrb[0].mxu0
  %v1335 = vadd.f32 %v200, %v1334
  %1336 = vdwg.mxu0
  %1337 = vmatprep.subr.bf16.mxu0 %v806
  %1338 = vmatpush1.bf16.msra.mxu0 %v805
  %1339 = vmatprep.subr.bf16.mxu0 %v814
  %1340 = vmatpush1.bf16.msra.mxu0 %v813
  %1341 = vmatprep.subr.bf16.mxu0 0
  %1342 = vmatpush1.bf16.msra.mxu0 0
  %1343 = vmatprep.subr.bf16.mxu0 0
  %1344 = vmatpush1.bf16.msra.mxu0 0
  %1345 = vmatprep.subr.bf16.mxu0 0
  %1346 = vmatpush1.bf16.msra.mxu0 0
  %1347 = vmatprep.subr.bf16.mxu0 0
  %1348 = vmatpush1.bf16.msra.mxu0 0
  %1349 = vmatprep.subr.bf16.mxu0 0
  %1350 = vmatpush1.bf16.msra.mxu0 0
  %1351 = vmatprep.subr.bf16.mxu0 0
  %1352 = vmatpush1.bf16.msra.mxu0 0
  %1353 = vmatprep.subr.bf16.mxu0 0
  %1354 = vmatpush1.bf16.msra.mxu0 0
  %1355 = vmatprep.subr.bf16.mxu0 0
  %1356 = vmatpush1.bf16.msra.mxu0 0
  %1357 = vmatprep.subr.bf16.mxu0 0
  %1358 = vmatpush1.bf16.msra.mxu0 0
  %1359 = vmatprep.subr.bf16.mxu0 0
  %1360 = vmatpush1.bf16.msra.mxu0 0
  %1361 = vmatprep.subr.bf16.mxu0 0
  %1362 = vmatpush1.bf16.msra.mxu0 0
  %1363 = vmatprep.subr.bf16.mxu0 0
  %1364 = vmatpush1.bf16.msra.mxu0 0
  %1365 = vmatprep.subr.bf16.mxu0 0
  %1366 = vmatpush1.bf16.msra.mxu0 0
  %1367 = vmatprep.subr.bf16.mxu0 0
  %1368 = vmatpush1.bf16.msra.mxu0 0
  %1369 = vmatprep.mubr.bf16.mxu0 0
  %1370 = vmatmul.mubr.bf16.gmra.mrb[0].mxu0 %v961
  %v1371 = vpop.f32.mrb[0].mxu0
  %v1372 = vadd.f32 %v1319, %v1371
  %v1373 = vpop.f32.mrb[0].mxu0
  %v1374 = vadd.f32 %v1321, %v1373
  %v1375 = vpop.f32.mrb[0].mxu0
  %v1376 = vadd.f32 %v1323, %v1375
  %v1377 = vpop.f32.mrb[0].mxu0
  %v1378 = vadd.f32 %v1325, %v1377
  %1379 = vmatprep.mubr.bf16.mxu0 0
  %1380 = vmatmul.mubr.bf16.gmra.mrb[0].mxu0 %v964
  %v1381 = vpop.f32.mrb[0].mxu0
  %v1382 = vadd.f32 %v1329, %v1381
  %v1383 = vpop.f32.mrb[0].mxu0
  %v1384 = vadd.f32 %v1331, %v1383
  %v1385 = vpop.f32.mrb[0].mxu0
  %v1386 = vadd.f32 %v1333, %v1385
  %v1387 = vpop.f32.mrb[0].mxu0
  %v1388 = vadd.f32 %v1335, %v1387
  %1389 = vdwg.mxu0
  %v1390 = vpack.c.bf16 %v1058, %v1054
  %v1391 = vpack.c.bf16 %v1060, %v1056
  %v1392 = vpack.c.bf16 %v1164, %v1160
  %v1393 = vpack.c.bf16 %v1166, %v1162
  %v1394 = vpack.c.bf16 %v1270, %v1266
  %v1395 = vpack.c.bf16 %v1272, %v1268
  %v1396 = vpack.c.bf16 %v1376, %v1372
  %v1397 = vpack.c.bf16 %v1378, %v1374
  %v1398 = vpack.c.bf16 %v1068, %v1064
  %v1399 = vpack.c.bf16 %v1070, %v1066
  %v1400 = vpack.c.bf16 %v1174, %v1170
  %v1401 = vpack.c.bf16 %v1176, %v1172
  %v1402 = vpack.c.bf16 %v1280, %v1276
  %v1403 = vpack.c.bf16 %v1282, %v1278
  %v1404 = vpack.c.bf16 %v1386, %v1382
  %v1405 = vpack.c.bf16 %v1388, %v1384
  %v1422 = vunpack.c.l.b16 %v1390
  %v1423 = vunpack.c.l.b16 %v1391
  %v1424 = vunpack.c.l.b16 %v1392
  %v1425 = vunpack.c.l.b16 %v1393
  %v1426 = vunpack.c.l.b16 %v1394
  %v1427 = vunpack.c.l.b16 %v1395
  %v1428 = vunpack.c.l.b16 %v1396
  %v1429 = vunpack.c.l.b16 %v1397
  %v1430 = vunpack.c.h.b16 %v1390
  %v1431 = vunpack.c.h.b16 %v1391
  %v1432 = vunpack.c.h.b16 %v1392
  %v1433 = vunpack.c.h.b16 %v1393
  %v1434 = vunpack.c.h.b16 %v1394
  %v1435 = vunpack.c.h.b16 %v1395
  %v1436 = vunpack.c.h.b16 %v1396
  %v1437 = vunpack.c.h.b16 %v1397
  %v1438 = vunpack.c.l.b16 %v1398
  %v1439 = vunpack.c.l.b16 %v1399
  %v1440 = vunpack.c.l.b16 %v1400
  %v1441 = vunpack.c.l.b16 %v1401
  %v1442 = vunpack.c.l.b16 %v1402
  %v1443 = vunpack.c.l.b16 %v1403
  %v1444 = vunpack.c.l.b16 %v1404
  %v1445 = vunpack.c.l.b16 %v1405
  %v1446 = vunpack.c.h.b16 %v1398
  %v1447 = vunpack.c.h.b16 %v1399
  %v1448 = vunpack.c.h.b16 %v1400
  %v1449 = vunpack.c.h.b16 %v1401
  %v1450 = vunpack.c.h.b16 %v1402
  %v1451 = vunpack.c.h.b16 %v1403
  %v1452 = vunpack.c.h.b16 %v1404
  %v1453 = vunpack.c.h.b16 %v1405
  %v1454 = vpack.c.b16 %v1423, %v1422
  %v1455 = vpack.c.b16 %v1425, %v1424
  %v1456 = vpack.c.b16 %v1427, %v1426
  %v1457 = vpack.c.b16 %v1429, %v1428
  %v1458 = vpack.c.b16 %v1431, %v1430
  %v1459 = vpack.c.b16 %v1433, %v1432
  %v1460 = vpack.c.b16 %v1435, %v1434
  %v1461 = vpack.c.b16 %v1437, %v1436
  %v1462 = vpack.c.b16 %v1439, %v1438
  %v1463 = vpack.c.b16 %v1441, %v1440
  %v1464 = vpack.c.b16 %v1443, %v1442
  %v1465 = vpack.c.b16 %v1445, %v1444
  %v1466 = vpack.c.b16 %v1447, %v1446
  %v1467 = vpack.c.b16 %v1449, %v1448
  %v1468 = vpack.c.b16 %v1451, %v1450
  %v1469 = vpack.c.b16 %v1453, %v1452
  %1486 = vst [vmem:[%s3] sm:$0xff] %v1454
  %1487 = vst [vmem:[%s3 + $0x8] sm:$0xff] %v1455
  %1488 = vst [vmem:[%s3 + $0x10] sm:$0xff] %v1456
  %vm1489 = vcmask 1043456
  %vm1490 = vcmask 523268
  %vm1491 = vmor %vm1490, %vm1489
  %1492 = vst.msk [vmem:[%s3 + $0x18] sm:$0xff] %vm1491, %v1457
  %1493 = vst [vmem:[%s3 + $0x20] sm:$0xff] %v1458
  %1494 = vst [vmem:[%s3 + $0x28] sm:$0xff] %v1459
  %1495 = vst [vmem:[%s3 + $0x30] sm:$0xff] %v1460
  %1496 = vst.msk [vmem:[%s3 + $0x38] sm:$0xff] %vm1491, %v1461
  %1497 = vst [vmem:[%s3 + $0x40] sm:$0xff] %v1462
  %1498 = vst [vmem:[%s3 + $0x48] sm:$0xff] %v1463
  %1499 = vst [vmem:[%s3 + $0x50] sm:$0xff] %v1464
  %1500 = vst.msk [vmem:[%s3 + $0x58] sm:$0xff] %vm1491, %v1465
  %1501 = vst [vmem:[%s3 + $0x60] sm:$0xff] %v1466
  %1502 = vst [vmem:[%s3 + $0x68] sm:$0xff] %v1467
  %1503 = vst [vmem:[%s3 + $0x70] sm:$0xff] %v1468
  %1504 = vst.msk [vmem:[%s3 + $0x78] sm:$0xff] %vm1491, %v1469
  // Predicated region
  $region14: #{_lambda_.2} parent=0 // pred_check
    _
  $region15: #{_lambda_.2} parent=0 // pred_check_branch
    %1506 = sbr.rel (0) target = $region17
  $region16: #{_lambda_.2} parent=0 // pred_region
    _
  $region17: #{_lambda_.2} parent=0 // pred_fallthru
    _
  // Predicated region
  $region18: #{_lambda_.2} parent=0 // pred_check
    _
  $region19: #{_lambda_.2} parent=0 // pred_check_branch
    %1508 = sbr.rel (0) target = $region21
  $region20: #{_lambda_.2} parent=0 // pred_region
    _
  $region21: #{_lambda_.2} parent=0 // pred_fallthru
    _

// kernel: _lambda_.3
$region0: #{_lambda_.3}
  #allocation0 [shape = 'u32[]', space=smem, size = 0x4, offset = 0x4, fixed_abs, tag = 'smem constant byte address 0x4 - core index']
  #allocation1 [shape = 'u32[144,128]{1,0:T(1,128)}', space=vmem, size = 0x12000, scoped, tag = 'internal scratch']
  #allocation2 [shape = 'bf16[64,128]{1,0:T(16,128)(2,1)}', space=vmem, size = 0x4000, scoped, tag = 'scratch operand']
  %s0 = inlined_call_operand.vmem [shape: bf16[2,288,128], index: 0, kind: input, shape index: {}]
  %s1 = inlined_call_operand.vmem [shape: bf16[64,288], index: 1, kind: input, shape index: {}]
  %s2 = inlined_call_operand.vmem [shape: f32[64,1], index: 2, kind: input, shape index: {}]
  %s3 = inlined_call_operand.vmem [shape: bf16[32,30,64], index: 3, kind: input, shape index: {}]
  %s4 = inlined_call_operand.vmem [shape: bf16[20,20], index: 4, kind: input, shape index: {}]
  %s5 = inlined_call_operand.vmem [shape: f32[20,1], index: 5, kind: input, shape index: {}]
  %s6 = inlined_call_operand.vmem [shape: f32[2,10,70], index: 6, kind: output, shape index: {0}]
  %s7 = inlined_call_operand.vmem [shape: f32[2,20,70], index: 7, kind: output, shape index: {1}]
  %8 = xla_tuple %s6, %s7
  %s9 = sld [smem:[#allocation0]]
  $region65: #{_lambda_.3} parent=0
    _
  %s11 = ssub.s32 1, %s9
  %s12 = scalar_select 0, %s11, %s9
  loop: start=0, step=1, limit=4
  $region2: #{_lambda_.3} parent=0 // loop_pre_header
    _
  $region3: #{_lambda_.3} parent=0 // loop_header
    %s14 = sphi 0, %s18
    %p15 = scmp.ge.s32.totalorder %s14, 4
    %s24 = sphi 0, %s26
    %s27 = sphi 0, %s24
    %s28 = sphi 0, %s27
    %s44 = sphi 0, %s28
    %s48 = sphi 0, %s48
    %s50 = sphi 0, %s48
    %s51 = sphi 0, %s50
    %s65 = sphi 0, %s51
    %s69 = sphi 0, %s69
    %s71 = sphi 0, %s69
    %s72 = sphi 0, %s71
    %s86 = sphi 0, %s72
    %s92 = sphi 0, %s94
    %s95 = sphi 0, %s92
    %s96 = sphi 0, %s95
    %s112 = sphi 0, %s96
    %s116 = sphi 0, %s116
    %s118 = sphi 0, %s116
    %s119 = sphi 0, %s118
    %s133 = sphi 0, %s119
    %s137 = sphi 0, %s137
    %s139 = sphi 0, %s137
    %s140 = sphi 0, %s139
    %s154 = sphi 0, %s140
    %s160 = sphi 0, %s162
    %s163 = sphi 0, %s160
    %s164 = sphi 0, %s163
    %s180 = sphi 0, %s164
    %s186 = sphi 0, %s188
    %s189 = sphi 0, %s186
    %s190 = sphi 0, %s189
    %s206 = sphi 0, %s190
  $region4: #{_lambda_.3} parent=0 // loop_header_branch
    %17 = sbr.rel (%p15) target = $region8
  $region5: #{_lambda_.3} parent=0 // loop_body
    %s19 = ssub.s32 %s14, 1
    %s20 = ssub.s32 %s14, 2
    %s21 = sadd.s32 %s14, 1
    %s22 = ssub.s32 %s14, %s21
    %p23 = scmp.eq.s32.totalorder %s22, 0
    %s25 = sadd.s32 %s24, 1
    %s26 = scalar_select %p23, %s24, %s25
    %p29 = pneg %p23
    %p30 = scmp.eq.s32.totalorder %s14, 1
    %p31 = por %p29, %p30
    %p32 = scmp.ne.s32.totalorder %s24, %s27
    %p33 = scmp.eq.s32.totalorder %s14, 0
    %p34 = por %p32, %p33
    %p35 = scmp.ne.s32.totalorder %s24, %s27
    %p36 = scmp.eq.s32.totalorder %s19, 1
    %p37 = por %p35, %p36
    %p38 = scmp.ne.s32.totalorder %s27, %s28
    %p39 = scmp.eq.s32.totalorder %s19, 0
    %p40 = por %p38, %p39
    %p41 = scmp.ne.s32.totalorder %s27, %s28
    %p42 = scmp.eq.s32.totalorder %s20, 1
    %p43 = por %p41, %p42
    %p45 = scmp.ne.s32.totalorder %s28, %s44
    %p46 = scmp.eq.s32.totalorder %s20, 0
    %p47 = por %p45, %p46
    %s49 = sadd.s32 %s48, 1
    %p52 = scmp.eq.s32.totalorder %s14, 1
    %p53 = scmp.ne.s32.totalorder %s48, %s50
    %p54 = scmp.eq.s32.totalorder %s14, 0
    %p55 = por %p53, %p54
    %p56 = scmp.ne.s32.totalorder %s48, %s50
    %p57 = scmp.eq.s32.totalorder %s19, 1
    %p58 = por %p56, %p57
    %p59 = scmp.ne.s32.totalorder %s50, %s51
    %p60 = scmp.eq.s32.totalorder %s19, 0
    %p61 = por %p59, %p60
    %p62 = scmp.ne.s32.totalorder %s50, %s51
    %p63 = scmp.eq.s32.totalorder %s20, 1
    %p64 = por %p62, %p63
    %p66 = scmp.ne.s32.totalorder %s51, %s65
    %p67 = scmp.eq.s32.totalorder %s20, 0
    %p68 = por %p66, %p67
    %s70 = sadd.s32 %s69, 1
    %p73 = scmp.eq.s32.totalorder %s14, 1
    %p74 = scmp.ne.s32.totalorder %s69, %s71
    %p75 = scmp.eq.s32.totalorder %s14, 0
    %p76 = por %p74, %p75
    %p77 = scmp.ne.s32.totalorder %s69, %s71
    %p78 = scmp.eq.s32.totalorder %s19, 1
    %p79 = por %p77, %p78
    %p80 = scmp.ne.s32.totalorder %s71, %s72
    %p81 = scmp.eq.s32.totalorder %s19, 0
    %p82 = por %p80, %p81
    %p83 = scmp.ne.s32.totalorder %s71, %s72
    %p84 = scmp.eq.s32.totalorder %s20, 1
    %p85 = por %p83, %p84
    %p87 = scmp.ne.s32.totalorder %s72, %s86
    %p88 = scmp.eq.s32.totalorder %s20, 0
    %p89 = por %p87, %p88
    %s90 = ssub.s32 %s14, %s21
    %p91 = scmp.eq.s32.totalorder %s90, 0
    %s93 = sadd.s32 %s92, 1
    %s94 = scalar_select %p91, %s92, %s93
    %p97 = pneg %p91
    %p98 = scmp.eq.s32.totalorder %s14, 1
    %p99 = por %p97, %p98
    %p100 = scmp.ne.s32.totalorder %s92, %s95
    %p101 = scmp.eq.s32.totalorder %s14, 0
    %p102 = por %p100, %p101
    %p103 = scmp.ne.s32.totalorder %s92, %s95
    %p104 = scmp.eq.s32.totalorder %s19, 1
    %p105 = por %p103, %p104
    %p106 = scmp.ne.s32.totalorder %s95, %s96
    %p107 = scmp.eq.s32.totalorder %s19, 0
    %p108 = por %p106, %p107
    %p109 = scmp.ne.s32.totalorder %s95, %s96
    %p110 = scmp.eq.s32.totalorder %s20, 1
    %p111 = por %p109, %p110
    %p113 = scmp.ne.s32.totalorder %s96, %s112
    %p114 = scmp.eq.s32.totalorder %s20, 0
    %p115 = por %p113, %p114
    %s117 = sadd.s32 %s116, 1
    %p120 = scmp.eq.s32.totalorder %s14, 1
    %p121 = scmp.ne.s32.totalorder %s116, %s118
    %p122 = scmp.eq.s32.totalorder %s14, 0
    %p123 = por %p121, %p122
    %p124 = scmp.ne.s32.totalorder %s116, %s118
    %p125 = scmp.eq.s32.totalorder %s19, 1
    %p126 = por %p124, %p125
    %p127 = scmp.ne.s32.totalorder %s118, %s119
    %p128 = scmp.eq.s32.totalorder %s19, 0
    %p129 = por %p127, %p128
    %p130 = scmp.ne.s32.totalorder %s118, %s119
    %p131 = scmp.eq.s32.totalorder %s20, 1
    %p132 = por %p130, %p131
    %p134 = scmp.ne.s32.totalorder %s119, %s133
    %p135 = scmp.eq.s32.totalorder %s20, 0
    %p136 = por %p134, %p135
    %s138 = sadd.s32 %s137, 1
    %p141 = scmp.eq.s32.totalorder %s14, 1
    %p142 = scmp.ne.s32.totalorder %s137, %s139
    %p143 = scmp.eq.s32.totalorder %s14, 0
    %p144 = por %p142, %p143
    %p145 = scmp.ne.s32.totalorder %s137, %s139
    %p146 = scmp.eq.s32.totalorder %s19, 1
    %p147 = por %p145, %p146
    %p148 = scmp.ne.s32.totalorder %s139, %s140
    %p149 = scmp.eq.s32.totalorder %s19, 0
    %p150 = por %p148, %p149
    %p151 = scmp.ne.s32.totalorder %s139, %s140
    %p152 = scmp.eq.s32.totalorder %s20, 1
    %p153 = por %p151, %p152
    %p155 = scmp.ne.s32.totalorder %s140, %s154
    %p156 = scmp.eq.s32.totalorder %s20, 0
    %p157 = por %p155, %p156
    %s158 = ssub.s32 %s14, %s21
    %p159 = scmp.eq.s32.totalorder %s158, 0
    %s161 = sadd.s32 %s160, 1
    %s162 = scalar_select %p159, %s160, %s161
    %p165 = pneg %p159
    %p166 = scmp.eq.s32.totalorder %s14, 1
    %p167 = por %p165, %p166
    %p168 = scmp.ne.s32.totalorder %s160, %s163
    %p169 = scmp.eq.s32.totalorder %s14, 0
    %p170 = por %p168, %p169
    %p171 = scmp.ne.s32.totalorder %s160, %s163
    %p172 = scmp.eq.s32.totalorder %s19, 1
    %p173 = por %p171, %p172
    %p174 = scmp.ne.s32.totalorder %s163, %s164
    %p175 = scmp.eq.s32.totalorder %s19, 0
    %p176 = por %p174, %p175
    %p177 = scmp.ne.s32.totalorder %s163, %s164
    %p178 = scmp.eq.s32.totalorder %s20, 1
    %p179 = por %p177, %p178
    %p181 = scmp.ne.s32.totalorder %s164, %s180
    %p182 = scmp.eq.s32.totalorder %s20, 0
    %p183 = por %p181, %p182
    %s184 = ssub.s32 %s14, %s21
    %p185 = scmp.eq.s32.totalorder %s184, 0
    %s187 = sadd.s32 %s186, 1
    %s188 = scalar_select %p185, %s186, %s187
    %p191 = pneg %p185
    %p192 = scmp.eq.s32.totalorder %s14, 1
    %p193 = por %p191, %p192
    %p194 = scmp.ne.s32.totalorder %s186, %s189
    %p195 = scmp.eq.s32.totalorder %s14, 0
    %p196 = por %p194, %p195
    %p197 = scmp.ne.s32.totalorder %s186, %s189
    %p198 = scmp.eq.s32.totalorder %s19, 1
    %p199 = por %p197, %p198
    %p200 = scmp.ne.s32.totalorder %s189, %s190
    %p201 = scmp.eq.s32.totalorder %s19, 0
    %p202 = por %p200, %p201
    %p203 = scmp.ne.s32.totalorder %s189, %s190
    %p204 = scmp.eq.s32.totalorder %s20, 1
    %p205 = por %p203, %p204
    %p207 = scmp.ne.s32.totalorder %s190, %s206
    %p208 = scmp.eq.s32.totalorder %s20, 0
    %p209 = por %p207, %p208
    %p210 = scmp.le.s32.totalorder 1, %s14
    %p211 = scmp.lt.s32.totalorder %s14, 3
    %p212 = pnand %p210, %p211
    %p213 = pneg %p212
    // Predicated region
    $region9: #{_lambda_.3} parent=5 // pred_check
      _
    $region10: #{_lambda_.3} parent=5 // pred_check_branch
      %215 = sbr.rel (%p212) target = $region12
    $region11: #{_lambda_.3} parent=5 // pred_region
      %s216 = ssub.s32 %s14, 1
      // Predicated region
      $region13: #{_lambda_.3} parent=11 // pred_check
        %p217 = pneg %p61
      $region14: #{_lambda_.3} parent=11 // pred_check_branch
        %219 = sbr.rel (%p217) target = $region16
      $region15: #{_lambda_.3} parent=11 // pred_region
        _
      $region16: #{_lambda_.3} parent=11 // pred_fallthru
        _
      // Predicated region
      $region17: #{_lambda_.3} parent=11 // pred_check
        %p220 = pneg %p82
      $region18: #{_lambda_.3} parent=11 // pred_check_branch
        %222 = sbr.rel (%p220) target = $region20
      $region19: #{_lambda_.3} parent=11 // pred_region
        _
      $region20: #{_lambda_.3} parent=11 // pred_fallthru
        _
      // Predicated region
      $region21: #{_lambda_.3} parent=11 // pred_check
        %p223 = pneg %p129
      $region22: #{_lambda_.3} parent=11 // pred_check_branch
        %225 = sbr.rel (%p223) target = $region24
      $region23: #{_lambda_.3} parent=11 // pred_region
        _
      $region24: #{_lambda_.3} parent=11 // pred_fallthru
        _
      // Predicated region
      $region25: #{_lambda_.3} parent=11 // pred_check
        %p226 = pneg %p150
      $region26: #{_lambda_.3} parent=11 // pred_check_branch
        %228 = sbr.rel (%p226) target = $region28
      $region27: #{_lambda_.3} parent=11 // pred_region
        _
      $region28: #{_lambda_.3} parent=11 // pred_fallthru
        _
    $region12: #{_lambda_.3} parent=5 // pred_fallthru
      _
    %p229 = scmp.lt.s32.totalorder %s14, 2
    // Predicated region
    $region29: #{_lambda_.3} parent=5 // pred_check
      %p230 = pneg %p229
    $region30: #{_lambda_.3} parent=5 // pred_check_branch
      %232 = sbr.rel (%p230) target = $region32
    $region31: #{_lambda_.3} parent=5 // pred_region
      // Predicated region
      $region33: #{_lambda_.3} parent=31 // pred_check
        %p233 = pneg %p34
      $region34: #{_lambda_.3} parent=31 // pred_check_branch
        %235 = sbr.rel (%p233) target = $region36
      $region35: #{_lambda_.3} parent=31 // pred_region
        %p236 = scmp.lt.s32.totalorder %s14, 1
        %s237 = scalar_select %p236, %s14, 1
        %s238 = smul.addr %s237, 36
        %s239 = smul.addr %s238, 4
        %s240 = scalar_lea.vmem %s0, %s239
      $region36: #{_lambda_.3} parent=31 // pred_fallthru
        _
      // Predicated region
      $region37: #{_lambda_.3} parent=31 // pred_check
        %p241 = pneg %p102
      $region38: #{_lambda_.3} parent=31 // pred_check_branch
        %243 = sbr.rel (%p241) target = $region40
      $region39: #{_lambda_.3} parent=31 // pred_region
        %s244 = smul.u32 16, %s14
        %p245 = scmp.lt.s32.totalorder %s244, 31
        %s246 = scalar_select %p245, %s244, 31
        %s247 = smul.addr %s246, 4
        %s248 = smul.addr %s247, 4
        %s249 = scalar_lea.vmem %s3, %s248
        %s250 = smul.u32 16, %s14
      $region40: #{_lambda_.3} parent=31 // pred_fallthru
        _
    $region32: #{_lambda_.3} parent=5 // pred_fallthru
      _
    %p251 = scmp.le.s32.totalorder 1, %s14
    %p252 = scmp.lt.s32.totalorder %s14, 3
    %p253 = pnand %p251, %p252
    %p254 = pneg %p253
    // Predicated region
    $region41: #{_lambda_.3} parent=5 // pred_check
      _
    $region42: #{_lambda_.3} parent=5 // pred_check_branch
      %256 = sbr.rel (%p253) target = $region44
    $region43: #{_lambda_.3} parent=5 // pred_region
      %s257 = ssub.s32 %s14, 1
      %p258 = scmp.lt.s32.totalorder %s19, 1
      %s259 = scalar_select %p258, %s19, 1
      %s260 = smul.addr %s259, 36
      %s261 = smul.addr %s260, 4
      %s262 = scalar_lea.vmem %s0, %s261
      %p263 = pneg %p40
      %p264 = pneg %p37
      %p265 = pneg %p61
      %p266 = pneg %p58
      %p267 = pneg %p82
      %p268 = pneg %p79
      %s269 = smul.u32 16, %s19
      %p270 = scmp.lt.s32.totalorder %s269, 31
      %s271 = scalar_select %p270, %s269, 31
      %s272 = smul.addr %s271, 4
      %s273 = smul.addr %s272, 4
      %s274 = scalar_lea.vmem %s3, %s273
      %p275 = pneg %p108
      %p276 = pneg %p105
      %p277 = pneg %p129
      %p278 = pneg %p126
      %p279 = pneg %p150
      %p280 = pneg %p147
      %p281 = pneg %p176
      %p282 = pneg %p173
      %p283 = scmp.lt.s32.totalorder %s19, 1
      %s284 = scalar_select %p283, %s19, 1
      %s285 = smul.addr %s284, 2
      %s286 = smul.addr %s285, 8
      %s287 = scalar_lea.vmem %s6, %s286
      %p288 = pneg %p202
      %p289 = pneg %p199
      %p290 = scmp.lt.s32.totalorder %s19, 1
      %s291 = scalar_select %p290, %s19, 1
      %s292 = smul.addr %s291, 3
      %s293 = smul.addr %s292, 8
      %s294 = scalar_lea.vmem %s7, %s293
      %p295 = scmp.lt.s32.totalorder %s19, 1
      %s296 = scalar_select %p295, %s19, 1
      %s297 = smul.addr %s296, 36
      %s298 = smul.addr %s297, 4
      %s299 = scalar_lea.vmem %s0, %s298
      %s300 = smul.u32 16, %s19
      %p301 = scmp.lt.s32.totalorder %s300, 31
      %s302 = scalar_select %p301, %s300, 31
      %s303 = smul.addr %s302, 4
      %s304 = smul.addr %s303, 4
      %s305 = scalar_lea.vmem %s3, %s304
      %s306 = smul.u32 16, %s19
      %p307 = scmp.lt.s32.totalorder %s19, 1
      %s308 = scalar_select %p307, %s19, 1
      %s309 = smul.addr %s308, 2
      %s310 = smul.addr %s309, 8
      %s311 = scalar_lea.vmem %s6, %s310
      %p312 = scmp.lt.s32.totalorder %s19, 1
      %s313 = scalar_select %p312, %s19, 1
      %s314 = smul.addr %s313, 3
      %s315 = smul.addr %s314, 8
      %s316 = scalar_lea.vmem %s7, %s315
      %v318 = vld [vmem:[%s1] sm:$0xff]
      %v319 = vld [vmem:[%s1 + $0x8] sm:$0xf]
      %v320 = vld [vmem:[%s1 + $0xc] sm:$0xff]
      %v321 = vld [vmem:[%s1 + $0x14] sm:$0xf]
      %v322 = vld [vmem:[%s1 + $0x18] sm:$0xff]
      %v323 = vld [vmem:[%s1 + $0x20] sm:$0xf]
      %v324 = vld [vmem:[%s1 + $0x24] sm:$0xff]
      %v325 = vld [vmem:[%s1 + $0x2c] sm:$0xf]
      %v326 = vld [vmem:[%s1 + $0x30] sm:$0xff]
      %v327 = vld [vmem:[%s1 + $0x38] sm:$0xf]
      %v328 = vld [vmem:[%s1 + $0x3c] sm:$0xff]
      %v329 = vld [vmem:[%s1 + $0x44] sm:$0xf]
      %v330 = vld [vmem:[%s1 + $0x48] sm:$0xff]
      %v331 = vld [vmem:[%s1 + $0x50] sm:$0xf]
      %v332 = vld [vmem:[%s1 + $0x54] sm:$0xff]
      %v333 = vld [vmem:[%s1 + $0x5c] sm:$0xf]
      %v334 = vld [vmem:[%s299] sm:$0xf]
      %v335 = vld [vmem:[%s299 + $0x4] sm:$0xf]
      %v336 = vld [vmem:[%s299 + $0x8] sm:$0xf]
      %v337 = vld [vmem:[%s299 + $0xc] sm:$0xf]
      %v338 = vld [vmem:[%s299 + $0x10] sm:$0xf]
      %v339 = vld [vmem:[%s299 + $0x14] sm:$0xf]
      %v340 = vld [vmem:[%s299 + $0x18] sm:$0xf]
      %v341 = vld [vmem:[%s299 + $0x1c] sm:$0xf]
      %v342 = vld [vmem:[%s299 + $0x20] sm:$0xf]
      %v343 = vld [vmem:[%s299 + $0x24] sm:$0xf]
      %v344 = vld [vmem:[%s299 + $0x28] sm:$0xf]
      %v345 = vld [vmem:[%s299 + $0x2c] sm:$0xf]
      %v346 = vld [vmem:[%s299 + $0x30] sm:$0xf]
      %v347 = vld [vmem:[%s299 + $0x34] sm:$0xf]
      %v348 = vld [vmem:[%s299 + $0x38] sm:$0xf]
      %v349 = vld [vmem:[%s299 + $0x3c] sm:$0xf]
      %v350 = vld [vmem:[%s299 + $0x40] sm:$0xf]
      %v351 = vld [vmem:[%s299 + $0x44] sm:$0xf]
      %v352 = vld [vmem:[%s299 + $0x48] sm:$0xf]
      %v353 = vld [vmem:[%s299 + $0x4c] sm:$0xf]
      %v354 = vld [vmem:[%s299 + $0x50] sm:$0xf]
      %v355 = vld [vmem:[%s299 + $0x54] sm:$0xf]
      %v356 = vld [vmem:[%s299 + $0x58] sm:$0xf]
      %v357 = vld [vmem:[%s299 + $0x5c] sm:$0xf]
      %v358 = vld [vmem:[%s299 + $0x60] sm:$0xf]
      %v359 = vld [vmem:[%s299 + $0x64] sm:$0xf]
      %v360 = vld [vmem:[%s299 + $0x68] sm:$0xf]
      %v361 = vld [vmem:[%s299 + $0x6c] sm:$0xf]
      %v362 = vld [vmem:[%s299 + $0x70] sm:$0xf]
      %v363 = vld [vmem:[%s299 + $0x74] sm:$0xf]
      %v364 = vld [vmem:[%s299 + $0x78] sm:$0xf]
      %v365 = vld [vmem:[%s299 + $0x7c] sm:$0xf]
      %v366 = vld [vmem:[%s299 + $0x80] sm:$0xf]
      %v367 = vld [vmem:[%s299 + $0x84] sm:$0xf]
      %v368 = vld [vmem:[%s299 + $0x88] sm:$0xf]
      %v369 = vld [vmem:[%s299 + $0x8c] sm:$0xf]
      %v370 = vld [vmem:[%s2] sm:$0xff]
      %v371 = vld [vmem:[%s2 + $0x8] sm:$0xff]
      %v372 = vld [vmem:[%s2 + $0x10] sm:$0xff]
      %v373 = vld [vmem:[%s2 + $0x18] sm:$0xff]
      %v374 = vld [vmem:[%s2 + $0x20] sm:$0xff]
      %v375 = vld [vmem:[%s2 + $0x28] sm:$0xff]
      %v376 = vld [vmem:[%s2 + $0x30] sm:$0xff]
      %v377 = vld [vmem:[%s2 + $0x38] sm:$0xff]
      %379 = vset.pattern.permute.xlu0 0
      %380 = vperm.xlu0 %379, %v370
      %v381 = vpop.permute.xlu0 %380
      %384 = vset.pattern.permute.xlu0 0
      %385 = vperm.xlu0 %384, %v371
      %v386 = vpop.permute.xlu0 %385
      %389 = vset.pattern.permute.xlu0 0
      %390 = vperm.xlu0 %389, %v372
      %v391 = vpop.permute.xlu0 %390
      %394 = vset.pattern.permute.xlu0 0
      %395 = vperm.xlu0 %394, %v373
      %v396 = vpop.permute.xlu0 %395
      %399 = vset.pattern.permute.xlu0 0
      %400 = vperm.xlu0 %399, %v374
      %v401 = vpop.permute.xlu0 %400
      %404 = vset.pattern.permute.xlu0 0
      %405 = vperm.xlu0 %404, %v375
      %v406 = vpop.permute.xlu0 %405
      %409 = vset.pattern.permute.xlu0 0
      %410 = vperm.xlu0 %409, %v376
      %v411 = vpop.permute.xlu0 %410
      %414 = vset.pattern.permute.xlu0 0
      %415 = vperm.xlu0 %414, %v377
      %v416 = vpop.permute.xlu0 %415
      %v434 = vunpack.c.l.b16 %v318
      %v435 = vunpack.c.h.b16 %v318
      %v436 = vunpack.c.l.b16 %v319
      %v437 = vunpack.c.l.b16 %v320
      %v438 = vunpack.c.h.b16 %v320
      %v439 = vunpack.c.l.b16 %v321
      %v440 = vunpack.c.l.b16 %v322
      %v441 = vunpack.c.h.b16 %v322
      %v442 = vunpack.c.l.b16 %v323
      %v443 = vunpack.c.l.b16 %v324
      %v444 = vunpack.c.h.b16 %v324
      %v445 = vunpack.c.l.b16 %v325
      %v446 = vunpack.c.l.b16 %v326
      %v447 = vunpack.c.h.b16 %v326
      %v448 = vunpack.c.l.b16 %v327
      %v449 = vunpack.c.l.b16 %v328
      %v450 = vunpack.c.h.b16 %v328
      %v451 = vunpack.c.l.b16 %v329
      %v452 = vunpack.c.l.b16 %v330
      %v453 = vunpack.c.h.b16 %v330
      %v454 = vunpack.c.l.b16 %v331
      %v455 = vunpack.c.l.b16 %v332
      %v456 = vunpack.c.h.b16 %v332
      %v457 = vunpack.c.l.b16 %v333
      %v458 = vpack.c.b16 %v437, %v434
      %v459 = vpack.c.b16 %v438, %v435
      %v460 = vpack.c.b16 %v439, %v436
      %v461 = vpack.c.b16 %v443, %v440
      %v462 = vpack.c.b16 %v444, %v441
      %v463 = vpack.c.b16 %v445, %v442
      %v464 = vpack.c.b16 %v449, %v446
      %v465 = vpack.c.b16 %v450, %v447
      %v466 = vpack.c.b16 %v451, %v448
      %v467 = vpack.c.b16 %v455, %v452
      %v468 = vpack.c.b16 %v456, %v453
      %v469 = vpack.c.b16 %v457, %v454
      %v514 = vunpack.c.l.b16 %v334
      %v515 = vunpack.c.l.b16 %v335
      %v516 = vunpack.c.l.b16 %v336
      %v517 = vunpack.c.l.b16 %v337
      %v518 = vunpack.c.l.b16 %v338
      %v519 = vunpack.c.l.b16 %v339
      %v520 = vunpack.c.l.b16 %v340
      %v521 = vunpack.c.l.b16 %v341
      %v522 = vunpack.c.l.b16 %v342
      %v523 = vunpack.c.l.b16 %v343
      %v524 = vunpack.c.l.b16 %v344
      %v525 = vunpack.c.l.b16 %v345
      %v526 = vunpack.c.l.b16 %v346
      %v527 = vunpack.c.l.b16 %v347
      %v528 = vunpack.c.l.b16 %v348
      %v529 = vunpack.c.l.b16 %v349
      %v530 = vunpack.c.l.b16 %v350
      %v531 = vunpack.c.l.b16 %v351
      %v532 = vunpack.c.l.b16 %v352
      %v533 = vunpack.c.l.b16 %v353
      %v534 = vunpack.c.l.b16 %v354
      %v535 = vunpack.c.l.b16 %v355
      %v536 = vunpack.c.l.b16 %v356
      %v537 = vunpack.c.l.b16 %v357
      %v538 = vunpack.c.l.b16 %v358
      %v539 = vunpack.c.l.b16 %v359
      %v540 = vunpack.c.l.b16 %v360
      %v541 = vunpack.c.l.b16 %v361
      %v542 = vunpack.c.l.b16 %v362
      %v543 = vunpack.c.l.b16 %v363
      %v544 = vunpack.c.l.b16 %v364
      %v545 = vunpack.c.l.b16 %v365
      %v546 = vunpack.c.l.b16 %v366
      %v547 = vunpack.c.l.b16 %v367
      %v548 = vunpack.c.l.b16 %v368
      %v549 = vunpack.c.l.b16 %v369
      %v550 = vpack.c.b16 %v515, %v514
      %v551 = vpack.c.b16 %v517, %v516
      %v552 = vpack.c.b16 %v519, %v518
      %v553 = vpack.c.b16 %v521, %v520
      %v554 = vpack.c.b16 %v523, %v522
      %v555 = vpack.c.b16 %v525, %v524
      %v556 = vpack.c.b16 %v527, %v526
      %v557 = vpack.c.b16 %v529, %v528
      %v558 = vpack.c.b16 %v531, %v530
      %v559 = vpack.c.b16 %v533, %v532
      %v560 = vpack.c.b16 %v535, %v534
      %v561 = vpack.c.b16 %v537, %v536
      %v562 = vpack.c.b16 %v539, %v538
      %v563 = vpack.c.b16 %v541, %v540
      %v564 = vpack.c.b16 %v543, %v542
      %v565 = vpack.c.b16 %v545, %v544
      %v566 = vpack.c.b16 %v547, %v546
      %v567 = vpack.c.b16 %v549, %v548
      %vm586 = vcmask 261120
      %v588 = vsel %vm586, %v460, 0
      %v591 = vsel %vm586, %v463, 0
      %v594 = vsel %vm586, %v466, 0
      %v597 = vsel %vm586, %v469, 0
      %599 = vmatprep.subr.bf16.mxu0 0
      %600 = vmatpush1.bf16.msra.mxu0 %v550
      %601 = vmatprep.subr.bf16.mxu0 0
      %602 = vmatpush1.bf16.msra.mxu0 %v551
      %603 = vmatprep.subr.bf16.mxu0 0
      %604 = vmatpush1.bf16.msra.mxu0 %v552
      %605 = vmatprep.subr.bf16.mxu0 0
      %606 = vmatpush1.bf16.msra.mxu0 %v553
      %607 = vmatprep.subr.bf16.mxu0 0
      %608 = vmatpush1.bf16.msra.mxu0 %v554
      %609 = vmatprep.subr.bf16.mxu0 0
      %610 = vmatpush1.bf16.msra.mxu0 %v555
      %611 = vmatprep.subr.bf16.mxu0 0
      %612 = vmatpush1.bf16.msra.mxu0 %v556
      %613 = vmatprep.subr.bf16.mxu0 0
      %614 = vmatpush1.bf16.msra.mxu0 %v557
      %615 = vmatprep.subr.bf16.mxu0 0
      %616 = vmatpush1.bf16.msra.mxu0 %v558
      %617 = vmatprep.subr.bf16.mxu0 0
      %618 = vmatpush1.bf16.msra.mxu0 %v559
      %619 = vmatprep.subr.bf16.mxu0 0
      %620 = vmatpush1.bf16.msra.mxu0 %v560
      %621 = vmatprep.subr.bf16.mxu0 0
      %622 = vmatpush1.bf16.msra.mxu0 %v561
      %623 = vmatprep.subr.bf16.mxu0 0
      %624 = vmatpush1.bf16.msra.mxu0 %v562
      %625 = vmatprep.subr.bf16.mxu0 0
      %626 = vmatpush1.bf16.msra.mxu0 %v563
      %627 = vmatprep.subr.bf16.mxu0 0
      %628 = vmatpush1.bf16.msra.mxu0 %v564
      %629 = vmatprep.subr.bf16.mxu0 0
      %630 = vmatpush1.bf16.msra.mxu0 %v565
      %631 = vmatprep.mubr.bf16.mxu0 %v459
      %632 = vmatmul.mubr.bf16.gmra.mrb[0].mxu0 %v458
      %v633 = vpop.f32.mrb[0].mxu0
      %v634 = vadd.f32 %v381, %v633
      %v635 = vpop.f32.mrb[0].mxu0
      %v636 = vpop.f32.mrb[0].mxu0
      %v637 = vadd.f32 %v386, %v636
      %v638 = vpop.f32.mrb[0].mxu0
      %639 = vmatprep.mubr.bf16.mxu0 %v462
      %640 = vmatmul.mubr.bf16.gmra.mrb[0].mxu0 %v461
      %v641 = vpop.f32.mrb[0].mxu0
      %v642 = vadd.f32 %v391, %v641
      %v643 = vpop.f32.mrb[0].mxu0
      %v644 = vpop.f32.mrb[0].mxu0
      %v645 = vadd.f32 %v396, %v644
      %v646 = vpop.f32.mrb[0].mxu0
      %647 = vmatprep.mubr.bf16.mxu0 %v465
      %648 = vmatmul.mubr.bf16.gmra.mrb[0].mxu0 %v464
      %v649 = vpop.f32.mrb[0].mxu0
      %v650 = vadd.f32 %v401, %v649
      %v651 = vpop.f32.mrb[0].mxu0
      %v652 = vpop.f32.mrb[0].mxu0
      %v653 = vadd.f32 %v406, %v652
      %v654 = vpop.f32.mrb[0].mxu0
      %655 = vmatprep.mubr.bf16.mxu0 %v468
      %656 = vmatmul.mubr.bf16.gmra.mrb[0].mxu0 %v467
      %v657 = vpop.f32.mrb[0].mxu0
      %v658 = vadd.f32 %v411, %v657
      %v659 = vpop.f32.mrb[0].mxu0
      %v660 = vpop.f32.mrb[0].mxu0
      %v661 = vadd.f32 %v416, %v660
      %v662 = vpop.f32.mrb[0].mxu0
      %663 = vdwg.mxu0
      %664 = vmatprep.subr.bf16.mxu0 0
      %665 = vmatpush1.bf16.msra.mxu0 %v566
      %666 = vmatprep.subr.bf16.mxu0 0
      %667 = vmatpush1.bf16.msra.mxu0 %v567
      %668 = vmatprep.subr.bf16.mxu0 0
      %669 = vmatpush1.bf16.msra.mxu0 0
      %670 = vmatprep.subr.bf16.mxu0 0
      %671 = vmatpush1.bf16.msra.mxu0 0
      %672 = vmatprep.subr.bf16.mxu0 0
      %673 = vmatpush1.bf16.msra.mxu0 0
      %674 = vmatprep.subr.bf16.mxu0 0
      %675 = vmatpush1.bf16.msra.mxu0 0
      %676 = vmatprep.subr.bf16.mxu0 0
      %677 = vmatpush1.bf16.msra.mxu0 0
      %678 = vmatprep.subr.bf16.mxu0 0
      %679 = vmatpush1.bf16.msra.mxu0 0
      %680 = vmatprep.subr.bf16.mxu0 0
      %681 = vmatpush1.bf16.msra.mxu0 0
      %682 = vmatprep.subr.bf16.mxu0 0
      %683 = vmatpush1.bf16.msra.mxu0 0
      %684 = vmatprep.subr.bf16.mxu0 0
      %685 = vmatpush1.bf16.msra.mxu0 0
      %686 = vmatprep.subr.bf16.mxu0 0
      %687 = vmatpush1.bf16.msra.mxu0 0
      %688 = vmatprep.subr.bf16.mxu0 0
      %689 = vmatpush1.bf16.msra.mxu0 0
      %690 = vmatprep.subr.bf16.mxu0 0
      %691 = vmatpush1.bf16.msra.mxu0 0
      %692 = vmatprep.subr.bf16.mxu0 0
      %693 = vmatpush1.bf16.msra.mxu0 0
      %694 = vmatprep.subr.bf16.mxu0 0
      %695 = vmatpush1.bf16.msra.mxu0 0
      %696 = vmatprep.mubr.bf16.mxu0 0
      %697 = vmatmul.mubr.bf16.gmra.mrb[0].mxu0 %v588
      %v698 = vpop.f32.mrb[0].mxu0
      %v699 = vadd.f32 %v634, %v698
      %v700 = vpop.f32.mrb[0].mxu0
      %v701 = vpop.f32.mrb[0].mxu0
      %v702 = vadd.f32 %v637, %v701
      %v703 = vpop.f32.mrb[0].mxu0
      %704 = vmatprep.mubr.bf16.mxu0 0
      %705 = vmatmul.mubr.bf16.gmra.mrb[0].mxu0 %v591
      %v706 = vpop.f32.mrb[0].mxu0
      %v707 = vadd.f32 %v642, %v706
      %v708 = vpop.f32.mrb[0].mxu0
      %v709 = vpop.f32.mrb[0].mxu0
      %v710 = vadd.f32 %v645, %v709
      %v711 = vpop.f32.mrb[0].mxu0
      %712 = vmatprep.mubr.bf16.mxu0 0
      %713 = vmatmul.mubr.bf16.gmra.mrb[0].mxu0 %v594
      %v714 = vpop.f32.mrb[0].mxu0
      %v715 = vadd.f32 %v650, %v714
      %v716 = vpop.f32.mrb[0].mxu0
      %v717 = vpop.f32.mrb[0].mxu0
      %v718 = vadd.f32 %v653, %v717
      %v719 = vpop.f32.mrb[0].mxu0
      %720 = vmatprep.mubr.bf16.mxu0 0
      %721 = vmatmul.mubr.bf16.gmra.mrb[0].mxu0 %v597
      %v722 = vpop.f32.mrb[0].mxu0
      %v723 = vadd.f32 %v658, %v722
      %v724 = vpop.f32.mrb[0].mxu0
      %v725 = vpop.f32.mrb[0].mxu0
      %v726 = vadd.f32 %v661, %v725
      %v727 = vpop.f32.mrb[0].mxu0
      %728 = vdwg.mxu0
      %v729 = vpack.c.bf16 %v702, %v699
      %v730 = vpack.c.bf16 %v710, %v707
      %v731 = vpack.c.bf16 %v718, %v715
      %v732 = vpack.c.bf16 %v726, %v723
      %733 = vst [vmem:[#allocation2] sm:$0xff] %v729
      %734 = vst [vmem:[#allocation2 + $0x8] sm:$0xff] %v730
      %735 = vst [vmem:[#allocation2 + $0x10] sm:$0xff] %v731
      %736 = vst [vmem:[#allocation2 + $0x18] sm:$0xff] %v732
      %v737 = vld [vmem:[%s305] sm:$0xf]
      %v738 = vld [vmem:[%s305 + $0x4] sm:$0xf]
      %v739 = vld [vmem:[%s305 + $0x8] sm:$0xf]
      %v740 = vld [vmem:[%s305 + $0xc] sm:$0x7]
      %v741 = vld [vmem:[#allocation2] sm:$0xff]
      %v742 = vld [vmem:[#allocation2 + $0x8] sm:$0xff]
      %v743 = vld [vmem:[#allocation2 + $0x10] sm:$0xff]
      %v744 = vld [vmem:[#allocation2 + $0x18] sm:$0xff]
      %s745 = scalar_lea.vmem %s305, 16
      %v746 = vld [vmem:[%s745] sm:$0xf]
      %v747 = vld [vmem:[%s745 + $0x4] sm:$0xf]
      %v748 = vld [vmem:[%s745 + $0x8] sm:$0xf]
      %v749 = vld [vmem:[%s745 + $0xc] sm:$0x7]
      %v754 = vunpack.c.l.b16 %v746
      %v755 = vunpack.c.l.b16 %v747
      %v756 = vunpack.c.l.b16 %v748
      %v757 = vunpack.c.l.b16 %v749
      %v758 = vpack.c.b16 %v755, %v754
      %v759 = vpack.c.b16 %v757, %v756
      %764 = vrot.lane.b32.xlu0 %v741, 127
      %v765 = vpop.permute.xlu0 %764
      %766 = vrot.lane.b32.xlu0 %v742, 127
      %v767 = vpop.permute.xlu0 %766
      %768 = vrot.lane.b32.xlu0 %v743, 127
      %v769 = vpop.permute.xlu0 %768
      %770 = vrot.lane.b32.xlu0 %v744, 127
      %v771 = vpop.permute.xlu0 %770
      %vm776 = vcmask 523264
      %v778 = vsel %vm776, %v758, 0
      %v781 = vsel %vm776, %v759, 0
      %783 = vmatprep.subr.bf16.mxu0 0
      %784 = vmatpush1.bf16.msra.mxu0 %v765
      %785 = vmatprep.subr.bf16.mxu0 0
      %786 = vmatpush1.bf16.msra.mxu0 %v767
      %787 = vmatprep.subr.bf16.mxu0 0
      %788 = vmatpush1.bf16.msra.mxu0 %v769
      %789 = vmatprep.subr.bf16.mxu0 0
      %790 = vmatpush1.bf16.msra.mxu0 %v771
      %791 = vmatprep.subr.bf16.mxu0 0
      %792 = vmatpush1.bf16.msra.mxu0 0
      %793 = vmatprep.subr.bf16.mxu0 0
      %794 = vmatpush1.bf16.msra.mxu0 0
      %795 = vmatprep.subr.bf16.mxu0 0
      %796 = vmatpush1.bf16.msra.mxu0 0
      %797 = vmatprep.subr.bf16.mxu0 0
      %798 = vmatpush1.bf16.msra.mxu0 0
      %799 = vmatprep.subr.bf16.mxu0 0
      %800 = vmatpush1.bf16.msra.mxu0 0
      %801 = vmatprep.subr.bf16.mxu0 0
      %802 = vmatpush1.bf16.msra.mxu0 0
      %803 = vmatprep.subr.bf16.mxu0 0
      %804 = vmatpush1.bf16.msra.mxu0 0
      %805 = vmatprep.subr.bf16.mxu0 0
      %806 = vmatpush1.bf16.msra.mxu0 0
      %807 = vmatprep.subr.bf16.mxu0 0
      %808 = vmatpush1.bf16.msra.mxu0 0
      %809 = vmatprep.subr.bf16.mxu0 0
      %810 = vmatpush1.bf16.msra.mxu0 0
      %811 = vmatprep.subr.bf16.mxu0 0
      %812 = vmatpush1.bf16.msra.mxu0 0
      %813 = vmatprep.subr.bf16.mxu0 0
      %814 = vmatpush1.bf16.msra.mxu0 0
      %815 = vmatprep.mubr.bf16.mxu0 0
      %816 = vmatmul.mubr.bf16.gmra.mrb[0].mxu0 %v778
      %v817 = vpop.f32.mrb[0].mxu0
      %v818 = vadd.f32 0.0, %v817
      %v819 = vpop.f32.mrb[0].mxu0
      %v820 = vpop.f32.mrb[0].mxu0
      %v821 = vadd.f32 0.0, %v820
      %v822 = vpop.f32.mrb[0].mxu0
      %823 = vmatprep.mubr.bf16.mxu0 0
      %824 = vmatmul.mubr.bf16.gmra.mrb[0].mxu0 %v781
      %v825 = vpop.f32.mrb[0].mxu0
      %v826 = vadd.f32 0.0, %v825
      %v827 = vpop.f32.mrb[0].mxu0
      %v828 = vpop.f32.mrb[0].mxu0
      %v829 = vadd.f32 0.0, %v828
      %v830 = vpop.f32.mrb[0].mxu0
      %831 = vdwg.mxu0
      %v836 = vunpack.c.l.b16 %v737
      %v837 = vunpack.c.l.b16 %v738
      %v838 = vunpack.c.l.b16 %v739
      %v839 = vunpack.c.l.b16 %v740
      %v840 = vpack.c.b16 %v837, %v836
      %v841 = vpack.c.b16 %v839, %v838
      %v843 = vsel %vm776, %v840, 0
      %v846 = vsel %vm776, %v841, 0
      %848 = vmatprep.subr.bf16.mxu0 0
      %849 = vmatpush1.bf16.msra.mxu0 %v741
      %850 = vmatprep.subr.bf16.mxu0 0
      %851 = vmatpush1.bf16.msra.mxu0 %v742
      %852 = vmatprep.subr.bf16.mxu0 0
      %853 = vmatpush1.bf16.msra.mxu0 %v743
      %854 = vmatprep.subr.bf16.mxu0 0
      %855 = vmatpush1.bf16.msra.mxu0 %v744
      %856 = vmatprep.subr.bf16.mxu0 0
      %857 = vmatpush1.bf16.msra.mxu0 0
      %858 = vmatprep.subr.bf16.mxu0 0
      %859 = vmatpush1.bf16.msra.mxu0 0
      %860 = vmatprep.subr.bf16.mxu0 0
      %861 = vmatpush1.bf16.msra.mxu0 0
      %862 = vmatprep.subr.bf16.mxu0 0
      %863 = vmatpush1.bf16.msra.mxu0 0
      %864 = vmatprep.subr.bf16.mxu0 0
      %865 = vmatpush1.bf16.msra.mxu0 0
      %866 = vmatprep.subr.bf16.mxu0 0
      %867 = vmatpush1.bf16.msra.mxu0 0
      %868 = vmatprep.subr.bf16.mxu0 0
      %869 = vmatpush1.bf16.msra.mxu0 0
      %870 = vmatprep.subr.bf16.mxu0 0
      %871 = vmatpush1.bf16.msra.mxu0 0
      %872 = vmatprep.subr.bf16.mxu0 0
      %873 = vmatpush1.bf16.msra.mxu0 0
      %874 = vmatprep.subr.bf16.mxu0 0
      %875 = vmatpush1.bf16.msra.mxu0 0
      %876 = vmatprep.subr.bf16.mxu0 0
      %877 = vmatpush1.bf16.msra.mxu0 0
      %878 = vmatprep.subr.bf16.mxu0 0
      %879 = vmatpush1.bf16.msra.mxu0 0
      %880 = vmatprep.mubr.bf16.mxu0 0
      %881 = vmatmul.mubr.bf16.gmra.mrb[0].mxu0 %v843
      %v882 = vpop.f32.mrb[0].mxu0
      %v883 = vadd.f32 %v818, %v882
      %v884 = vpop.f32.mrb[0].mxu0
      %v885 = vpop.f32.mrb[0].mxu0
      %v886 = vadd.f32 %v821, %v885
      %v887 = vpop.f32.mrb[0].mxu0
      %888 = vmatprep.mubr.bf16.mxu0 0
      %889 = vmatmul.mubr.bf16.gmra.mrb[0].mxu0 %v846
      %v890 = vpop.f32.mrb[0].mxu0
      %v891 = vadd.f32 %v826, %v890
      %v892 = vpop.f32.mrb[0].mxu0
      %v893 = vpop.f32.mrb[0].mxu0
      %v894 = vadd.f32 %v829, %v893
      %v895 = vpop.f32.mrb[0].mxu0
      %896 = vdwg.mxu0
      %s897 = scalar_lea.vmem %s305, 32
      %v898 = vld [vmem:[%s897] sm:$0xf]
      %v899 = vld [vmem:[%s897 + $0x4] sm:$0xf]
      %v900 = vld [vmem:[%s897 + $0x8] sm:$0xf]
      %v901 = vld [vmem:[%s897 + $0xc] sm:$0x7]
      %v906 = vunpack.c.l.b16 %v898
      %v907 = vunpack.c.l.b16 %v899
      %v908 = vunpack.c.l.b16 %v900
      %v909 = vunpack.c.l.b16 %v901
      %v910 = vpack.c.b16 %v907, %v906
      %v911 = vpack.c.b16 %v909, %v908
      %912 = vrot.lane.b32.xlu0 %v741, 126
      %v913 = vpop.permute.xlu0 %912
      %914 = vrot.lane.b32.xlu0 %v742, 126
      %v915 = vpop.permute.xlu0 %914
      %916 = vrot.lane.b32.xlu0 %v743, 126
      %v917 = vpop.permute.xlu0 %916
      %918 = vrot.lane.b32.xlu0 %v744, 126
      %v919 = vpop.permute.xlu0 %918
      %v925 = vsel %vm776, %v910, 0
      %v928 = vsel %vm776, %v911, 0
      %930 = vmatprep.subr.bf16.mxu0 0
      %931 = vmatpush1.bf16.msra.mxu0 %v913
      %932 = vmatprep.subr.bf16.mxu0 0
      %933 = vmatpush1.bf16.msra.mxu0 %v915
      %934 = vmatprep.subr.bf16.mxu0 0
      %935 = vmatpush1.bf16.msra.mxu0 %v917
      %936 = vmatprep.subr.bf16.mxu0 0
      %937 = vmatpush1.bf16.msra.mxu0 %v919
      %938 = vmatprep.subr.bf16.mxu0 0
      %939 = vmatpush1.bf16.msra.mxu0 0
      %940 = vmatprep.subr.bf16.mxu0 0
      %941 = vmatpush1.bf16.msra.mxu0 0
      %942 = vmatprep.subr.bf16.mxu0 0
      %943 = vmatpush1.bf16.msra.mxu0 0
      %944 = vmatprep.subr.bf16.mxu0 0
      %945 = vmatpush1.bf16.msra.mxu0 0
      %946 = vmatprep.subr.bf16.mxu0 0
      %947 = vmatpush1.bf16.msra.mxu0 0
      %948 = vmatprep.subr.bf16.mxu0 0
      %949 = vmatpush1.bf16.msra.mxu0 0
      %950 = vmatprep.subr.bf16.mxu0 0
      %951 = vmatpush1.bf16.msra.mxu0 0
      %952 = vmatprep.subr.bf16.mxu0 0
      %953 = vmatpush1.bf16.msra.mxu0 0
      %954 = vmatprep.subr.bf16.mxu0 0
      %955 = vmatpush1.bf16.msra.mxu0 0
      %956 = vmatprep.subr.bf16.mxu0 0
      %957 = vmatpush1.bf16.msra.mxu0 0
      %958 = vmatprep.subr.bf16.mxu0 0
      %959 = vmatpush1.bf16.msra.mxu0 0
      %960 = vmatprep.subr.bf16.mxu0 0
      %961 = vmatpush1.bf16.msra.mxu0 0
      %962 = vmatprep.mubr.bf16.mxu0 0
      %963 = vmatmul.mubr.bf16.gmra.mrb[0].mxu0 %v925
      %v964 = vpop.f32.mrb[0].mxu0
      %v965 = vadd.f32 0.0, %v964
      %v966 = vpop.f32.mrb[0].mxu0
      %v967 = vpop.f32.mrb[0].mxu0
      %v968 = vadd.f32 0.0, %v967
      %v969 = vpop.f32.mrb[0].mxu0
      %970 = vmatprep.mubr.bf16.mxu0 0
      %971 = vmatmul.mubr.bf16.gmra.mrb[0].mxu0 %v928
      %v972 = vpop.f32.mrb[0].mxu0
      %v973 = vadd.f32 0.0, %v972
      %v974 = vpop.f32.mrb[0].mxu0
      %v975 = vpop.f32.mrb[0].mxu0
      %v976 = vadd.f32 0.0, %v975
      %v977 = vpop.f32.mrb[0].mxu0
      %978 = vdwg.mxu0
      %v979 = vadd.f32 %v883, %v965
      %v980 = vadd.f32 %v886, %v968
      %v981 = vadd.f32 %v891, %v973
      %v982 = vadd.f32 %v894, %v976
      %s983 = scalar_lea.vmem %s305, 48
      %v984 = vld [vmem:[%s983] sm:$0xf]
      %v985 = vld [vmem:[%s983 + $0x4] sm:$0xf]
      %v986 = vld [vmem:[%s983 + $0x8] sm:$0xf]
      %v987 = vld [vmem:[%s983 + $0xc] sm:$0x7]
      %v992 = vunpack.c.l.b16 %v984
      %v993 = vunpack.c.l.b16 %v985
      %v994 = vunpack.c.l.b16 %v986
      %v995 = vunpack.c.l.b16 %v987
      %v996 = vpack.c.b16 %v993, %v992
      %v997 = vpack.c.b16 %v995, %v994
      %998 = vrot.lane.b32.xlu0 %v741, 125
      %v999 = vpop.permute.xlu0 %998
      %1000 = vrot.lane.b32.xlu0 %v742, 125
      %v1001 = vpop.permute.xlu0 %1000
      %1002 = vrot.lane.b32.xlu0 %v743, 125
      %v1003 = vpop.permute.xlu0 %1002
      %1004 = vrot.lane.b32.xlu0 %v744, 125
      %v1005 = vpop.permute.xlu0 %1004
      %v1011 = vsel %vm776, %v996, 0
      %v1014 = vsel %vm776, %v997, 0
      %1016 = vmatprep.subr.bf16.mxu0 0
      %1017 = vmatpush1.bf16.msra.mxu0 %v999
      %1018 = vmatprep.subr.bf16.mxu0 0
      %1019 = vmatpush1.bf16.msra.mxu0 %v1001
      %1020 = vmatprep.subr.bf16.mxu0 0
      %1021 = vmatpush1.bf16.msra.mxu0 %v1003
      %1022 = vmatprep.subr.bf16.mxu0 0
      %1023 = vmatpush1.bf16.msra.mxu0 %v1005
      %1024 = vmatprep.subr.bf16.mxu0 0
      %1025 = vmatpush1.bf16.msra.mxu0 0
      %1026 = vmatprep.subr.bf16.mxu0 0
      %1027 = vmatpush1.bf16.msra.mxu0 0
      %1028 = vmatprep.subr.bf16.mxu0 0
      %1029 = vmatpush1.bf16.msra.mxu0 0
      %1030 = vmatprep.subr.bf16.mxu0 0
      %1031 = vmatpush1.bf16.msra.mxu0 0
      %1032 = vmatprep.subr.bf16.mxu0 0
      %1033 = vmatpush1.bf16.msra.mxu0 0
      %1034 = vmatprep.subr.bf16.mxu0 0
      %1035 = vmatpush1.bf16.msra.mxu0 0
      %1036 = vmatprep.subr.bf16.mxu0 0
      %1037 = vmatpush1.bf16.msra.mxu0 0
      %1038 = vmatprep.subr.bf16.mxu0 0
      %1039 = vmatpush1.bf16.msra.mxu0 0
      %1040 = vmatprep.subr.bf16.mxu0 0
      %1041 = vmatpush1.bf16.msra.mxu0 0
      %1042 = vmatprep.subr.bf16.mxu0 0
      %1043 = vmatpush1.bf16.msra.mxu0 0
      %1044 = vmatprep.subr.bf16.mxu0 0
      %1045 = vmatpush1.bf16.msra.mxu0 0
      %1046 = vmatprep.subr.bf16.mxu0 0
      %1047 = vmatpush1.bf16.msra.mxu0 0
      %1048 = vmatprep.mubr.bf16.mxu0 0
      %1049 = vmatmul.mubr.bf16.gmra.mrb[0].mxu0 %v1011
      %v1050 = vpop.f32.mrb[0].mxu0
      %v1051 = vadd.f32 0.0, %v1050
      %v1052 = vpop.f32.mrb[0].mxu0
      %v1053 = vpop.f32.mrb[0].mxu0
      %v1054 = vadd.f32 0.0, %v1053
      %v1055 = vpop.f32.mrb[0].mxu0
      %1056 = vmatprep.mubr.bf16.mxu0 0
      %1057 = vmatmul.mubr.bf16.gmra.mrb[0].mxu0 %v1014
      %v1058 = vpop.f32.mrb[0].mxu0
      %v1059 = vadd.f32 0.0, %v1058
      %v1060 = vpop.f32.mrb[0].mxu0
      %v1061 = vpop.f32.mrb[0].mxu0
      %v1062 = vadd.f32 0.0, %v1061
      %v1063 = vpop.f32.mrb[0].mxu0
      %1064 = vdwg.mxu0
      %v1065 = vadd.f32 %v979, %v1051
      %v1066 = vadd.f32 %v980, %v1054
      %v1067 = vadd.f32 %v981, %v1059
      %v1068 = vadd.f32 %v982, %v1062
      %s1069 = scalar_lea.vmem %s305, 64
      %v1070 = vld [vmem:[%s1069] sm:$0xf]
      %v1071 = vld [vmem:[%s1069 + $0x4] sm:$0xf]
      %v1072 = vld [vmem:[%s1069 + $0x8] sm:$0xf]
      %v1073 = vld [vmem:[%s1069 + $0xc] sm:$0x7]
      %v1078 = vunpack.c.l.b16 %v1070
      %v1079 = vunpack.c.l.b16 %v1071
      %v1080 = vunpack.c.l.b16 %v1072
      %v1081 = vunpack.c.l.b16 %v1073
      %v1082 = vpack.c.b16 %v1079, %v1078
      %v1083 = vpack.c.b16 %v1081, %v1080
      %1084 = vrot.lane.b32.xlu0 %v741, 118
      %v1085 = vpop.permute.xlu0 %1084
      %1086 = vrot.lane.b32.xlu0 %v742, 118
      %v1087 = vpop.permute.xlu0 %1086
      %1088 = vrot.lane.b32.xlu0 %v743, 118
      %v1089 = vpop.permute.xlu0 %1088
      %1090 = vrot.lane.b32.xlu0 %v744, 118
      %v1091 = vpop.permute.xlu0 %1090
      %v1097 = vsel %vm776, %v1082, 0
      %v1100 = vsel %vm776, %v1083, 0
      %1102 = vmatprep.subr.bf16.mxu0 0
      %1103 = vmatpush1.bf16.msra.mxu0 %v1085
      %1104 = vmatprep.subr.bf16.mxu0 0
      %1105 = vmatpush1.bf16.msra.mxu0 %v1087
      %1106 = vmatprep.subr.bf16.mxu0 0
      %1107 = vmatpush1.bf16.msra.mxu0 %v1089
      %1108 = vmatprep.subr.bf16.mxu0 0
      %1109 = vmatpush1.bf16.msra.mxu0 %v1091
      %1110 = vmatprep.subr.bf16.mxu0 0
      %1111 = vmatpush1.bf16.msra.mxu0 0
      %1112 = vmatprep.subr.bf16.mxu0 0
      %1113 = vmatpush1.bf16.msra.mxu0 0
      %1114 = vmatprep.subr.bf16.mxu0 0
      %1115 = vmatpush1.bf16.msra.mxu0 0
      %1116 = vmatprep.subr.bf16.mxu0 0
      %1117 = vmatpush1.bf16.msra.mxu0 0
      %1118 = vmatprep.subr.bf16.mxu0 0
      %1119 = vmatpush1.bf16.msra.mxu0 0
      %1120 = vmatprep.subr.bf16.mxu0 0
      %1121 = vmatpush1.bf16.msra.mxu0 0
      %1122 = vmatprep.subr.bf16.mxu0 0
      %1123 = vmatpush1.bf16.msra.mxu0 0
      %1124 = vmatprep.subr.bf16.mxu0 0
      %1125 = vmatpush1.bf16.msra.mxu0 0
      %1126 = vmatprep.subr.bf16.mxu0 0
      %1127 = vmatpush1.bf16.msra.mxu0 0
      %1128 = vmatprep.subr.bf16.mxu0 0
      %1129 = vmatpush1.bf16.msra.mxu0 0
      %1130 = vmatprep.subr.bf16.mxu0 0
      %1131 = vmatpush1.bf16.msra.mxu0 0
      %1132 = vmatprep.subr.bf16.mxu0 0
      %1133 = vmatpush1.bf16.msra.mxu0 0
      %1134 = vmatprep.mubr.bf16.mxu0 0
      %1135 = vmatmul.mubr.bf16.gmra.mrb[0].mxu0 %v1097
      %v1136 = vpop.f32.mrb[0].mxu0
      %v1137 = vadd.f32 0.0, %v1136
      %v1138 = vpop.f32.mrb[0].mxu0
      %v1139 = vpop.f32.mrb[0].mxu0
      %v1140 = vadd.f32 0.0, %v1139
      %v1141 = vpop.f32.mrb[0].mxu0
      %1142 = vmatprep.mubr.bf16.mxu0 0
      %1143 = vmatmul.mubr.bf16.gmra.mrb[0].mxu0 %v1100
      %v1144 = vpop.f32.mrb[0].mxu0
      %v1145 = vadd.f32 0.0, %v1144
      %v1146 = vpop.f32.mrb[0].mxu0
      %v1147 = vpop.f32.mrb[0].mxu0
      %v1148 = vadd.f32 0.0, %v1147
      %v1149 = vpop.f32.mrb[0].mxu0
      %1150 = vdwg.mxu0
      %v1151 = vadd.f32 %v1065, %v1137
      %v1152 = vadd.f32 %v1066, %v1140
      %v1153 = vadd.f32 %v1067, %v1145
      %v1154 = vadd.f32 %v1068, %v1148
      %s1155 = scalar_lea.vmem %s305, 80
      %v1156 = vld [vmem:[%s1155] sm:$0xf]
      %v1157 = vld [vmem:[%s1155 + $0x4] sm:$0xf]
      %v1158 = vld [vmem:[%s1155 + $0x8] sm:$0xf]
      %v1159 = vld [vmem:[%s1155 + $0xc] sm:$0x7]
      %v1164 = vunpack.c.l.b16 %v1156
      %v1165 = vunpack.c.l.b16 %v1157
      %v1166 = vunpack.c.l.b16 %v1158
      %v1167 = vunpack.c.l.b16 %v1159
      %v1168 = vpack.c.b16 %v1165, %v1164
      %v1169 = vpack.c.b16 %v1167, %v1166
      %1170 = vrot.lane.b32.xlu0 %v741, 117
      %v1171 = vpop.permute.xlu0 %1170
      %1172 = vrot.lane.b32.xlu0 %v742, 117
      %v1173 = vpop.permute.xlu0 %1172
      %1174 = vrot.lane.b32.xlu0 %v743, 117
      %v1175 = vpop.permute.xlu0 %1174
      %1176 = vrot.lane.b32.xlu0 %v744, 117
      %v1177 = vpop.permute.xlu0 %1176
      %v1183 = vsel %vm776, %v1168, 0
      %v1186 = vsel %vm776, %v1169, 0
      %1188 = vmatprep.subr.bf16.mxu0 0
      %1189 = vmatpush1.bf16.msra.mxu0 %v1171
      %1190 = vmatprep.subr.bf16.mxu0 0
      %1191 = vmatpush1.bf16.msra.mxu0 %v1173
      %1192 = vmatprep.subr.bf16.mxu0 0
      %1193 = vmatpush1.bf16.msra.mxu0 %v1175
      %1194 = vmatprep.subr.bf16.mxu0 0
      %1195 = vmatpush1.bf16.msra.mxu0 %v1177
      %1196 = vmatprep.subr.bf16.mxu0 0
      %1197 = vmatpush1.bf16.msra.mxu0 0
      %1198 = vmatprep.subr.bf16.mxu0 0
      %1199 = vmatpush1.bf16.msra.mxu0 0
      %1200 = vmatprep.subr.bf16.mxu0 0
      %1201 = vmatpush1.bf16.msra.mxu0 0
      %1202 = vmatprep.subr.bf16.mxu0 0
      %1203 = vmatpush1.bf16.msra.mxu0 0
      %1204 = vmatprep.subr.bf16.mxu0 0
      %1205 = vmatpush1.bf16.msra.mxu0 0
      %1206 = vmatprep.subr.bf16.mxu0 0
      %1207 = vmatpush1.bf16.msra.mxu0 0
      %1208 = vmatprep.subr.bf16.mxu0 0
      %1209 = vmatpush1.bf16.msra.mxu0 0
      %1210 = vmatprep.subr.bf16.mxu0 0
      %1211 = vmatpush1.bf16.msra.mxu0 0
      %1212 = vmatprep.subr.bf16.mxu0 0
      %1213 = vmatpush1.bf16.msra.mxu0 0
      %1214 = vmatprep.subr.bf16.mxu0 0
      %1215 = vmatpush1.bf16.msra.mxu0 0
      %1216 = vmatprep.subr.bf16.mxu0 0
      %1217 = vmatpush1.bf16.msra.mxu0 0
      %1218 = vmatprep.subr.bf16.mxu0 0
      %1219 = vmatpush1.bf16.msra.mxu0 0
      %1220 = vmatprep.mubr.bf16.mxu0 0
      %1221 = vmatmul.mubr.bf16.gmra.mrb[0].mxu0 %v1183
      %v1222 = vpop.f32.mrb[0].mxu0
      %v1223 = vadd.f32 0.0, %v1222
      %v1224 = vpop.f32.mrb[0].mxu0
      %v1225 = vpop.f32.mrb[0].mxu0
      %v1226 = vadd.f32 0.0, %v1225
      %v1227 = vpop.f32.mrb[0].mxu0
      %1228 = vmatprep.mubr.bf16.mxu0 0
      %1229 = vmatmul.mubr.bf16.gmra.mrb[0].mxu0 %v1186
      %v1230 = vpop.f32.mrb[0].mxu0
      %v1231 = vadd.f32 0.0, %v1230
      %v1232 = vpop.f32.mrb[0].mxu0
      %v1233 = vpop.f32.mrb[0].mxu0
      %v1234 = vadd.f32 0.0, %v1233
      %v1235 = vpop.f32.mrb[0].mxu0
      %1236 = vdwg.mxu0
      %v1237 = vadd.f32 %v1151, %v1223
      %v1238 = vadd.f32 %v1152, %v1226
      %v1239 = vadd.f32 %v1153, %v1231
      %v1240 = vadd.f32 %v1154, %v1234
      %s1241 = scalar_lea.vmem %s305, 96
      %v1242 = vld [vmem:[%s1241] sm:$0xf]
      %v1243 = vld [vmem:[%s1241 + $0x4] sm:$0xf]
      %v1244 = vld [vmem:[%s1241 + $0x8] sm:$0xf]
      %v1245 = vld [vmem:[%s1241 + $0xc] sm:$0x7]
      %v1250 = vunpack.c.l.b16 %v1242
      %v1251 = vunpack.c.l.b16 %v1243
      %v1252 = vunpack.c.l.b16 %v1244
      %v1253 = vunpack.c.l.b16 %v1245
      %v1254 = vpack.c.b16 %v1251, %v1250
      %v1255 = vpack.c.b16 %v1253, %v1252
      %1256 = vrot.lane.b32.xlu0 %v741, 116
      %v1257 = vpop.permute.xlu0 %1256
      %1258 = vrot.lane.b32.xlu0 %v742, 116
      %v1259 = vpop.permute.xlu0 %1258
      %1260 = vrot.lane.b32.xlu0 %v743, 116
      %v1261 = vpop.permute.xlu0 %1260
      %1262 = vrot.lane.b32.xlu0 %v744, 116
      %v1263 = vpop.permute.xlu0 %1262
      %v1269 = vsel %vm776, %v1254, 0
      %v1272 = vsel %vm776, %v1255, 0
      %1274 = vmatprep.subr.bf16.mxu0 0
      %1275 = vmatpush1.bf16.msra.mxu0 %v1257
      %1276 = vmatprep.subr.bf16.mxu0 0
      %1277 = vmatpush1.bf16.msra.mxu0 %v1259
      %1278 = vmatprep.subr.bf16.mxu0 0
      %1279 = vmatpush1.bf16.msra.mxu0 %v1261
      %1280 = vmatprep.subr.bf16.mxu0 0
      %1281 = vmatpush1.bf16.msra.mxu0 %v1263
      %1282 = vmatprep.subr.bf16.mxu0 0
      %1283 = vmatpush1.bf16.msra.mxu0 0
      %1284 = vmatprep.subr.bf16.mxu0 0
      %1285 = vmatpush1.bf16.msra.mxu0 0
      %1286 = vmatprep.subr.bf16.mxu0 0
      %1287 = vmatpush1.bf16.msra.mxu0 0
      %1288 = vmatprep.subr.bf16.mxu0 0
      %1289 = vmatpush1.bf16.msra.mxu0 0
      %1290 = vmatprep.subr.bf16.mxu0 0
      %1291 = vmatpush1.bf16.msra.mxu0 0
      %1292 = vmatprep.subr.bf16.mxu0 0
      %1293 = vmatpush1.bf16.msra.mxu0 0
      %1294 = vmatprep.subr.bf16.mxu0 0
      %1295 = vmatpush1.bf16.msra.mxu0 0
      %1296 = vmatprep.subr.bf16.mxu0 0
      %1297 = vmatpush1.bf16.msra.mxu0 0
      %1298 = vmatprep.subr.bf16.mxu0 0
      %1299 = vmatpush1.bf16.msra.mxu0 0
      %1300 = vmatprep.subr.bf16.mxu0 0
      %1301 = vmatpush1.bf16.msra.mxu0 0
      %1302 = vmatprep.subr.bf16.mxu0 0
      %1303 = vmatpush1.bf16.msra.mxu0 0
      %1304 = vmatprep.subr.bf16.mxu0 0
      %1305 = vmatpush1.bf16.msra.mxu0 0
      %1306 = vmatprep.mubr.bf16.mxu0 0
      %1307 = vmatmul.mubr.bf16.gmra.mrb[0].mxu0 %v1269
      %v1308 = vpop.f32.mrb[0].mxu0
      %v1309 = vadd.f32 0.0, %v1308
      %v1310 = vpop.f32.mrb[0].mxu0
      %v1311 = vpop.f32.mrb[0].mxu0
      %v1312 = vadd.f32 0.0, %v1311
      %v1313 = vpop.f32.mrb[0].mxu0
      %1314 = vmatprep.mubr.bf16.mxu0 0
      %1315 = vmatmul.mubr.bf16.gmra.mrb[0].mxu0 %v1272
      %v1316 = vpop.f32.mrb[0].mxu0
      %v1317 = vadd.f32 0.0, %v1316
      %v1318 = vpop.f32.mrb[0].mxu0
      %v1319 = vpop.f32.mrb[0].mxu0
      %v1320 = vadd.f32 0.0, %v1319
      %v1321 = vpop.f32.mrb[0].mxu0
      %1322 = vdwg.mxu0
      %v1323 = vadd.f32 %v1237, %v1309
      %v1324 = vadd.f32 %v1238, %v1312
      %v1325 = vadd.f32 %v1239, %v1317
      %v1326 = vadd.f32 %v1240, %v1320
      %s1327 = scalar_lea.vmem %s305, 112
      %v1328 = vld [vmem:[%s1327] sm:$0xf]
      %v1329 = vld [vmem:[%s1327 + $0x4] sm:$0xf]
      %v1330 = vld [vmem:[%s1327 + $0x8] sm:$0xf]
      %v1331 = vld [vmem:[%s1327 + $0xc] sm:$0x7]
      %v1336 = vunpack.c.l.b16 %v1328
      %v1337 = vunpack.c.l.b16 %v1329
      %v1338 = vunpack.c.l.b16 %v1330
      %v1339 = vunpack.c.l.b16 %v1331
      %v1340 = vpack.c.b16 %v1337, %v1336
      %v1341 = vpack.c.b16 %v1339, %v1338
      %1342 = vrot.lane.b32.xlu0 %v741, 115
      %v1343 = vpop.permute.xlu0 %1342
      %1344 = vrot.lane.b32.xlu0 %v742, 115
      %v1345 = vpop.permute.xlu0 %1344
      %1346 = vrot.lane.b32.xlu0 %v743, 115
      %v1347 = vpop.permute.xlu0 %1346
      %1348 = vrot.lane.b32.xlu0 %v744, 115
      %v1349 = vpop.permute.xlu0 %1348
      %v1355 = vsel %vm776, %v1340, 0
      %v1358 = vsel %vm776, %v1341, 0
      %1360 = vmatprep.subr.bf16.mxu0 0
      %1361 = vmatpush1.bf16.msra.mxu0 %v1343
      %1362 = vmatprep.subr.bf16.mxu0 0
      %1363 = vmatpush1.bf16.msra.mxu0 %v1345
      %1364 = vmatprep.subr.bf16.mxu0 0
      %1365 = vmatpush1.bf16.msra.mxu0 %v1347
      %1366 = vmatprep.subr.bf16.mxu0 0
      %1367 = vmatpush1.bf16.msra.mxu0 %v1349
      %1368 = vmatprep.subr.bf16.mxu0 0
      %1369 = vmatpush1.bf16.msra.mxu0 0
      %1370 = vmatprep.subr.bf16.mxu0 0
      %1371 = vmatpush1.bf16.msra.mxu0 0
      %1372 = vmatprep.subr.bf16.mxu0 0
      %1373 = vmatpush1.bf16.msra.mxu0 0
      %1374 = vmatprep.subr.bf16.mxu0 0
      %1375 = vmatpush1.bf16.msra.mxu0 0
      %1376 = vmatprep.subr.bf16.mxu0 0
      %1377 = vmatpush1.bf16.msra.mxu0 0
      %1378 = vmatprep.subr.bf16.mxu0 0
      %1379 = vmatpush1.bf16.msra.mxu0 0
      %1380 = vmatprep.subr.bf16.mxu0 0
      %1381 = vmatpush1.bf16.msra.mxu0 0
      %1382 = vmatprep.subr.bf16.mxu0 0
      %1383 = vmatpush1.bf16.msra.mxu0 0
      %1384 = vmatprep.subr.bf16.mxu0 0
      %1385 = vmatpush1.bf16.msra.mxu0 0
      %1386 = vmatprep.subr.bf16.mxu0 0
      %1387 = vmatpush1.bf16.msra.mxu0 0
      %1388 = vmatprep.subr.bf16.mxu0 0
      %1389 = vmatpush1.bf16.msra.mxu0 0
      %1390 = vmatprep.subr.bf16.mxu0 0
      %1391 = vmatpush1.bf16.msra.mxu0 0
      %1392 = vmatprep.mubr.bf16.mxu0 0
      %1393 = vmatmul.mubr.bf16.gmra.mrb[0].mxu0 %v1355
      %v1394 = vpop.f32.mrb[0].mxu0
      %v1395 = vadd.f32 0.0, %v1394
      %v1396 = vpop.f32.mrb[0].mxu0
      %v1397 = vpop.f32.mrb[0].mxu0
      %v1398 = vadd.f32 0.0, %v1397
      %v1399 = vpop.f32.mrb[0].mxu0
      %1400 = vmatprep.mubr.bf16.mxu0 0
      %1401 = vmatmul.mubr.bf16.gmra.mrb[0].mxu0 %v1358
      %v1402 = vpop.f32.mrb[0].mxu0
      %v1403 = vadd.f32 0.0, %v1402
      %v1404 = vpop.f32.mrb[0].mxu0
      %v1405 = vpop.f32.mrb[0].mxu0
      %v1406 = vadd.f32 0.0, %v1405
      %v1407 = vpop.f32.mrb[0].mxu0
      %1408 = vdwg.mxu0
      %v1409 = vadd.f32 %v1323, %v1395
      %v1410 = vadd.f32 %v1324, %v1398
      %v1411 = vadd.f32 %v1325, %v1403
      %v1412 = vadd.f32 %v1326, %v1406
      %s1413 = scalar_lea.vmem %s305, 128
      %v1414 = vld [vmem:[%s1413] sm:$0xf]
      %v1415 = vld [vmem:[%s1413 + $0x4] sm:$0xf]
      %v1416 = vld [vmem:[%s1413 + $0x8] sm:$0xf]
      %v1417 = vld [vmem:[%s1413 + $0xc] sm:$0x7]
      %v1422 = vunpack.c.l.b16 %v1414
      %v1423 = vunpack.c.l.b16 %v1415
      %v1424 = vunpack.c.l.b16 %v1416
      %v1425 = vunpack.c.l.b16 %v1417
      %v1426 = vpack.c.b16 %v1423, %v1422
      %v1427 = vpack.c.b16 %v1425, %v1424
      %1428 = vrot.lane.b32.xlu0 %v741, 108
      %v1429 = vpop.permute.xlu0 %1428
      %1430 = vrot.lane.b32.xlu0 %v742, 108
      %v1431 = vpop.permute.xlu0 %1430
      %1432 = vrot.lane.b32.xlu0 %v743, 108
      %v1433 = vpop.permute.xlu0 %1432
      %1434 = vrot.lane.b32.xlu0 %v744, 108
      %v1435 = vpop.permute.xlu0 %1434
      %v1441 = vsel %vm776, %v1426, 0
      %v1444 = vsel %vm776, %v1427, 0
      %1446 = vmatprep.subr.bf16.mxu0 0
      %1447 = vmatpush1.bf16.msra.mxu0 %v1429
      %1448 = vmatprep.subr.bf16.mxu0 0
      %1449 = vmatpush1.bf16.msra.mxu0 %v1431
      %1450 = vmatprep.subr.bf16.mxu0 0
      %1451 = vmatpush1.bf16.msra.mxu0 %v1433
      %1452 = vmatprep.subr.bf16.mxu0 0
      %1453 = vmatpush1.bf16.msra.mxu0 %v1435
      %1454 = vmatprep.subr.bf16.mxu0 0
      %1455 = vmatpush1.bf16.msra.mxu0 0
      %1456 = vmatprep.subr.bf16.mxu0 0
      %1457 = vmatpush1.bf16.msra.mxu0 0
      %1458 = vmatprep.subr.bf16.mxu0 0
      %1459 = vmatpush1.bf16.msra.mxu0 0
      %1460 = vmatprep.subr.bf16.mxu0 0
      %1461 = vmatpush1.bf16.msra.mxu0 0
      %1462 = vmatprep.subr.bf16.mxu0 0
      %1463 = vmatpush1.bf16.msra.mxu0 0
      %1464 = vmatprep.subr.bf16.mxu0 0
      %1465 = vmatpush1.bf16.msra.mxu0 0
      %1466 = vmatprep.subr.bf16.mxu0 0
      %1467 = vmatpush1.bf16.msra.mxu0 0
      %1468 = vmatprep.subr.bf16.mxu0 0
      %1469 = vmatpush1.bf16.msra.mxu0 0
      %1470 = vmatprep.subr.bf16.mxu0 0
      %1471 = vmatpush1.bf16.msra.mxu0 0
      %1472 = vmatprep.subr.bf16.mxu0 0
      %1473 = vmatpush1.bf16.msra.mxu0 0
      %1474 = vmatprep.subr.bf16.mxu0 0
      %1475 = vmatpush1.bf16.msra.mxu0 0
      %1476 = vmatprep.subr.bf16.mxu0 0
      %1477 = vmatpush1.bf16.msra.mxu0 0
      %1478 = vmatprep.mubr.bf16.mxu0 0
      %1479 = vmatmul.mubr.bf16.gmra.mrb[0].mxu0 %v1441
      %v1480 = vpop.f32.mrb[0].mxu0
      %v1481 = vadd.f32 0.0, %v1480
      %v1482 = vpop.f32.mrb[0].mxu0
      %v1483 = vpop.f32.mrb[0].mxu0
      %v1484 = vadd.f32 0.0, %v1483
      %v1485 = vpop.f32.mrb[0].mxu0
      %1486 = vmatprep.mubr.bf16.mxu0 0
      %1487 = vmatmul.mubr.bf16.gmra.mrb[0].mxu0 %v1444
      %v1488 = vpop.f32.mrb[0].mxu0
      %v1489 = vadd.f32 0.0, %v1488
      %v1490 = vpop.f32.mrb[0].mxu0
      %v1491 = vpop.f32.mrb[0].mxu0
      %v1492 = vadd.f32 0.0, %v1491
      %v1493 = vpop.f32.mrb[0].mxu0
      %1494 = vdwg.mxu0
      %v1495 = vadd.f32 %v1409, %v1481
      %v1496 = vadd.f32 %v1410, %v1484
      %v1497 = vadd.f32 %v1411, %v1489
      %v1498 = vadd.f32 %v1412, %v1492
      %s1499 = scalar_lea.vmem %s305, 144
      %v1500 = vld [vmem:[%s1499] sm:$0xf]
      %v1501 = vld [vmem:[%s1499 + $0x4] sm:$0xf]
      %v1502 = vld [vmem:[%s1499 + $0x8] sm:$0xf]
      %v1503 = vld [vmem:[%s1499 + $0xc] sm:$0x7]
      %v1508 = vunpack.c.l.b16 %v1500
      %v1509 = vunpack.c.l.b16 %v1501
      %v1510 = vunpack.c.l.b16 %v1502
      %v1511 = vunpack.c.l.b16 %v1503
      %v1512 = vpack.c.b16 %v1509, %v1508
      %v1513 = vpack.c.b16 %v1511, %v1510
      %1514 = vrot.lane.b32.xlu0 %v741, 107
      %v1515 = vpop.permute.xlu0 %1514
      %1516 = vrot.lane.b32.xlu0 %v742, 107
      %v1517 = vpop.permute.xlu0 %1516
      %1518 = vrot.lane.b32.xlu0 %v743, 107
      %v1519 = vpop.permute.xlu0 %1518
      %1520 = vrot.lane.b32.xlu0 %v744, 107
      %v1521 = vpop.permute.xlu0 %1520
      %v1527 = vsel %vm776, %v1512, 0
      %v1530 = vsel %vm776, %v1513, 0
      %1532 = vmatprep.subr.bf16.mxu0 0
      %1533 = vmatpush1.bf16.msra.mxu0 %v1515
      %1534 = vmatprep.subr.bf16.mxu0 0
      %1535 = vmatpush1.bf16.msra.mxu0 %v1517
      %1536 = vmatprep.subr.bf16.mxu0 0
      %1537 = vmatpush1.bf16.msra.mxu0 %v1519
      %1538 = vmatprep.subr.bf16.mxu0 0
      %1539 = vmatpush1.bf16.msra.mxu0 %v1521
      %1540 = vmatprep.subr.bf16.mxu0 0
      %1541 = vmatpush1.bf16.msra.mxu0 0
      %1542 = vmatprep.subr.bf16.mxu0 0
      %1543 = vmatpush1.bf16.msra.mxu0 0
      %1544 = vmatprep.subr.bf16.mxu0 0
      %1545 = vmatpush1.bf16.msra.mxu0 0
      %1546 = vmatprep.subr.bf16.mxu0 0
      %1547 = vmatpush1.bf16.msra.mxu0 0
      %1548 = vmatprep.subr.bf16.mxu0 0
      %1549 = vmatpush1.bf16.msra.mxu0 0
      %1550 = vmatprep.subr.bf16.mxu0 0
      %1551 = vmatpush1.bf16.msra.mxu0 0
      %1552 = vmatprep.subr.bf16.mxu0 0
      %1553 = vmatpush1.bf16.msra.mxu0 0
      %1554 = vmatprep.subr.bf16.mxu0 0
      %1555 = vmatpush1.bf16.msra.mxu0 0
      %1556 = vmatprep.subr.bf16.mxu0 0
      %1557 = vmatpush1.bf16.msra.mxu0 0
      %1558 = vmatprep.subr.bf16.mxu0 0
      %1559 = vmatpush1.bf16.msra.mxu0 0
      %1560 = vmatprep.subr.bf16.mxu0 0
      %1561 = vmatpush1.bf16.msra.mxu0 0
      %1562 = vmatprep.subr.bf16.mxu0 0
      %1563 = vmatpush1.bf16.msra.mxu0 0
      %1564 = vmatprep.mubr.bf16.mxu0 0
      %1565 = vmatmul.mubr.bf16.gmra.mrb[0].mxu0 %v1527
      %v1566 = vpop.f32.mrb[0].mxu0
      %v1567 = vadd.f32 0.0, %v1566
      %v1568 = vpop.f32.mrb[0].mxu0
      %v1569 = vpop.f32.mrb[0].mxu0
      %v1570 = vadd.f32 0.0, %v1569
      %v1571 = vpop.f32.mrb[0].mxu0
      %1572 = vmatprep.mubr.bf16.mxu0 0
      %1573 = vmatmul.mubr.bf16.gmra.mrb[0].mxu0 %v1530
      %v1574 = vpop.f32.mrb[0].mxu0
      %v1575 = vadd.f32 0.0, %v1574
      %v1576 = vpop.f32.mrb[0].mxu0
      %v1577 = vpop.f32.mrb[0].mxu0
      %v1578 = vadd.f32 0.0, %v1577
      %v1579 = vpop.f32.mrb[0].mxu0
      %1580 = vdwg.mxu0
      %v1581 = vadd.f32 %v1495, %v1567
      %v1582 = vadd.f32 %v1496, %v1570
      %v1583 = vadd.f32 %v1497, %v1575
      %v1584 = vadd.f32 %v1498, %v1578
      %s1585 = scalar_lea.vmem %s305, 160
      %v1586 = vld [vmem:[%s1585] sm:$0xf]
      %v1587 = vld [vmem:[%s1585 + $0x4] sm:$0xf]
      %v1588 = vld [vmem:[%s1585 + $0x8] sm:$0xf]
      %v1589 = vld [vmem:[%s1585 + $0xc] sm:$0x7]
      %v1594 = vunpack.c.l.b16 %v1586
      %v1595 = vunpack.c.l.b16 %v1587
      %v1596 = vunpack.c.l.b16 %v1588
      %v1597 = vunpack.c.l.b16 %v1589
      %v1598 = vpack.c.b16 %v1595, %v1594
      %v1599 = vpack.c.b16 %v1597, %v1596
      %1600 = vrot.lane.b32.xlu0 %v741, 106
      %v1601 = vpop.permute.xlu0 %1600
      %1602 = vrot.lane.b32.xlu0 %v742, 106
      %v1603 = vpop.permute.xlu0 %1602
      %1604 = vrot.lane.b32.xlu0 %v743, 106
      %v1605 = vpop.permute.xlu0 %1604
      %1606 = vrot.lane.b32.xlu0 %v744, 106
      %v1607 = vpop.permute.xlu0 %1606
      %v1613 = vsel %vm776, %v1598, 0
      %v1616 = vsel %vm776, %v1599, 0
      %1618 = vmatprep.subr.bf16.mxu0 0
      %1619 = vmatpush1.bf16.msra.mxu0 %v1601
      %1620 = vmatprep.subr.bf16.mxu0 0
      %1621 = vmatpush1.bf16.msra.mxu0 %v1603
      %1622 = vmatprep.subr.bf16.mxu0 0
      %1623 = vmatpush1.bf16.msra.mxu0 %v1605
      %1624 = vmatprep.subr.bf16.mxu0 0
      %1625 = vmatpush1.bf16.msra.mxu0 %v1607
      %1626 = vmatprep.subr.bf16.mxu0 0
      %1627 = vmatpush1.bf16.msra.mxu0 0
      %1628 = vmatprep.subr.bf16.mxu0 0
      %1629 = vmatpush1.bf16.msra.mxu0 0
      %1630 = vmatprep.subr.bf16.mxu0 0
      %1631 = vmatpush1.bf16.msra.mxu0 0
      %1632 = vmatprep.subr.bf16.mxu0 0
      %1633 = vmatpush1.bf16.msra.mxu0 0
      %1634 = vmatprep.subr.bf16.mxu0 0
      %1635 = vmatpush1.bf16.msra.mxu0 0
      %1636 = vmatprep.subr.bf16.mxu0 0
      %1637 = vmatpush1.bf16.msra.mxu0 0
      %1638 = vmatprep.subr.bf16.mxu0 0
      %1639 = vmatpush1.bf16.msra.mxu0 0
      %1640 = vmatprep.subr.bf16.mxu0 0
      %1641 = vmatpush1.bf16.msra.mxu0 0
      %1642 = vmatprep.subr.bf16.mxu0 0
      %1643 = vmatpush1.bf16.msra.mxu0 0
      %1644 = vmatprep.subr.bf16.mxu0 0
      %1645 = vmatpush1.bf16.msra.mxu0 0
      %1646 = vmatprep.subr.bf16.mxu0 0
      %1647 = vmatpush1.bf16.msra.mxu0 0
      %1648 = vmatprep.subr.bf16.mxu0 0
      %1649 = vmatpush1.bf16.msra.mxu0 0
      %1650 = vmatprep.mubr.bf16.mxu0 0
      %1651 = vmatmul.mubr.bf16.gmra.mrb[0].mxu0 %v1613
      %v1652 = vpop.f32.mrb[0].mxu0
      %v1653 = vadd.f32 0.0, %v1652
      %v1654 = vpop.f32.mrb[0].mxu0
      %v1655 = vpop.f32.mrb[0].mxu0
      %v1656 = vadd.f32 0.0, %v1655
      %v1657 = vpop.f32.mrb[0].mxu0
      %1658 = vmatprep.mubr.bf16.mxu0 0
      %1659 = vmatmul.mubr.bf16.gmra.mrb[0].mxu0 %v1616
      %v1660 = vpop.f32.mrb[0].mxu0
      %v1661 = vadd.f32 0.0, %v1660
      %v1662 = vpop.f32.mrb[0].mxu0
      %v1663 = vpop.f32.mrb[0].mxu0
      %v1664 = vadd.f32 0.0, %v1663
      %v1665 = vpop.f32.mrb[0].mxu0
      %1666 = vdwg.mxu0
      %v1667 = vadd.f32 %v1581, %v1653
      %v1668 = vadd.f32 %v1582, %v1656
      %v1669 = vadd.f32 %v1583, %v1661
      %v1670 = vadd.f32 %v1584, %v1664
      %s1671 = scalar_lea.vmem %s305, 176
      %v1672 = vld [vmem:[%s1671] sm:$0xf]
      %v1673 = vld [vmem:[%s1671 + $0x4] sm:$0xf]
      %v1674 = vld [vmem:[%s1671 + $0x8] sm:$0xf]
      %v1675 = vld [vmem:[%s1671 + $0xc] sm:$0x7]
      %v1680 = vunpack.c.l.b16 %v1672
      %v1681 = vunpack.c.l.b16 %v1673
      %v1682 = vunpack.c.l.b16 %v1674
      %v1683 = vunpack.c.l.b16 %v1675
      %v1684 = vpack.c.b16 %v1681, %v1680
      %v1685 = vpack.c.b16 %v1683, %v1682
      %1686 = vrot.lane.b32.xlu0 %v741, 105
      %v1687 = vpop.permute.xlu0 %1686
      %1688 = vrot.lane.b32.xlu0 %v742, 105
      %v1689 = vpop.permute.xlu0 %1688
      %1690 = vrot.lane.b32.xlu0 %v743, 105
      %v1691 = vpop.permute.xlu0 %1690
      %1692 = vrot.lane.b32.xlu0 %v744, 105
      %v1693 = vpop.permute.xlu0 %1692
      %v1699 = vsel %vm776, %v1684, 0
      %v1702 = vsel %vm776, %v1685, 0
      %1704 = vmatprep.subr.bf16.mxu0 0
      %1705 = vmatpush1.bf16.msra.mxu0 %v1687
      %1706 = vmatprep.subr.bf16.mxu0 0
      %1707 = vmatpush1.bf16.msra.mxu0 %v1689
      %1708 = vmatprep.subr.bf16.mxu0 0
      %1709 = vmatpush1.bf16.msra.mxu0 %v1691
      %1710 = vmatprep.subr.bf16.mxu0 0
      %1711 = vmatpush1.bf16.msra.mxu0 %v1693
      %1712 = vmatprep.subr.bf16.mxu0 0
      %1713 = vmatpush1.bf16.msra.mxu0 0
      %1714 = vmatprep.subr.bf16.mxu0 0
      %1715 = vmatpush1.bf16.msra.mxu0 0
      %1716 = vmatprep.subr.bf16.mxu0 0
      %1717 = vmatpush1.bf16.msra.mxu0 0
      %1718 = vmatprep.subr.bf16.mxu0 0
      %1719 = vmatpush1.bf16.msra.mxu0 0
      %1720 = vmatprep.subr.bf16.mxu0 0
      %1721 = vmatpush1.bf16.msra.mxu0 0
      %1722 = vmatprep.subr.bf16.mxu0 0
      %1723 = vmatpush1.bf16.msra.mxu0 0
      %1724 = vmatprep.subr.bf16.mxu0 0
      %1725 = vmatpush1.bf16.msra.mxu0 0
      %1726 = vmatprep.subr.bf16.mxu0 0
      %1727 = vmatpush1.bf16.msra.mxu0 0
      %1728 = vmatprep.subr.bf16.mxu0 0
      %1729 = vmatpush1.bf16.msra.mxu0 0
      %1730 = vmatprep.subr.bf16.mxu0 0
      %1731 = vmatpush1.bf16.msra.mxu0 0
      %1732 = vmatprep.subr.bf16.mxu0 0
      %1733 = vmatpush1.bf16.msra.mxu0 0
      %1734 = vmatprep.subr.bf16.mxu0 0
      %1735 = vmatpush1.bf16.msra.mxu0 0
      %1736 = vmatprep.mubr.bf16.mxu0 0
      %1737 = vmatmul.mubr.bf16.gmra.mrb[0].mxu0 %v1699
      %v1738 = vpop.f32.mrb[0].mxu0
      %v1739 = vadd.f32 0.0, %v1738
      %v1740 = vpop.f32.mrb[0].mxu0
      %v1741 = vpop.f32.mrb[0].mxu0
      %v1742 = vadd.f32 0.0, %v1741
      %v1743 = vpop.f32.mrb[0].mxu0
      %1744 = vmatprep.mubr.bf16.mxu0 0
      %1745 = vmatmul.mubr.bf16.gmra.mrb[0].mxu0 %v1702
      %v1746 = vpop.f32.mrb[0].mxu0
      %v1747 = vadd.f32 0.0, %v1746
      %v1748 = vpop.f32.mrb[0].mxu0
      %v1749 = vpop.f32.mrb[0].mxu0
      %v1750 = vadd.f32 0.0, %v1749
      %v1751 = vpop.f32.mrb[0].mxu0
      %1752 = vdwg.mxu0
      %v1753 = vadd.f32 %v1667, %v1739
      %v1754 = vadd.f32 %v1668, %v1742
      %v1755 = vadd.f32 %v1669, %v1747
      %v1756 = vadd.f32 %v1670, %v1750
      %s1757 = scalar_lea.vmem %s305, 192
      %v1758 = vld [vmem:[%s1757] sm:$0xf]
      %v1759 = vld [vmem:[%s1757 + $0x4] sm:$0xf]
      %v1760 = vld [vmem:[%s1757 + $0x8] sm:$0xf]
      %v1761 = vld [vmem:[%s1757 + $0xc] sm:$0x7]
      %v1766 = vunpack.c.l.b16 %v1758
      %v1767 = vunpack.c.l.b16 %v1759
      %v1768 = vunpack.c.l.b16 %v1760
      %v1769 = vunpack.c.l.b16 %v1761
      %v1770 = vpack.c.b16 %v1767, %v1766
      %v1771 = vpack.c.b16 %v1769, %v1768
      %1772 = vrot.lane.b32.xlu0 %v741, 98
      %v1773 = vpop.permute.xlu0 %1772
      %1774 = vrot.lane.b32.xlu0 %v742, 98
      %v1775 = vpop.permute.xlu0 %1774
      %1776 = vrot.lane.b32.xlu0 %v743, 98
      %v1777 = vpop.permute.xlu0 %1776
      %1778 = vrot.lane.b32.xlu0 %v744, 98
      %v1779 = vpop.permute.xlu0 %1778
      %v1785 = vsel %vm776, %v1770, 0
      %v1788 = vsel %vm776, %v1771, 0
      %1790 = vmatprep.subr.bf16.mxu0 0
      %1791 = vmatpush1.bf16.msra.mxu0 %v1773
      %1792 = vmatprep.subr.bf16.mxu0 0
      %1793 = vmatpush1.bf16.msra.mxu0 %v1775
      %1794 = vmatprep.subr.bf16.mxu0 0
      %1795 = vmatpush1.bf16.msra.mxu0 %v1777
      %1796 = vmatprep.subr.bf16.mxu0 0
      %1797 = vmatpush1.bf16.msra.mxu0 %v1779
      %1798 = vmatprep.subr.bf16.mxu0 0
      %1799 = vmatpush1.bf16.msra.mxu0 0
      %1800 = vmatprep.subr.bf16.mxu0 0
      %1801 = vmatpush1.bf16.msra.mxu0 0
      %1802 = vmatprep.subr.bf16.mxu0 0
      %1803 = vmatpush1.bf16.msra.mxu0 0
      %1804 = vmatprep.subr.bf16.mxu0 0
      %1805 = vmatpush1.bf16.msra.mxu0 0
      %1806 = vmatprep.subr.bf16.mxu0 0
      %1807 = vmatpush1.bf16.msra.mxu0 0
      %1808 = vmatprep.subr.bf16.mxu0 0
      %1809 = vmatpush1.bf16.msra.mxu0 0
      %1810 = vmatprep.subr.bf16.mxu0 0
      %1811 = vmatpush1.bf16.msra.mxu0 0
      %1812 = vmatprep.subr.bf16.mxu0 0
      %1813 = vmatpush1.bf16.msra.mxu0 0
      %1814 = vmatprep.subr.bf16.mxu0 0
      %1815 = vmatpush1.bf16.msra.mxu0 0
      %1816 = vmatprep.subr.bf16.mxu0 0
      %1817 = vmatpush1.bf16.msra.mxu0 0
      %1818 = vmatprep.subr.bf16.mxu0 0
      %1819 = vmatpush1.bf16.msra.mxu0 0
      %1820 = vmatprep.subr.bf16.mxu0 0
      %1821 = vmatpush1.bf16.msra.mxu0 0
      %1822 = vmatprep.mubr.bf16.mxu0 0
      %1823 = vmatmul.mubr.bf16.gmra.mrb[0].mxu0 %v1785
      %v1824 = vpop.f32.mrb[0].mxu0
      %v1825 = vadd.f32 0.0, %v1824
      %v1826 = vpop.f32.mrb[0].mxu0
      %v1827 = vpop.f32.mrb[0].mxu0
      %v1828 = vadd.f32 0.0, %v1827
      %v1829 = vpop.f32.mrb[0].mxu0
      %1830 = vmatprep.mubr.bf16.mxu0 0
      %1831 = vmatmul.mubr.bf16.gmra.mrb[0].mxu0 %v1788
      %v1832 = vpop.f32.mrb[0].mxu0
      %v1833 = vadd.f32 0.0, %v1832
      %v1834 = vpop.f32.mrb[0].mxu0
      %v1835 = vpop.f32.mrb[0].mxu0
      %v1836 = vadd.f32 0.0, %v1835
      %v1837 = vpop.f32.mrb[0].mxu0
      %1838 = vdwg.mxu0
      %v1839 = vadd.f32 %v1753, %v1825
      %v1840 = vadd.f32 %v1754, %v1828
      %v1841 = vadd.f32 %v1755, %v1833
      %v1842 = vadd.f32 %v1756, %v1836
      %s1843 = scalar_lea.vmem %s305, 208
      %v1844 = vld [vmem:[%s1843] sm:$0xf]
      %v1845 = vld [vmem:[%s1843 + $0x4] sm:$0xf]
      %v1846 = vld [vmem:[%s1843 + $0x8] sm:$0xf]
      %v1847 = vld [vmem:[%s1843 + $0xc] sm:$0x7]
      %v1852 = vunpack.c.l.b16 %v1844
      %v1853 = vunpack.c.l.b16 %v1845
      %v1854 = vunpack.c.l.b16 %v1846
      %v1855 = vunpack.c.l.b16 %v1847
      %v1856 = vpack.c.b16 %v1853, %v1852
      %v1857 = vpack.c.b16 %v1855, %v1854
      %1858 = vrot.lane.b32.xlu0 %v741, 97
      %v1859 = vpop.permute.xlu0 %1858
      %1860 = vrot.lane.b32.xlu0 %v742, 97
      %v1861 = vpop.permute.xlu0 %1860
      %1862 = vrot.lane.b32.xlu0 %v743, 97
      %v1863 = vpop.permute.xlu0 %1862
      %1864 = vrot.lane.b32.xlu0 %v744, 97
      %v1865 = vpop.permute.xlu0 %1864
      %v1871 = vsel %vm776, %v1856, 0
      %v1874 = vsel %vm776, %v1857, 0
      %1876 = vmatprep.subr.bf16.mxu0 0
      %1877 = vmatpush1.bf16.msra.mxu0 %v1859
      %1878 = vmatprep.subr.bf16.mxu0 0
      %1879 = vmatpush1.bf16.msra.mxu0 %v1861
      %1880 = vmatprep.subr.bf16.mxu0 0
      %1881 = vmatpush1.bf16.msra.mxu0 %v1863
      %1882 = vmatprep.subr.bf16.mxu0 0
      %1883 = vmatpush1.bf16.msra.mxu0 %v1865
      %1884 = vmatprep.subr.bf16.mxu0 0
      %1885 = vmatpush1.bf16.msra.mxu0 0
      %1886 = vmatprep.subr.bf16.mxu0 0
      %1887 = vmatpush1.bf16.msra.mxu0 0
      %1888 = vmatprep.subr.bf16.mxu0 0
      %1889 = vmatpush1.bf16.msra.mxu0 0
      %1890 = vmatprep.subr.bf16.mxu0 0
      %1891 = vmatpush1.bf16.msra.mxu0 0
      %1892 = vmatprep.subr.bf16.mxu0 0
      %1893 = vmatpush1.bf16.msra.mxu0 0
      %1894 = vmatprep.subr.bf16.mxu0 0
      %1895 = vmatpush1.bf16.msra.mxu0 0
      %1896 = vmatprep.subr.bf16.mxu0 0
      %1897 = vmatpush1.bf16.msra.mxu0 0
      %1898 = vmatprep.subr.bf16.mxu0 0
      %1899 = vmatpush1.bf16.msra.mxu0 0
      %1900 = vmatprep.subr.bf16.mxu0 0
      %1901 = vmatpush1.bf16.msra.mxu0 0
      %1902 = vmatprep.subr.bf16.mxu0 0
      %1903 = vmatpush1.bf16.msra.mxu0 0
      %1904 = vmatprep.subr.bf16.mxu0 0
      %1905 = vmatpush1.bf16.msra.mxu0 0
      %1906 = vmatprep.subr.bf16.mxu0 0
      %1907 = vmatpush1.bf16.msra.mxu0 0
      %1908 = vmatprep.mubr.bf16.mxu0 0
      %1909 = vmatmul.mubr.bf16.gmra.mrb[0].mxu0 %v1871
      %v1910 = vpop.f32.mrb[0].mxu0
      %v1911 = vadd.f32 0.0, %v1910
      %v1912 = vpop.f32.mrb[0].mxu0
      %v1913 = vpop.f32.mrb[0].mxu0
      %v1914 = vadd.f32 0.0, %v1913
      %v1915 = vpop.f32.mrb[0].mxu0
      %1916 = vmatprep.mubr.bf16.mxu0 0
      %1917 = vmatmul.mubr.bf16.gmra.mrb[0].mxu0 %v1874
      %v1918 = vpop.f32.mrb[0].mxu0
      %v1919 = vadd.f32 0.0, %v1918
      %v1920 = vpop.f32.mrb[0].mxu0
      %v1921 = vpop.f32.mrb[0].mxu0
      %v1922 = vadd.f32 0.0, %v1921
      %v1923 = vpop.f32.mrb[0].mxu0
      %1924 = vdwg.mxu0
      %v1925 = vadd.f32 %v1839, %v1911
      %v1926 = vadd.f32 %v1840, %v1914
      %v1927 = vadd.f32 %v1841, %v1919
      %v1928 = vadd.f32 %v1842, %v1922
      %s1929 = scalar_lea.vmem %s305, 224
      %v1930 = vld [vmem:[%s1929] sm:$0xf]
      %v1931 = vld [vmem:[%s1929 + $0x4] sm:$0xf]
      %v1932 = vld [vmem:[%s1929 + $0x8] sm:$0xf]
      %v1933 = vld [vmem:[%s1929 + $0xc] sm:$0x7]
      %v1938 = vunpack.c.l.b16 %v1930
      %v1939 = vunpack.c.l.b16 %v1931
      %v1940 = vunpack.c.l.b16 %v1932
      %v1941 = vunpack.c.l.b16 %v1933
      %v1942 = vpack.c.b16 %v1939, %v1938
      %v1943 = vpack.c.b16 %v1941, %v1940
      %1944 = vrot.lane.b32.xlu0 %v741, 96
      %v1945 = vpop.permute.xlu0 %1944
      %1946 = vrot.lane.b32.xlu0 %v742, 96
      %v1947 = vpop.permute.xlu0 %1946
      %1948 = vrot.lane.b32.xlu0 %v743, 96
      %v1949 = vpop.permute.xlu0 %1948
      %1950 = vrot.lane.b32.xlu0 %v744, 96
      %v1951 = vpop.permute.xlu0 %1950
      %v1957 = vsel %vm776, %v1942, 0
      %v1960 = vsel %vm776, %v1943, 0
      %1962 = vmatprep.subr.bf16.mxu0 0
      %1963 = vmatpush1.bf16.msra.mxu0 %v1945
      %1964 = vmatprep.subr.bf16.mxu0 0
      %1965 = vmatpush1.bf16.msra.mxu0 %v1947
      %1966 = vmatprep.subr.bf16.mxu0 0
      %1967 = vmatpush1.bf16.msra.mxu0 %v1949
      %1968 = vmatprep.subr.bf16.mxu0 0
      %1969 = vmatpush1.bf16.msra.mxu0 %v1951
      %1970 = vmatprep.subr.bf16.mxu0 0
      %1971 = vmatpush1.bf16.msra.mxu0 0
      %1972 = vmatprep.subr.bf16.mxu0 0
      %1973 = vmatpush1.bf16.msra.mxu0 0
      %1974 = vmatprep.subr.bf16.mxu0 0
      %1975 = vmatpush1.bf16.msra.mxu0 0
      %1976 = vmatprep.subr.bf16.mxu0 0
      %1977 = vmatpush1.bf16.msra.mxu0 0
      %1978 = vmatprep.subr.bf16.mxu0 0
      %1979 = vmatpush1.bf16.msra.mxu0 0
      %1980 = vmatprep.subr.bf16.mxu0 0
      %1981 = vmatpush1.bf16.msra.mxu0 0
      %1982 = vmatprep.subr.bf16.mxu0 0
      %1983 = vmatpush1.bf16.msra.mxu0 0
      %1984 = vmatprep.subr.bf16.mxu0 0
      %1985 = vmatpush1.bf16.msra.mxu0 0
      %1986 = vmatprep.subr.bf16.mxu0 0
      %1987 = vmatpush1.bf16.msra.mxu0 0
      %1988 = vmatprep.subr.bf16.mxu0 0
      %1989 = vmatpush1.bf16.msra.mxu0 0
      %1990 = vmatprep.subr.bf16.mxu0 0
      %1991 = vmatpush1.bf16.msra.mxu0 0
      %1992 = vmatprep.subr.bf16.mxu0 0
      %1993 = vmatpush1.bf16.msra.mxu0 0
      %1994 = vmatprep.mubr.bf16.mxu0 0
      %1995 = vmatmul.mubr.bf16.gmra.mrb[0].mxu0 %v1957
      %v1996 = vpop.f32.mrb[0].mxu0
      %v1997 = vadd.f32 0.0, %v1996
      %v1998 = vpop.f32.mrb[0].mxu0
      %v1999 = vpop.f32.mrb[0].mxu0
      %v2000 = vadd.f32 0.0, %v1999
      %v2001 = vpop.f32.mrb[0].mxu0
      %2002 = vmatprep.mubr.bf16.mxu0 0
      %2003 = vmatmul.mubr.bf16.gmra.mrb[0].mxu0 %v1960
      %v2004 = vpop.f32.mrb[0].mxu0
      %v2005 = vadd.f32 0.0, %v2004
      %v2006 = vpop.f32.mrb[0].mxu0
      %v2007 = vpop.f32.mrb[0].mxu0
      %v2008 = vadd.f32 0.0, %v2007
      %v2009 = vpop.f32.mrb[0].mxu0
      %2010 = vdwg.mxu0
      %v2011 = vadd.f32 %v1925, %v1997
      %v2012 = vadd.f32 %v1926, %v2000
      %v2013 = vadd.f32 %v1927, %v2005
      %v2014 = vadd.f32 %v1928, %v2008
      %s2015 = scalar_lea.vmem %s305, 240
      %v2016 = vld [vmem:[%s2015] sm:$0xf]
      %v2017 = vld [vmem:[%s2015 + $0x4] sm:$0xf]
      %v2018 = vld [vmem:[%s2015 + $0x8] sm:$0xf]
      %v2019 = vld [vmem:[%s2015 + $0xc] sm:$0x7]
      %v2024 = vunpack.c.l.b16 %v2016
      %v2025 = vunpack.c.l.b16 %v2017
      %v2026 = vunpack.c.l.b16 %v2018
      %v2027 = vunpack.c.l.b16 %v2019
      %v2028 = vpack.c.b16 %v2025, %v2024
      %v2029 = vpack.c.b16 %v2027, %v2026
      %2030 = vrot.lane.b32.xlu0 %v741, 95
      %v2031 = vpop.permute.xlu0 %2030
      %2032 = vrot.lane.b32.xlu0 %v742, 95
      %v2033 = vpop.permute.xlu0 %2032
      %2034 = vrot.lane.b32.xlu0 %v743, 95
      %v2035 = vpop.permute.xlu0 %2034
      %2036 = vrot.lane.b32.xlu0 %v744, 95
      %v2037 = vpop.permute.xlu0 %2036
      %v2043 = vsel %vm776, %v2028, 0
      %v2046 = vsel %vm776, %v2029, 0
      %2048 = vmatprep.subr.bf16.mxu0 0
      %2049 = vmatpush1.bf16.msra.mxu0 %v2031
      %2050 = vmatprep.subr.bf16.mxu0 0
      %2051 = vmatpush1.bf16.msra.mxu0 %v2033
      %2052 = vmatprep.subr.bf16.mxu0 0
      %2053 = vmatpush1.bf16.msra.mxu0 %v2035
      %2054 = vmatprep.subr.bf16.mxu0 0
      %2055 = vmatpush1.bf16.msra.mxu0 %v2037
      %2056 = vmatprep.subr.bf16.mxu0 0
      %2057 = vmatpush1.bf16.msra.mxu0 0
      %2058 = vmatprep.subr.bf16.mxu0 0
      %2059 = vmatpush1.bf16.msra.mxu0 0
      %2060 = vmatprep.subr.bf16.mxu0 0
      %2061 = vmatpush1.bf16.msra.mxu0 0
      %2062 = vmatprep.subr.bf16.mxu0 0
      %2063 = vmatpush1.bf16.msra.mxu0 0
      %2064 = vmatprep.subr.bf16.mxu0 0
      %2065 = vmatpush1.bf16.msra.mxu0 0
      %2066 = vmatprep.subr.bf16.mxu0 0
      %2067 = vmatpush1.bf16.msra.mxu0 0
      %2068 = vmatprep.subr.bf16.mxu0 0
      %2069 = vmatpush1.bf16.msra.mxu0 0
      %2070 = vmatprep.subr.bf16.mxu0 0
      %2071 = vmatpush1.bf16.msra.mxu0 0
      %2072 = vmatprep.subr.bf16.mxu0 0
      %2073 = vmatpush1.bf16.msra.mxu0 0
      %2074 = vmatprep.subr.bf16.mxu0 0
      %2075 = vmatpush1.bf16.msra.mxu0 0
      %2076 = vmatprep.subr.bf16.mxu0 0
      %2077 = vmatpush1.bf16.msra.mxu0 0
      %2078 = vmatprep.subr.bf16.mxu0 0
      %2079 = vmatpush1.bf16.msra.mxu0 0
      %2080 = vmatprep.mubr.bf16.mxu0 0
      %2081 = vmatmul.mubr.bf16.gmra.mrb[0].mxu0 %v2043
      %v2082 = vpop.f32.mrb[0].mxu0
      %v2083 = vadd.f32 0.0, %v2082
      %v2084 = vpop.f32.mrb[0].mxu0
      %v2085 = vpop.f32.mrb[0].mxu0
      %v2086 = vadd.f32 0.0, %v2085
      %v2087 = vpop.f32.mrb[0].mxu0
      %2088 = vmatprep.mubr.bf16.mxu0 0
      %2089 = vmatmul.mubr.bf16.gmra.mrb[0].mxu0 %v2046
      %v2090 = vpop.f32.mrb[0].mxu0
      %v2091 = vadd.f32 0.0, %v2090
      %v2092 = vpop.f32.mrb[0].mxu0
      %v2093 = vpop.f32.mrb[0].mxu0
      %v2094 = vadd.f32 0.0, %v2093
      %v2095 = vpop.f32.mrb[0].mxu0
      %2096 = vdwg.mxu0
      %v2097 = vadd.f32 %v2011, %v2083
      %v2098 = vadd.f32 %v2012, %v2086
      %v2099 = vadd.f32 %v2013, %v2091
      %v2100 = vadd.f32 %v2014, %v2094
      %vm2101 = vcmask 572416
      %2102 = vst.msk [vmem:[%s311] sm:$0xff] %vm2101, %v2097
      %vm2103 = vcmask 566272
      %2104 = vst.msk [vmem:[%s311 + $0x8] sm:$0x3] %vm2103, %v2098
      %v2105 = vpack.c.bf16 %v2099, %v2098
      %v2106 = vpack.c.bf16 %v2100, %v2100
      %v2107 = vld [vmem:[%s4] sm:$0xf]
      %v2108 = vld [vmem:[%s4 + $0x4] sm:$0xf]
      %v2109 = vld [vmem:[%s4 + $0x8] sm:$0x3]
      %v2110 = vld [vmem:[%s5] sm:$0xff]
      %v2111 = vld [vmem:[%s5 + $0x8] sm:$0xff]
      %v2112 = vld [vmem:[%s5 + $0x10] sm:$0xf]
      %2114 = vset.pattern.permute.xlu0 0
      %2115 = vperm.xlu0 %2114, %v2110
      %v2116 = vpop.permute.xlu0 %2115
      %2119 = vset.pattern.permute.xlu0 0
      %2120 = vperm.xlu0 %2119, %v2111
      %v2121 = vpop.permute.xlu0 %2120
      %2124 = vset.pattern.permute.xlu0 0
      %2125 = vperm.xlu0 %2124, %v2112
      %v2126 = vpop.permute.xlu0 %2125
      %v2131 = vunpack.c.l.b16 %v2107
      %v2132 = vunpack.c.l.b16 %v2108
      %v2133 = vunpack.c.l.b16 %v2109
      %v2134 = vpack.c.b16 %v2132, %v2131
      %v2135 = vpack.c.b16 %v2133, %v2133
      %vm2138 = vcmask 1046528
      %v2139 = vrot.slane %v2105, 1
      %v2140 = vrot.slane %v2106, 1
      %v2141 = vsel %vm2138, %v2139, %v2140
      %vm2143 = vcmask 162816
      %v2145 = vsel %vm2143, %v2134, 0
      %v2148 = vsel %vm2143, %v2135, 0
      %vm2150 = vcmask 1041408
      %v2152 = vsel %vm2150, %v2140, 0
      %2154 = vmatprep.subr.bf16.mxu0 0
      %2155 = vmatpush1.bf16.msra.mxu0 %v2141
      %2156 = vmatprep.subr.bf16.mxu0 0
      %2157 = vmatpush1.bf16.msra.mxu0 %v2152
      %2158 = vmatprep.subr.bf16.mxu0 0
      %2159 = vmatpush1.bf16.msra.mxu0 0
      %2160 = vmatprep.subr.bf16.mxu0 0
      %2161 = vmatpush1.bf16.msra.mxu0 0
      %2162 = vmatprep.subr.bf16.mxu0 0
      %2163 = vmatpush1.bf16.msra.mxu0 0
      %2164 = vmatprep.subr.bf16.mxu0 0
      %2165 = vmatpush1.bf16.msra.mxu0 0
      %2166 = vmatprep.subr.bf16.mxu0 0
      %2167 = vmatpush1.bf16.msra.mxu0 0
      %2168 = vmatprep.subr.bf16.mxu0 0
      %2169 = vmatpush1.bf16.msra.mxu0 0
      %2170 = vmatprep.subr.bf16.mxu0 0
      %2171 = vmatpush1.bf16.msra.mxu0 0
      %2172 = vmatprep.subr.bf16.mxu0 0
      %2173 = vmatpush1.bf16.msra.mxu0 0
      %2174 = vmatprep.subr.bf16.mxu0 0
      %2175 = vmatpush1.bf16.msra.mxu0 0
      %2176 = vmatprep.subr.bf16.mxu0 0
      %2177 = vmatpush1.bf16.msra.mxu0 0
      %2178 = vmatprep.subr.bf16.mxu0 0
      %2179 = vmatpush1.bf16.msra.mxu0 0
      %2180 = vmatprep.subr.bf16.mxu0 0
      %2181 = vmatpush1.bf16.msra.mxu0 0
      %2182 = vmatprep.subr.bf16.mxu0 0
      %2183 = vmatpush1.bf16.msra.mxu0 0
      %2184 = vmatprep.subr.bf16.mxu0 0
      %2185 = vmatpush1.bf16.msra.mxu0 0
      %2186 = vmatprep.mubr.bf16.mxu0 0
      %2187 = vmatmul.mubr.bf16.gmra.mrb[0].mxu0 %v2145
      %v2188 = vpop.f32.mrb[0].mxu0
      %v2189 = vadd.f32 %v2116, %v2188
      %v2190 = vpop.f32.mrb[0].mxu0
      %v2191 = vpop.f32.mrb[0].mxu0
      %v2192 = vadd.f32 %v2121, %v2191
      %v2193 = vpop.f32.mrb[0].mxu0
      %2194 = vmatprep.mubr.bf16.mxu0 0
      %2195 = vmatmul.mubr.bf16.gmra.mrb[0].mxu0 %v2148
      %v2196 = vpop.f32.mrb[0].mxu0
      %v2197 = vadd.f32 %v2126, %v2196
      %v2198 = vpop.f32.mrb[0].mxu0
      %v2199 = vpop.f32.mrb[0].mxu0
      %v2200 = vpop.f32.mrb[0].mxu0
      %2201 = vdwg.mxu0
      %2202 = vst.msk [vmem:[%s316] sm:$0xff] %vm2101, %v2189
      %2203 = vst.msk [vmem:[%s316 + $0x8] sm:$0xff] %vm2101, %v2192
      %vm2204 = vcmask 568320
      %2205 = vst.msk [vmem:[%s316 + $0x10] sm:$0xf] %vm2204, %v2197
      %p2206 = scmp.lt.s32.totalorder %s19, 1
      %s2207 = scalar_select %p2206, %s19, 1
      %s2208 = smul.addr %s2207, 2
      %s2209 = smul.addr %s2208, 8
      %s2210 = scalar_lea.vmem %s6, %s2209
      %p2211 = scmp.lt.s32.totalorder %s19, 1
      %s2212 = scalar_select %p2211, %s19, 1
      %s2213 = smul.addr %s2212, 3
      %s2214 = smul.addr %s2213, 8
      %s2215 = scalar_lea.vmem %s7, %s2214
      // Predicated region
      $region45: #{_lambda_.3} parent=43 // pred_check
        %p2216 = pneg %p173
      $region46: #{_lambda_.3} parent=43 // pred_check_branch
        %2218 = sbr.rel (%p2216) target = $region48
      $region47: #{_lambda_.3} parent=43 // pred_region
        _
      $region48: #{_lambda_.3} parent=43 // pred_fallthru
        _
      // Predicated region
      $region49: #{_lambda_.3} parent=43 // pred_check
        %p2219 = pneg %p199
      $region50: #{_lambda_.3} parent=43 // pred_check_branch
        %2221 = sbr.rel (%p2219) target = $region52
      $region51: #{_lambda_.3} parent=43 // pred_region
        _
      $region52: #{_lambda_.3} parent=43 // pred_fallthru
        _
    $region44: #{_lambda_.3} parent=5 // pred_fallthru
      _
    %p2222 = scmp.le.s32.totalorder 2, %s14
    // Predicated region
    $region53: #{_lambda_.3} parent=5 // pred_check
      %p2223 = pneg %p2222
    $region54: #{_lambda_.3} parent=5 // pred_check_branch
      %2225 = sbr.rel (%p2223) target = $region56
    $region55: #{_lambda_.3} parent=5 // pred_region
      %s2226 = ssub.s32 %s14, 2
      // Predicated region
      $region57: #{_lambda_.3} parent=55 // pred_check
        %p2227 = pneg %p179
      $region58: #{_lambda_.3} parent=55 // pred_check_branch
        %2229 = sbr.rel (%p2227) target = $region60
      $region59: #{_lambda_.3} parent=55 // pred_region
        %p2230 = scmp.lt.s32.totalorder %s20, 1
        %s2231 = scalar_select %p2230, %s20, 1
        %s2232 = smul.addr %s2231, 2
        %s2233 = smul.addr %s2232, 8
        %s2234 = scalar_lea.vmem %s6, %s2233
      $region60: #{_lambda_.3} parent=55 // pred_fallthru
        _
      // Predicated region
      $region61: #{_lambda_.3} parent=55 // pred_check
        %p2235 = pneg %p205
      $region62: #{_lambda_.3} parent=55 // pred_check_branch
        %2237 = sbr.rel (%p2235) target = $region64
      $region63: #{_lambda_.3} parent=55 // pred_region
        %p2238 = scmp.lt.s32.totalorder %s20, 1
        %s2239 = scalar_select %p2238, %s20, 1
        %s2240 = smul.addr %s2239, 3
        %s2241 = smul.addr %s2240, 8
        %s2242 = scalar_lea.vmem %s7, %s2241
      $region64: #{_lambda_.3} parent=55 // pred_fallthru
        _
    $region56: #{_lambda_.3} parent=5 // pred_fallthru
      _
  $region6: #{_lambda_.3} parent=0 // loop_footer
    %s18 = sadd.s32 1, %s14
  $region7: #{_lambda_.3} parent=0 // loop_footer_branch
    %13 = sbr.rel target = $region3
  $region8: #{_lambda_.3} parent=0 // loop_exit
    _

</llo_original>
